<compile_context>
chip_gen: v7x
topology: tpu7x:2x2x1
jax: 0.10.0
libtpu: 0.0.40
codegen_flags: <defaults>
</compile_context>

<pallas_src>
import functools

import jax
import jax.numpy as jnp
from jax.experimental import pallas as pl
from jax.experimental.pallas import tpu as pltpu


# ----------------------------- Pallas kernels -----------------------------

def _conv_block_kernel(xp_ref, w_ref, b_ref, e0_ref, e1_ref, se_ref, so_ref, o_ref, *, H):
    """Fused 3x3 conv (pad=1) + bias + ReLU + 2x2 max-pool for one image.

    xp_ref: (H+2, (W+2)*C)        zero-padded input row-slab, lanes = (w, c)
    w_ref : (3, (W+2)*C, W*Cout)  per-kh row weights (kw shift folded in)
    b_ref : (1, W*Cout)           per-channel bias tiled over w
    e0/e1 : (H/2, H)              even / odd row selectors   (vertical pool)
    se/so : (W*Cout, (W/2)*Cout)  even / odd pixel-block selectors (horizontal pool)
    o_ref : (H/2, (W/2)*Cout)     pooled, lane-dense output
    """
    acc = jnp.dot(xp_ref[0:H, :], w_ref[0], preferred_element_type=jnp.float32)
    acc = acc + jnp.dot(xp_ref[1:H + 1, :], w_ref[1], preferred_element_type=jnp.float32)
    acc = acc + jnp.dot(xp_ref[2:H + 2, :], w_ref[2], preferred_element_type=jnp.float32)
    y = jnp.maximum(acc + b_ref[...], 0.0)                       # conv + bias + ReLU
    vmax = jnp.maximum(                                          # max over row pairs
        jnp.dot(e0_ref[...], y, preferred_element_type=jnp.float32),
        jnp.dot(e1_ref[...], y, preferred_element_type=jnp.float32))
    pooled = jnp.maximum(                                        # max over column pairs
        jnp.dot(vmax, se_ref[...], preferred_element_type=jnp.float32),
        jnp.dot(vmax, so_ref[...], preferred_element_type=jnp.float32))
    o_ref[...] = pooled.astype(o_ref.dtype)


def _head_kernel(x_ref, w1_ref, b1_ref, w2_ref, b2_ref, w3_ref, b3_ref,
                 label_ref, rank_ref, *, num_classes):
    """Both 3-layer MLP heads fused into one kernel.

    avgpool + NCHW-flatten-order are pre-folded into w1; the two heads are
    concatenated / block-diagonal, so every matmul is 2*hidden = 128 lanes wide.
    """
    x = x_ref[...]
    h = jnp.maximum(jnp.dot(x, w1_ref[...], preferred_element_type=jnp.float32) + b1_ref[...], 0.0)
    h = jnp.maximum(jnp.dot(h, w2_ref[...], preferred_element_type=jnp.float32) + b2_ref[...], 0.0)
    y = jnp.dot(h, w3_ref[...], preferred_element_type=jnp.float32) + b3_ref[...]
    label_logits = y[:, :num_classes]
    rank_logits = y[:, num_classes:]
    # numerically-stable sigmoid via tanh (EUP): sigmoid(x) = 0.5*(tanh(x/2)+1)
    label_ref[...] = (0.5 * (jnp.tanh(0.5 * label_logits) + 1.0)).astype(label_ref.dtype)
    # softmax over dim=1; denominator reciprocal on the EUP slot (approx is ~free)
    r = rank_logits - jnp.max(rank_logits, axis=-1, keepdims=True)
    e = jnp.exp(r)
    rank_ref[...] = (e * pl.reciprocal(jnp.sum(e, axis=-1, keepdims=True), approx=True)
                     ).astype(rank_ref.dtype)


# ----------------------------- pallas_call wrappers -----------------------------

def _full_spec(shape):
    # Whole-array block (head tensors are tiny; single kernel invocation).
    return pl.BlockSpec(shape, lambda i: (0,) * len(shape))


def conv_block(xp3, w_taps, b_tiled, e0, e1, se, so):
    """Fused conv3x3(pad=1)+bias+ReLU+maxpool2x2; grid over batch ("parallel")."""
    N, Hp, WpC = xp3.shape
    H = Hp - 2
    Hh = e0.shape[0]
    WhCout = se.shape[1]
    return pl.pallas_call(
        functools.partial(_conv_block_kernel, H=H),
        out_shape=jax.ShapeDtypeStruct((N, Hh, WhCout), jnp.float32),
        grid=(N,),
        in_specs=[
            pl.BlockSpec((None, Hp, WpC), lambda n: (n, 0, 0)),
            pl.BlockSpec(w_taps.shape, lambda n: (0, 0, 0)),
            pl.BlockSpec(b_tiled.shape, lambda n: (0, 0)),
            pl.BlockSpec(e0.shape, lambda n: (0, 0)),
            pl.BlockSpec(e1.shape, lambda n: (0, 0)),
            pl.BlockSpec(se.shape, lambda n: (0, 0)),
            pl.BlockSpec(so.shape, lambda n: (0, 0)),
        ],
        out_specs=pl.BlockSpec((None, Hh, WhCout), lambda n: (n, 0, 0)),
        compiler_params=pltpu.CompilerParams(dimension_semantics=("parallel",)),
    )(xp3, w_taps, b_tiled, e0, e1, se, so)


def fused_heads(x, w1, b1, w2, b2, w3, b3, *, num_classes):
    """Single pallas_call running both classifier heads (6 Linear layers + activations)."""
    N = x.shape[0]
    rank_out = w3.shape[1] - num_classes
    return pl.pallas_call(
        functools.partial(_head_kernel, num_classes=num_classes),
        out_shape=(jax.ShapeDtypeStruct((N, num_classes), jnp.float32),
                   jax.ShapeDtypeStruct((N, rank_out), jnp.float32)),
        grid=(1,),
        in_specs=[_full_spec(a.shape) for a in (x, w1, b1, w2, b2, w3, b3)],
        out_specs=(_full_spec((N, num_classes)), _full_spec((N, rank_out))),
        compiler_params=pltpu.CompilerParams(dimension_semantics=("arbitrary",)),
    )(x, w1, b1, w2, b2, w3, b3)


# ----------------------------- one-time weight preparation -----------------------------

def _conv_row_weights(w_mat, C, Cout, W):
    """(9*C, Cout) im2col-order conv weight -> (3, (W+2)*C, W*Cout) per-kh row weights."""
    K = w_mat.reshape(3, 3, C, Cout)                                       # (kh, kw, c, co)
    D = jnp.stack([jnp.eye(W + 2, W, k=-kw, dtype=w_mat.dtype) for kw in range(3)])  # (kw, p, w)
    out = jnp.einsum("kpw,hkcq->hpcwq", D, K)                              # (kh, p, c, w, co)
    return out.reshape(3, (W + 2) * C, W * Cout)


def _pool_selectors(H, W, Cout, dtype=jnp.float32):
    """Row / pixel-block 0-1 selectors so the 2x2 max-pool runs as plain matmuls."""
    eh = jnp.eye(H, dtype=dtype)
    e0, e1 = eh[0::2, :], eh[1::2, :]                                      # (H/2, H)
    pw = jnp.eye(W, dtype=dtype)
    ic = jnp.eye(Cout, dtype=dtype)
    se = jnp.einsum("wj,cd->wcjd", pw[:, 0::2], ic).reshape(W * Cout, (W // 2) * Cout)
    so = jnp.einsum("wj,cd->wcjd", pw[:, 1::2], ic).reshape(W * Cout, (W // 2) * Cout)
    return e0, e1, se, so


def prepare_params(params, input_hw=(16, 16)):
    """One-time fusion of the raw per-layer weights into kernel-friendly tensors."""
    H, W = input_hw
    cin = params["conv1_w"].shape[0] // 9
    c1 = params["conv1_w"].shape[1]
    c2 = params["conv2_w"].shape[1]
    hidden = params["cl_w1"].shape[1]
    num_classes = params["cl_w3"].shape[1]
    rank_out = params["rk_w3"].shape[1]

    H1, W1 = H // 2, W // 2            # spatial after conv block 1
    H2, W2 = H1 // 2, W1 // 2          # spatial after conv block 2 (pre-avgpool)
    # TODO(synk): AdaptiveAvgPool2d((2,2)) is folded into h_w1 assuming the pre-pool
    # feature map is exactly 4x4 (i.e. a 16x16 input), matching the scaled-down module.
    assert (H2, W2) == (4, 4) and params["cl_w1"].shape[0] == c2 * 4

    fp = {}
    # conv blocks (conv weight reshaped into 3 per-kh row-matmul matrices + pool selectors)
    fp["c1_w"] = _conv_row_weights(params["conv1_w"], cin, c1, W)
    fp["c1_b"] = jnp.tile(params["conv1_b"], W).reshape(1, W * c1)
    fp["c1_e0"], fp["c1_e1"], fp["c1_se"], fp["c1_so"] = _pool_selectors(H, W, c1)
    fp["c2_w"] = _conv_row_weights(params["conv2_w"], c1, c2, W1)
    fp["c2_b"] = jnp.tile(params["conv2_b"], W1).reshape(1, W1 * c2)
    fp["c2_e0"], fp["c2_e1"], fp["c2_se"], fp["c2_so"] = _pool_selectors(H1, W1, c2)

    # fused heads: avgpool(2,2) + NCHW flatten order folded into the first-layer
    # weight; both heads concatenated / block-diagonal -> 128-lane matmuls.
    w1_cat = jnp.concatenate([params["cl_w1"], params["rk_w1"]], axis=1)   # (c2*2*2, 2*hidden)
    hh, ww, cc = jnp.meshgrid(jnp.arange(H2), jnp.arange(W2), jnp.arange(c2), indexing="ij")
    rows = (cc * 4 + (hh // 2) * 2 + (ww // 2)).reshape(-1)                # NHWC pre-pool -> NCHW pooled row
    fp["h_w1"] = 0.25 * w1_cat[rows, :]                                    # (H2*W2*c2, 2*hidden)
    fp["h_b1"] = jnp.concatenate([params["cl_b1"], params["rk_b1"]]).reshape(1, -1)

    z2 = jnp.zeros((hidden, hidden), jnp.float32)
    fp["h_w2"] = jnp.block([[params["cl_w2"], z2], [z2, params["rk_w2"]]])
    fp["h_b2"] = jnp.concatenate([params["cl_b2"], params["rk_b2"]]).reshape(1, -1)
    fp["h_w3"] = jnp.block([[params["cl_w3"], jnp.zeros((hidden, rank_out), jnp.float32)],
                            [jnp.zeros((hidden, num_classes), jnp.float32), params["rk_w3"]]])
    fp["h_b3"] = jnp.concatenate([params["cl_b3"], params["rk_b3"]]).reshape(1, -1)
    return fp


# ----------------------------- model -----------------------------

def init_params(key, cin=3, c1=16, c2=32, hidden=64, num_classes=10, rank_out=10):
    keys = jax.random.split(key, 16)

    def w(k, shape, scale):
        return (scale * jax.random.normal(k, shape)).astype(jnp.float32)

    flat = c2 * 2 * 2  # channels * 2 * 2 after adaptive avg-pool (VGG: 512*7*7)
    return {
        # features (conv weights stored as (kh*kw*Cin, Cout), im2col row order)
        "conv1_w": w(keys[0], (9 * cin, c1), 0.10), "conv1_b": w(keys[1], (c1,), 0.01),
        "conv2_w": w(keys[2], (9 * c1, c2), 0.05),  "conv2_b": w(keys[3], (c2,), 0.01),
        # classifier_label (init_net.classifier): Linear-ReLU-Drop x2 + Linear
        "cl_w1": w(keys[4], (flat, hidden), 0.05),  "cl_b1": w(keys[5], (hidden,), 0.01),
        "cl_w2": w(keys[6], (hidden, hidden), 0.05), "cl_b2": w(keys[7], (hidden,), 0.01),
        "cl_w3": w(keys[8], (hidden, num_classes), 0.05), "cl_b3": w(keys[9], (num_classes,), 0.01),
        # rank_classifier: same structure
        "rk_w1": w(keys[10], (flat, hidden), 0.05), "rk_b1": w(keys[11], (hidden,), 0.01),
        "rk_w2": w(keys[12], (hidden, hidden), 0.05), "rk_b2": w(keys[13], (hidden,), 0.01),
        "rk_w3": w(keys[14], (hidden, rank_out), 0.05), "rk_b3": w(keys[15], (rank_out,), 0.01),
    }


def vgg_rank_head_forward(x_nchw, fp, num_classes=10):
    # TODO(synk): cat=True (rank head fed with label_out) is not implemented in the
    # fused head; as in the reference module with a stock VGG classifier it would
    # require rank_classifier in_features == num_classes.  Default cat=False path.
    x = jnp.transpose(x_nchw, (0, 2, 3, 1)).astype(jnp.float32)   # NCHW -> NHWC
    N, H, W, C = x.shape

    def pad_rows(a):  # NHWC -> (N, H+2, (W+2)*C) zero-padded row slabs
        n, h, w, c = a.shape
        return jnp.pad(a, ((0, 0), (1, 1), (1, 1), (0, 0))).reshape(n, h + 2, (w + 2) * c)

    # x = self.features(x): two fused [conv3x3+ReLU+maxpool2] Pallas kernels
    c1 = fp["c1_b"].shape[1] // W
    h1 = conv_block(pad_rows(x), fp["c1_w"], fp["c1_b"],
                    fp["c1_e0"], fp["c1_e1"], fp["c1_se"], fp["c1_so"])
    H1, W1 = H // 2, W // 2
    h1 = h1.reshape(N, H1, W1, c1)

    c2 = fp["c2_b"].shape[1] // W1
    h2 = conv_block(pad_rows(h1), fp["c2_w"], fp["c2_b"],
                    fp["c2_e0"], fp["c2_e1"], fp["c2_se"], fp["c2_so"])
    H2, W2 = H1 // 2, W1 // 2

    # avgpool + torch.flatten(x, 1) (NCHW order) are folded into fp["h_w1"];
    # both heads (sigmoid label head, softmax rank head) run in one fused kernel.
    x_flat = h2.reshape(N, H2 * W2 * c2)
    label_out, rank_out = fused_heads(x_flat, fp["h_w1"], fp["h_b1"], fp["h_w2"],
                                      fp["h_b2"], fp["h_w3"], fp["h_b3"],
                                      num_classes=num_classes)
    return label_out, rank_out


if __name__ == "__main__":
    key = jax.random.PRNGKey(0)
    kx, kp = jax.random.split(key)

    x = jax.random.normal(kx, (2, 3, 16, 16), dtype=jnp.float32)  # NCHW, like PyTorch
    params = init_params(kp)
    fp = prepare_params(params, input_hw=(16, 16))                # one-time weight fusion

    fwd = jax.jit(vgg_rank_head_forward)
    label_out, rank_out = fwd(x, fp)
    jax.block_until_ready((label_out, rank_out))

    assert label_out.shape == (2, 10) and rank_out.shape == (2, 10)
    assert bool(jnp.all(jnp.isfinite(label_out))) and bool(jnp.all(jnp.isfinite(rank_out)))
    assert bool(jnp.all((label_out >= 0.0) & (label_out <= 1.0)))
    # approx reciprocal in the softmax denominator -> allow a small tolerance
    assert bool(jnp.allclose(jnp.sum(rank_out, axis=1), 1.0, atol=1e-2))
    print("KERNEL_OK")
</pallas_src>

<mosaic_0001>
module attributes {stable_mosaic.version = 11 : i64} {
  func.func @_conv_block_kernel(%arg0: i32, %arg1: memref<1x18x54xf32, #tpu.memory_space<vmem>>, %arg2: memref<3x54x256xf32, #tpu.memory_space<vmem>>, %arg3: memref<1x256xf32, #tpu.memory_space<vmem>>, %arg4: memref<8x16xf32, #tpu.memory_space<vmem>>, %arg5: memref<8x16xf32, #tpu.memory_space<vmem>>, %arg6: memref<256x128xf32, #tpu.memory_space<vmem>>, %arg7: memref<256x128xf32, #tpu.memory_space<vmem>>, %arg8: memref<1x8x128xf32, #tpu.memory_space<vmem>>) attributes {dimension_semantics = [#tpu.dimension_semantics<parallel>], iteration_bounds = array<i64: 2>, scalar_prefetch = 0 : i64, scratch_operands = 0 : i64, tpu.core_type = #tpu.core_type<tc>, window_params = [{transform_indices = @transform_0, window_bounds = array<i64: 1, 18, 54>}, {pipeline_mode = #tpu.pipeline_mode<synchronous>, transform_indices = @transform_1, window_bounds = array<i64: 3, 54, 256>}, {pipeline_mode = #tpu.pipeline_mode<synchronous>, transform_indices = @transform_2, window_bounds = array<i64: 1, 256>}, {pipeline_mode = #tpu.pipeline_mode<synchronous>, transform_indices = @transform_3, window_bounds = array<i64: 8, 16>}, {pipeline_mode = #tpu.pipeline_mode<synchronous>, transform_indices = @transform_4, window_bounds = array<i64: 8, 16>}, {pipeline_mode = #tpu.pipeline_mode<synchronous>, transform_indices = @transform_5, window_bounds = array<i64: 256, 128>}, {pipeline_mode = #tpu.pipeline_mode<synchronous>, transform_indices = @transform_6, window_bounds = array<i64: 256, 128>}, {transform_indices = @transform_7, window_bounds = array<i64: 1, 8, 128>}]} {
    %c0 = arith.constant 0 : index
    %c0_0 = arith.constant 0 : index
    %c0_1 = arith.constant 0 : index
    %0 = vector.load %arg1[%c0, %c0_0, %c0_1] : memref<1x18x54xf32, #tpu.memory_space<vmem>>, vector<1x16x54xf32>
    %1 = vector.shape_cast %0 : vector<1x16x54xf32> to vector<16x54xf32>
    %c0_2 = arith.constant 0 : index
    %c0_3 = arith.constant 0 : index
    %c0_4 = arith.constant 0 : index
    %2 = vector.load %arg2[%c0_2, %c0_3, %c0_4] : memref<3x54x256xf32, #tpu.memory_space<vmem>>, vector<1x54x256xf32>
    %3 = vector.shape_cast %2 : vector<1x54x256xf32> to vector<54x256xf32>
    %cst = arith.constant dense<0.000000e+00> : vector<16x256xf32>
    %4 = tpu.matmul %1, %3, %cst {dimension_numbers = #tpu.dot_dimension_numbers<[1], [0], [0], [1], [0, 0, 1, 1], [], []>} : vector<16x54xf32>, vector<54x256xf32>, vector<16x256xf32> -> vector<16x256xf32>
    %c0_5 = arith.constant 0 : index
    %c1 = arith.constant 1 : index
    %c0_6 = arith.constant 0 : index
    %5 = vector.load %arg1[%c0_5, %c1, %c0_6] : memref<1x18x54xf32, #tpu.memory_space<vmem>>, vector<1x16x54xf32>
    %6 = vector.shape_cast %5 : vector<1x16x54xf32> to vector<16x54xf32>
    %c1_7 = arith.constant 1 : index
    %c0_8 = arith.constant 0 : index
    %c0_9 = arith.constant 0 : index
    %7 = vector.load %arg2[%c1_7, %c0_8, %c0_9] : memref<3x54x256xf32, #tpu.memory_space<vmem>>, vector<1x54x256xf32>
    %8 = vector.shape_cast %7 : vector<1x54x256xf32> to vector<54x256xf32>
    %cst_10 = arith.constant dense<0.000000e+00> : vector<16x256xf32>
    %9 = tpu.matmul %6, %8, %cst_10 {dimension_numbers = #tpu.dot_dimension_numbers<[1], [0], [0], [1], [0, 0, 1, 1], [], []>} : vector<16x54xf32>, vector<54x256xf32>, vector<16x256xf32> -> vector<16x256xf32>
    %10 = arith.addf %4, %9 : vector<16x256xf32>
    %c0_11 = arith.constant 0 : index
    %c2 = arith.constant 2 : index
    %c0_12 = arith.constant 0 : index
    %11 = vector.load %arg1[%c0_11, %c2, %c0_12] : memref<1x18x54xf32, #tpu.memory_space<vmem>>, vector<1x16x54xf32>
    %12 = vector.shape_cast %11 : vector<1x16x54xf32> to vector<16x54xf32>
    %c2_13 = arith.constant 2 : index
    %c0_14 = arith.constant 0 : index
    %c0_15 = arith.constant 0 : index
    %13 = vector.load %arg2[%c2_13, %c0_14, %c0_15] : memref<3x54x256xf32, #tpu.memory_space<vmem>>, vector<1x54x256xf32>
    %14 = vector.shape_cast %13 : vector<1x54x256xf32> to vector<54x256xf32>
    %cst_16 = arith.constant dense<0.000000e+00> : vector<16x256xf32>
    %15 = tpu.matmul %12, %14, %cst_16 {dimension_numbers = #tpu.dot_dimension_numbers<[1], [0], [0], [1], [0, 0, 1, 1], [], []>} : vector<16x54xf32>, vector<54x256xf32>, vector<16x256xf32> -> vector<16x256xf32>
    %16 = arith.addf %10, %15 : vector<16x256xf32>
    %c0_17 = arith.constant 0 : index
    %c0_18 = arith.constant 0 : index
    %17 = vector.load %arg3[%c0_17, %c0_18] : memref<1x256xf32, #tpu.memory_space<vmem>>, vector<1x256xf32>
    %18 = vector.broadcast %17 : vector<1x256xf32> to vector<16x256xf32>
    %19 = arith.addf %16, %18 : vector<16x256xf32>
    %cst_19 = arith.constant 0.000000e+00 : f32
    %20 = vector.broadcast %cst_19 : f32 to vector<16x256xf32>
    %21 = arith.maximumf %19, %20 : vector<16x256xf32>
    %c0_20 = arith.constant 0 : index
    %c0_21 = arith.constant 0 : index
    %22 = vector.load %arg4[%c0_20, %c0_21] : memref<8x16xf32, #tpu.memory_space<vmem>>, vector<8x16xf32>
    %cst_22 = arith.constant dense<0.000000e+00> : vector<8x256xf32>
    %23 = tpu.matmul %22, %21, %cst_22 {dimension_numbers = #tpu.dot_dimension_numbers<[1], [0], [0], [1], [0, 0, 1, 1], [], []>} : vector<8x16xf32>, vector<16x256xf32>, vector<8x256xf32> -> vector<8x256xf32>
    %c0_23 = arith.constant 0 : index
    %c0_24 = arith.constant 0 : index
    %24 = vector.load %arg5[%c0_23, %c0_24] : memref<8x16xf32, #tpu.memory_space<vmem>>, vector<8x16xf32>
    %cst_25 = arith.constant dense<0.000000e+00> : vector<8x256xf32>
    %25 = tpu.matmul %24, %21, %cst_25 {dimension_numbers = #tpu.dot_dimension_numbers<[1], [0], [0], [1], [0, 0, 1, 1], [], []>} : vector<8x16xf32>, vector<16x256xf32>, vector<8x256xf32> -> vector<8x256xf32>
    %26 = arith.maximumf %23, %25 : vector<8x256xf32>
    %c0_26 = arith.constant 0 : index
    %c0_27 = arith.constant 0 : index
    %27 = vector.load %arg6[%c0_26, %c0_27] : memref<256x128xf32, #tpu.memory_space<vmem>>, vector<256x128xf32>
    %cst_28 = arith.constant dense<0.000000e+00> : vector<8x128xf32>
    %28 = tpu.matmul %26, %27, %cst_28 {dimension_numbers = #tpu.dot_dimension_numbers<[1], [0], [0], [1], [0, 0, 1, 1], [], []>} : vector<8x256xf32>, vector<256x128xf32>, vector<8x128xf32> -> vector<8x128xf32>
    %c0_29 = arith.constant 0 : index
    %c0_30 = arith.constant 0 : index
    %29 = vector.load %arg7[%c0_29, %c0_30] : memref<256x128xf32, #tpu.memory_space<vmem>>, vector<256x128xf32>
    %cst_31 = arith.constant dense<0.000000e+00> : vector<8x128xf32>
    %30 = tpu.matmul %26, %29, %cst_31 {dimension_numbers = #tpu.dot_dimension_numbers<[1], [0], [0], [1], [0, 0, 1, 1], [], []>} : vector<8x256xf32>, vector<256x128xf32>, vector<8x128xf32> -> vector<8x128xf32>
    %31 = arith.maximumf %28, %30 : vector<8x128xf32>
    %c0_32 = arith.constant 0 : index
    %c0_33 = arith.constant 0 : index
    %c0_34 = arith.constant 0 : index
    %32 = vector.load %arg8[%c0_32, %c0_33, %c0_34] : memref<1x8x128xf32, #tpu.memory_space<vmem>>, vector<1x8x128xf32>
    %33 = vector.shape_cast %32 : vector<1x8x128xf32> to vector<8x128xf32>
    %34 = vector.shape_cast %31 : vector<8x128xf32> to vector<1x8x128xf32>
    tpu.vector_store %arg8[%c0_32, %c0_33, %c0_34], %34 {strides = array<i32>} : memref<1x8x128xf32, #tpu.memory_space<vmem>>, vector<1x8x128xf32>,
    return
  }
  func.func @transform_0(%arg0: i32) -> (i32, i32, i32) {
    %c0_i32 = arith.constant 0 : i32
    %c0_i32_0 = arith.constant 0 : i32
    %c0_i32_1 = arith.constant 0 : i32
    return %arg0, %c0_i32, %c0_i32_0 : i32, i32, i32
  }
  func.func @transform_1(%arg0: i32) -> (i32, i32, i32) {
    %c0_i32 = arith.constant 0 : i32
    %c0_i32_0 = arith.constant 0 : i32
    %c0_i32_1 = arith.constant 0 : i32
    %c0_i32_2 = arith.constant 0 : i32
    return %c0_i32, %c0_i32_0, %c0_i32_1 : i32, i32, i32
  }
  func.func @transform_2(%arg0: i32) -> (i32, i32) {
    %c0_i32 = arith.constant 0 : i32
    %c0_i32_0 = arith.constant 0 : i32
    %c0_i32_1 = arith.constant 0 : i32
    return %c0_i32, %c0_i32_0 : i32, i32
  }
  func.func @transform_3(%arg0: i32) -> (i32, i32) {
    %c0_i32 = arith.constant 0 : i32
    %c0_i32_0 = arith.constant 0 : i32
    %c0_i32_1 = arith.constant 0 : i32
    return %c0_i32, %c0_i32_0 : i32, i32
  }
  func.func @transform_4(%arg0: i32) -> (i32, i32) {
    %c0_i32 = arith.constant 0 : i32
    %c0_i32_0 = arith.constant 0 : i32
    %c0_i32_1 = arith.constant 0 : i32
    return %c0_i32, %c0_i32_0 : i32, i32
  }
  func.func @transform_5(%arg0: i32) -> (i32, i32) {
    %c0_i32 = arith.constant 0 : i32
    %c0_i32_0 = arith.constant 0 : i32
    %c0_i32_1 = arith.constant 0 : i32
    return %c0_i32, %c0_i32_0 : i32, i32
  }
  func.func @transform_6(%arg0: i32) -> (i32, i32) {
    %c0_i32 = arith.constant 0 : i32
    %c0_i32_0 = arith.constant 0 : i32
    %c0_i32_1 = arith.constant 0 : i32
    return %c0_i32, %c0_i32_0 : i32, i32
  }
  func.func @transform_7(%arg0: i32) -> (i32, i32, i32) {
    %c0_i32 = arith.constant 0 : i32
    %c0_i32_0 = arith.constant 0 : i32
    %c0_i32_1 = arith.constant 0 : i32
    return %arg0, %c0_i32, %c0_i32_0 : i32, i32, i32
  }
}

module attributes {stable_mosaic.version = 11 : i64} {
  func.func @_conv_block_kernel(%arg0: i32, %arg1: memref<1x10x160xf32, #tpu.memory_space<vmem>>, %arg2: memref<3x160x256xf32, #tpu.memory_space<vmem>>, %arg3: memref<1x256xf32, #tpu.memory_space<vmem>>, %arg4: memref<4x8xf32, #tpu.memory_space<vmem>>, %arg5: memref<4x8xf32, #tpu.memory_space<vmem>>, %arg6: memref<256x128xf32, #tpu.memory_space<vmem>>, %arg7: memref<256x128xf32, #tpu.memory_space<vmem>>, %arg8: memref<1x4x128xf32, #tpu.memory_space<vmem>>) attributes {dimension_semantics = [#tpu.dimension_semantics<parallel>], iteration_bounds = array<i64: 2>, scalar_prefetch = 0 : i64, scratch_operands = 0 : i64, tpu.core_type = #tpu.core_type<tc>, window_params = [{transform_indices = @transform_0, window_bounds = array<i64: 1, 10, 160>}, {pipeline_mode = #tpu.pipeline_mode<synchronous>, transform_indices = @transform_1, window_bounds = array<i64: 3, 160, 256>}, {pipeline_mode = #tpu.pipeline_mode<synchronous>, transform_indices = @transform_2, window_bounds = array<i64: 1, 256>}, {pipeline_mode = #tpu.pipeline_mode<synchronous>, transform_indices = @transform_3, window_bounds = array<i64: 4, 8>}, {pipeline_mode = #tpu.pipeline_mode<synchronous>, transform_indices = @transform_4, window_bounds = array<i64: 4, 8>}, {pipeline_mode = #tpu.pipeline_mode<synchronous>, transform_indices = @transform_5, window_bounds = array<i64: 256, 128>}, {pipeline_mode = #tpu.pipeline_mode<synchronous>, transform_indices = @transform_6, window_bounds = array<i64: 256, 128>}, {transform_indices = @transform_7, window_bounds = array<i64: 1, 4, 128>}]} {
    %c0 = arith.constant 0 : index
    %c0_0 = arith.constant 0 : index
    %c0_1 = arith.constant 0 : index
    %0 = vector.load %arg1[%c0, %c0_0, %c0_1] : memref<1x10x160xf32, #tpu.memory_space<vmem>>, vector<1x8x160xf32>
    %1 = vector.shape_cast %0 : vector<1x8x160xf32> to vector<8x160xf32>
    %c0_2 = arith.constant 0 : index
    %c0_3 = arith.constant 0 : index
    %c0_4 = arith.constant 0 : index
    %2 = vector.load %arg2[%c0_2, %c0_3, %c0_4] : memref<3x160x256xf32, #tpu.memory_space<vmem>>, vector<1x160x256xf32>
    %3 = vector.shape_cast %2 : vector<1x160x256xf32> to vector<160x256xf32>
    %cst = arith.constant dense<0.000000e+00> : vector<8x256xf32>
    %4 = tpu.matmul %1, %3, %cst {dimension_numbers = #tpu.dot_dimension_numbers<[1], [0], [0], [1], [0, 0, 1, 1], [], []>} : vector<8x160xf32>, vector<160x256xf32>, vector<8x256xf32> -> vector<8x256xf32>
    %c0_5 = arith.constant 0 : index
    %c1 = arith.constant 1 : index
    %c0_6 = arith.constant 0 : index
    %5 = vector.load %arg1[%c0_5, %c1, %c0_6] : memref<1x10x160xf32, #tpu.memory_space<vmem>>, vector<1x8x160xf32>
    %6 = vector.shape_cast %5 : vector<1x8x160xf32> to vector<8x160xf32>
    %c1_7 = arith.constant 1 : index
    %c0_8 = arith.constant 0 : index
    %c0_9 = arith.constant 0 : index
    %7 = vector.load %arg2[%c1_7, %c0_8, %c0_9] : memref<3x160x256xf32, #tpu.memory_space<vmem>>, vector<1x160x256xf32>
    %8 = vector.shape_cast %7 : vector<1x160x256xf32> to vector<160x256xf32>
    %cst_10 = arith.constant dense<0.000000e+00> : vector<8x256xf32>
    %9 = tpu.matmul %6, %8, %cst_10 {dimension_numbers = #tpu.dot_dimension_numbers<[1], [0], [0], [1], [0, 0, 1, 1], [], []>} : vector<8x160xf32>, vector<160x256xf32>, vector<8x256xf32> -> vector<8x256xf32>
    %10 = arith.addf %4, %9 : vector<8x256xf32>
    %c0_11 = arith.constant 0 : index
    %c2 = arith.constant 2 : index
    %c0_12 = arith.constant 0 : index
    %11 = vector.load %arg1[%c0_11, %c2, %c0_12] : memref<1x10x160xf32, #tpu.memory_space<vmem>>, vector<1x8x160xf32>
    %12 = vector.shape_cast %11 : vector<1x8x160xf32> to vector<8x160xf32>
    %c2_13 = arith.constant 2 : index
    %c0_14 = arith.constant 0 : index
    %c0_15 = arith.constant 0 : index
    %13 = vector.load %arg2[%c2_13, %c0_14, %c0_15] : memref<3x160x256xf32, #tpu.memory_space<vmem>>, vector<1x160x256xf32>
    %14 = vector.shape_cast %13 : vector<1x160x256xf32> to vector<160x256xf32>
    %cst_16 = arith.constant dense<0.000000e+00> : vector<8x256xf32>
    %15 = tpu.matmul %12, %14, %cst_16 {dimension_numbers = #tpu.dot_dimension_numbers<[1], [0], [0], [1], [0, 0, 1, 1], [], []>} : vector<8x160xf32>, vector<160x256xf32>, vector<8x256xf32> -> vector<8x256xf32>
    %16 = arith.addf %10, %15 : vector<8x256xf32>
    %c0_17 = arith.constant 0 : index
    %c0_18 = arith.constant 0 : index
    %17 = vector.load %arg3[%c0_17, %c0_18] : memref<1x256xf32, #tpu.memory_space<vmem>>, vector<1x256xf32>
    %18 = vector.broadcast %17 : vector<1x256xf32> to vector<8x256xf32>
    %19 = arith.addf %16, %18 : vector<8x256xf32>
    %cst_19 = arith.constant 0.000000e+00 : f32
    %20 = vector.broadcast %cst_19 : f32 to vector<8x256xf32>
    %21 = arith.maximumf %19, %20 : vector<8x256xf32>
    %c0_20 = arith.constant 0 : index
    %c0_21 = arith.constant 0 : index
    %22 = vector.load %arg4[%c0_20, %c0_21] : memref<4x8xf32, #tpu.memory_space<vmem>>, vector<4x8xf32>
    %cst_22 = arith.constant dense<0.000000e+00> : vector<4x256xf32>
    %23 = tpu.matmul %22, %21, %cst_22 {dimension_numbers = #tpu.dot_dimension_numbers<[1], [0], [0], [1], [0, 0, 1, 1], [], []>} : vector<4x8xf32>, vector<8x256xf32>, vector<4x256xf32> -> vector<4x256xf32>
    %c0_23 = arith.constant 0 : index
    %c0_24 = arith.constant 0 : index
    %24 = vector.load %arg5[%c0_23, %c0_24] : memref<4x8xf32, #tpu.memory_space<vmem>>, vector<4x8xf32>
    %cst_25 = arith.constant dense<0.000000e+00> : vector<4x256xf32>
    %25 = tpu.matmul %24, %21, %cst_25 {dimension_numbers = #tpu.dot_dimension_numbers<[1], [0], [0], [1], [0, 0, 1, 1], [], []>} : vector<4x8xf32>, vector<8x256xf32>, vector<4x256xf32> -> vector<4x256xf32>
    %26 = arith.maximumf %23, %25 : vector<4x256xf32>
    %c0_26 = arith.constant 0 : index
    %c0_27 = arith.constant 0 : index
    %27 = vector.load %arg6[%c0_26, %c0_27] : memref<256x128xf32, #tpu.memory_space<vmem>>, vector<256x128xf32>
    %cst_28 = arith.constant dense<0.000000e+00> : vector<4x128xf32>
    %28 = tpu.matmul %26, %27, %cst_28 {dimension_numbers = #tpu.dot_dimension_numbers<[1], [0], [0], [1], [0, 0, 1, 1], [], []>} : vector<4x256xf32>, vector<256x128xf32>, vector<4x128xf32> -> vector<4x128xf32>
    %c0_29 = arith.constant 0 : index
    %c0_30 = arith.constant 0 : index
    %29 = vector.load %arg7[%c0_29, %c0_30] : memref<256x128xf32, #tpu.memory_space<vmem>>, vector<256x128xf32>
    %cst_31 = arith.constant dense<0.000000e+00> : vector<4x128xf32>
    %30 = tpu.matmul %26, %29, %cst_31 {dimension_numbers = #tpu.dot_dimension_numbers<[1], [0], [0], [1], [0, 0, 1, 1], [], []>} : vector<4x256xf32>, vector<256x128xf32>, vector<4x128xf32> -> vector<4x128xf32>
    %31 = arith.maximumf %28, %30 : vector<4x128xf32>
    %c0_32 = arith.constant 0 : index
    %c0_33 = arith.constant 0 : index
    %c0_34 = arith.constant 0 : index
    %32 = vector.load %arg8[%c0_32, %c0_33, %c0_34] : memref<1x4x128xf32, #tpu.memory_space<vmem>>, vector<1x4x128xf32>
    %33 = vector.shape_cast %32 : vector<1x4x128xf32> to vector<4x128xf32>
    %34 = vector.shape_cast %31 : vector<4x128xf32> to vector<1x4x128xf32>
    tpu.vector_store %arg8[%c0_32, %c0_33, %c0_34], %34 {strides = array<i32>} : memref<1x4x128xf32, #tpu.memory_space<vmem>>, vector<1x4x128xf32>,
    return
  }
  func.func @transform_0(%arg0: i32) -> (i32, i32, i32) {
    %c0_i32 = arith.constant 0 : i32
    %c0_i32_0 = arith.constant 0 : i32
    %c0_i32_1 = arith.constant 0 : i32
    return %arg0, %c0_i32, %c0_i32_0 : i32, i32, i32
  }
  func.func @transform_1(%arg0: i32) -> (i32, i32, i32) {
    %c0_i32 = arith.constant 0 : i32
    %c0_i32_0 = arith.constant 0 : i32
    %c0_i32_1 = arith.constant 0 : i32
    %c0_i32_2 = arith.constant 0 : i32
    return %c0_i32, %c0_i32_0, %c0_i32_1 : i32, i32, i32
  }
  func.func @transform_2(%arg0: i32) -> (i32, i32) {
    %c0_i32 = arith.constant 0 : i32
    %c0_i32_0 = arith.constant 0 : i32
    %c0_i32_1 = arith.constant 0 : i32
    return %c0_i32, %c0_i32_0 : i32, i32
  }
  func.func @transform_3(%arg0: i32) -> (i32, i32) {
    %c0_i32 = arith.constant 0 : i32
    %c0_i32_0 = arith.constant 0 : i32
    %c0_i32_1 = arith.constant 0 : i32
    return %c0_i32, %c0_i32_0 : i32, i32
  }
  func.func @transform_4(%arg0: i32) -> (i32, i32) {
    %c0_i32 = arith.constant 0 : i32
    %c0_i32_0 = arith.constant 0 : i32
    %c0_i32_1 = arith.constant 0 : i32
    return %c0_i32, %c0_i32_0 : i32, i32
  }
  func.func @transform_5(%arg0: i32) -> (i32, i32) {
    %c0_i32 = arith.constant 0 : i32
    %c0_i32_0 = arith.constant 0 : i32
    %c0_i32_1 = arith.constant 0 : i32
    return %c0_i32, %c0_i32_0 : i32, i32
  }
  func.func @transform_6(%arg0: i32) -> (i32, i32) {
    %c0_i32 = arith.constant 0 : i32
    %c0_i32_0 = arith.constant 0 : i32
    %c0_i32_1 = arith.constant 0 : i32
    return %c0_i32, %c0_i32_0 : i32, i32
  }
  func.func @transform_7(%arg0: i32) -> (i32, i32, i32) {
    %c0_i32 = arith.constant 0 : i32
    %c0_i32_0 = arith.constant 0 : i32
    %c0_i32_1 = arith.constant 0 : i32
    return %arg0, %c0_i32, %c0_i32_0 : i32, i32, i32
  }
}

module attributes {stable_mosaic.version = 11 : i64} {
  func.func @_head_kernel(%arg0: i32, %arg1: memref<2x512xf32, #tpu.memory_space<vmem>>, %arg2: memref<512x128xf32, #tpu.memory_space<vmem>>, %arg3: memref<1x128xf32, #tpu.memory_space<vmem>>, %arg4: memref<128x128xf32, #tpu.memory_space<vmem>>, %arg5: memref<1x128xf32, #tpu.memory_space<vmem>>, %arg6: memref<128x20xf32, #tpu.memory_space<vmem>>, %arg7: memref<1x20xf32, #tpu.memory_space<vmem>>, %arg8: memref<2x10xf32, #tpu.memory_space<vmem>>, %arg9: memref<2x10xf32, #tpu.memory_space<vmem>>) attributes {dimension_semantics = [#tpu.dimension_semantics<arbitrary>], iteration_bounds = array<i64: 1>, scalar_prefetch = 0 : i64, scratch_operands = 0 : i64, tpu.core_type = #tpu.core_type<tc>, window_params = [{pipeline_mode = #tpu.pipeline_mode<synchronous>, transform_indices = @transform_0, window_bounds = array<i64: 2, 512>}, {pipeline_mode = #tpu.pipeline_mode<synchronous>, transform_indices = @transform_1, window_bounds = array<i64: 512, 128>}, {pipeline_mode = #tpu.pipeline_mode<synchronous>, transform_indices = @transform_2, window_bounds = array<i64: 1, 128>}, {pipeline_mode = #tpu.pipeline_mode<synchronous>, transform_indices = @transform_3, window_bounds = array<i64: 128, 128>}, {pipeline_mode = #tpu.pipeline_mode<synchronous>, transform_indices = @transform_4, window_bounds = array<i64: 1, 128>}, {pipeline_mode = #tpu.pipeline_mode<synchronous>, transform_indices = @transform_5, window_bounds = array<i64: 128, 20>}, {pipeline_mode = #tpu.pipeline_mode<synchronous>, transform_indices = @transform_6, window_bounds = array<i64: 1, 20>}, {pipeline_mode = #tpu.pipeline_mode<synchronous>, transform_indices = @transform_7, window_bounds = array<i64: 2, 10>}, {pipeline_mode = #tpu.pipeline_mode<synchronous>, transform_indices = @transform_8, window_bounds = array<i64: 2, 10>}]} {
    %c0 = arith.constant 0 : index
    %c0_0 = arith.constant 0 : index
    %0 = vector.load %arg1[%c0, %c0_0] : memref<2x512xf32, #tpu.memory_space<vmem>>, vector<2x512xf32>
    %c0_1 = arith.constant 0 : index
    %c0_2 = arith.constant 0 : index
    %1 = vector.load %arg2[%c0_1, %c0_2] : memref<512x128xf32, #tpu.memory_space<vmem>>, vector<512x128xf32>
    %cst = arith.constant dense<0.000000e+00> : vector<2x128xf32>
    %2 = tpu.matmul %0, %1, %cst {dimension_numbers = #tpu.dot_dimension_numbers<[1], [0], [0], [1], [0, 0, 1, 1], [], []>} : vector<2x512xf32>, vector<512x128xf32>, vector<2x128xf32> -> vector<2x128xf32>
    %c0_3 = arith.constant 0 : index
    %c0_4 = arith.constant 0 : index
    %3 = vector.load %arg3[%c0_3, %c0_4] : memref<1x128xf32, #tpu.memory_space<vmem>>, vector<1x128xf32>
    %4 = vector.broadcast %3 : vector<1x128xf32> to vector<2x128xf32>
    %5 = arith.addf %2, %4 : vector<2x128xf32>
    %cst_5 = arith.constant 0.000000e+00 : f32
    %6 = vector.broadcast %cst_5 : f32 to vector<2x128xf32>
    %7 = arith.maximumf %5, %6 : vector<2x128xf32>
    %c0_6 = arith.constant 0 : index
    %c0_7 = arith.constant 0 : index
    %8 = vector.load %arg4[%c0_6, %c0_7] : memref<128x128xf32, #tpu.memory_space<vmem>>, vector<128x128xf32>
    %cst_8 = arith.constant dense<0.000000e+00> : vector<2x128xf32>
    %9 = tpu.matmul %7, %8, %cst_8 {dimension_numbers = #tpu.dot_dimension_numbers<[1], [0], [0], [1], [0, 0, 1, 1], [], []>} : vector<2x128xf32>, vector<128x128xf32>, vector<2x128xf32> -> vector<2x128xf32>
    %c0_9 = arith.constant 0 : index
    %c0_10 = arith.constant 0 : index
    %10 = vector.load %arg5[%c0_9, %c0_10] : memref<1x128xf32, #tpu.memory_space<vmem>>, vector<1x128xf32>
    %11 = vector.broadcast %10 : vector<1x128xf32> to vector<2x128xf32>
    %12 = arith.addf %9, %11 : vector<2x128xf32>
    %cst_11 = arith.constant 0.000000e+00 : f32
    %13 = vector.broadcast %cst_11 : f32 to vector<2x128xf32>
    %14 = arith.maximumf %12, %13 : vector<2x128xf32>
    %c0_12 = arith.constant 0 : index
    %c0_13 = arith.constant 0 : index
    %15 = vector.load %arg6[%c0_12, %c0_13] : memref<128x20xf32, #tpu.memory_space<vmem>>, vector<128x20xf32>
    %cst_14 = arith.constant dense<0.000000e+00> : vector<2x20xf32>
    %16 = tpu.matmul %14, %15, %cst_14 {dimension_numbers = #tpu.dot_dimension_numbers<[1], [0], [0], [1], [0, 0, 1, 1], [], []>} : vector<2x128xf32>, vector<128x20xf32>, vector<2x20xf32> -> vector<2x20xf32>
    %c0_15 = arith.constant 0 : index
    %c0_16 = arith.constant 0 : index
    %17 = vector.load %arg7[%c0_15, %c0_16] : memref<1x20xf32, #tpu.memory_space<vmem>>, vector<1x20xf32>
    %18 = vector.broadcast %17 : vector<1x20xf32> to vector<2x20xf32>
    %19 = arith.addf %16, %18 : vector<2x20xf32>
    %20 = vector.extract_strided_slice %19 {offsets = [0, 0], sizes = [2, 10], strides = [1, 1]} : vector<2x20xf32> to vector<2x10xf32>
    %21 = vector.extract_strided_slice %19 {offsets = [0, 10], sizes = [2, 10], strides = [1, 1]} : vector<2x20xf32> to vector<2x10xf32>
    %cst_17 = arith.constant 5.000000e-01 : f32
    %22 = vector.broadcast %cst_17 : f32 to vector<2x10xf32>
    %23 = arith.mulf %22, %20 : vector<2x10xf32>
    %24 = math.tanh %23 : vector<2x10xf32>
    %cst_18 = arith.constant 1.000000e+00 : f32
    %25 = vector.broadcast %cst_18 : f32 to vector<2x10xf32>
    %26 = arith.addf %24, %25 : vector<2x10xf32>
    %cst_19 = arith.constant 5.000000e-01 : f32
    %27 = vector.broadcast %cst_19 : f32 to vector<2x10xf32>
    %28 = arith.mulf %27, %26 : vector<2x10xf32>
    %c0_20 = arith.constant 0 : index
    %c0_21 = arith.constant 0 : index
    %29 = vector.load %arg8[%c0_20, %c0_21] : memref<2x10xf32, #tpu.memory_space<vmem>>, vector<2x10xf32>
    tpu.vector_store %arg8[%c0_20, %c0_21], %28 {strides = array<i32>} : memref<2x10xf32, #tpu.memory_space<vmem>>, vector<2x10xf32>,
    %cst_22 = arith.constant dense<0xFF800000> : vector<2xf32>
    %30 = vector.multi_reduction <maximumf>, %21, %cst_22 [1] : vector<2x10xf32> to vector<2xf32>
    %31 = vector.shape_cast %30 : vector<2xf32> to vector<2x1xf32>
    %32 = vector.broadcast %31 : vector<2x1xf32> to vector<2x10xf32>
    %33 = arith.subf %21, %32 : vector<2x10xf32>
    %34 = math.exp %33 : vector<2x10xf32>
    %cst_23 = arith.constant dense<0.000000e+00> : vector<2xf32>
    %35 = vector.multi_reduction <add>, %34, %cst_23 [1] : vector<2x10xf32> to vector<2xf32>
    %36 = vector.shape_cast %35 : vector<2xf32> to vector<2x1xf32>
    %37 = tpu.reciprocal %36 {approx = true} : vector<2x1xf32> -> vector<2x1xf32>
    %38 = vector.broadcast %37 : vector<2x1xf32> to vector<2x10xf32>
    %39 = arith.mulf %34, %38 : vector<2x10xf32>
    %c0_24 = arith.constant 0 : index
    %c0_25 = arith.constant 0 : index
    %40 = vector.load %arg9[%c0_24, %c0_25] : memref<2x10xf32, #tpu.memory_space<vmem>>, vector<2x10xf32>
    tpu.vector_store %arg9[%c0_24, %c0_25], %39 {strides = array<i32>} : memref<2x10xf32, #tpu.memory_space<vmem>>, vector<2x10xf32>,
    return
  }
  func.func @transform_0(%arg0: i32) -> (i32, i32) {
    %c0_i32 = arith.constant 0 : i32
    %c0_i32_0 = arith.constant 0 : i32
    %c0_i32_1 = arith.constant 0 : i32
    return %c0_i32, %c0_i32_0 : i32, i32
  }
  func.func @transform_1(%arg0: i32) -> (i32, i32) {
    %c0_i32 = arith.constant 0 : i32
    %c0_i32_0 = arith.constant 0 : i32
    %c0_i32_1 = arith.constant 0 : i32
    return %c0_i32, %c0_i32_0 : i32, i32
  }
  func.func @transform_2(%arg0: i32) -> (i32, i32) {
    %c0_i32 = arith.constant 0 : i32
    %c0_i32_0 = arith.constant 0 : i32
    %c0_i32_1 = arith.constant 0 : i32
    return %c0_i32, %c0_i32_0 : i32, i32
  }
  func.func @transform_3(%arg0: i32) -> (i32, i32) {
    %c0_i32 = arith.constant 0 : i32
    %c0_i32_0 = arith.constant 0 : i32
    %c0_i32_1 = arith.constant 0 : i32
    return %c0_i32, %c0_i32_0 : i32, i32
  }
  func.func @transform_4(%arg0: i32) -> (i32, i32) {
    %c0_i32 = arith.constant 0 : i32
    %c0_i32_0 = arith.constant 0 : i32
    %c0_i32_1 = arith.constant 0 : i32
    return %c0_i32, %c0_i32_0 : i32, i32
  }
  func.func @transform_5(%arg0: i32) -> (i32, i32) {
    %c0_i32 = arith.constant 0 : i32
    %c0_i32_0 = arith.constant 0 : i32
    %c0_i32_1 = arith.constant 0 : i32
    return %c0_i32, %c0_i32_0 : i32, i32
  }
  func.func @transform_6(%arg0: i32) -> (i32, i32) {
    %c0_i32 = arith.constant 0 : i32
    %c0_i32_0 = arith.constant 0 : i32
    %c0_i32_1 = arith.constant 0 : i32
    return %c0_i32, %c0_i32_0 : i32, i32
  }
  func.func @transform_7(%arg0: i32) -> (i32, i32) {
    %c0_i32 = arith.constant 0 : i32
    %c0_i32_0 = arith.constant 0 : i32
    %c0_i32_1 = arith.constant 0 : i32
    return %c0_i32, %c0_i32_0 : i32, i32
  }
  func.func @transform_8(%arg0: i32) -> (i32, i32) {
    %c0_i32 = arith.constant 0 : i32
    %c0_i32_0 = arith.constant 0 : i32
    %c0_i32_1 = arith.constant 0 : i32
    return %c0_i32, %c0_i32_0 : i32, i32
  }
}

</mosaic_0001>

<llo_original>
// kernel: vgg_rank_head_forward.3
$region0: #{vgg_rank_head_forward.3}
  #allocation0 [shape = 'u32[]', space=smem, size = 0x4, offset = 0x4, fixed_abs, tag = 'smem constant byte address 0x4 - core index']
  #allocation1 [shape = 'u32[144,128]{1,0:T(1,128)}', space=vmem, size = 0x12000, scoped, tag = 'internal scratch']
  %s0 = inlined_call_operand.vmem [shape: f32[2,18,54], index: 0, kind: input, shape index: {}]
  %s1 = inlined_call_operand.vmem [shape: f32[3,54,256], index: 1, kind: input, shape index: {}]
  %s2 = inlined_call_operand.vmem [shape: f32[1,256], index: 2, kind: input, shape index: {}]
  %s3 = inlined_call_operand.vmem [shape: f32[8,16], index: 3, kind: input, shape index: {}]
  %s4 = inlined_call_operand.vmem [shape: f32[8,16], index: 4, kind: input, shape index: {}]
  %s5 = inlined_call_operand.vmem [shape: f32[256,128], index: 5, kind: input, shape index: {}]
  %s6 = inlined_call_operand.hbm [shape: f32[256,128], index: 6, kind: input, shape index: {}]
  %s7 = inlined_call_operand.vmem [shape: f32[2,8,128], index: 7, kind: output, shape index: {}]
  %s8 = sld [smem:[#allocation0]]
  $region65: #{vgg_rank_head_forward.3} parent=0
    _
  %s10 = ssub.s32 1, %s8
  %s11 = scalar_select 0, %s10, %s8
  $region1: #{vgg_rank_head_forward.3} parent=0
    #allocation2 [shape = 'u8[131072]{0}', space=vmem, size = 0x20000, scoped, tag = 'input window, operand 6, single buffered']
    #allocation3 [shape = 's32[2]{0}', space=sflag, size = 0x8, scoped, tag = 'scoped memory for vgg_rank_head_forward.3']
    %12 = vsyncpa [#allocation3], 0
    loop: start=0, step=1, limit=4
    $region2: #{vgg_rank_head_forward.3} parent=1 // loop_pre_header
      _
    $region3: #{vgg_rank_head_forward.3} parent=1 // loop_header
      %s14 = sphi 0, %s18
      %p15 = scmp.ge.s32.totalorder %s14, 4
      %s24 = sphi 0, %s26
      %s27 = sphi 0, %s24
      %s28 = sphi 0, %s27
      %s44 = sphi 0, %s28
      %s48 = sphi 0, %s48
      %s50 = sphi 0, %s48
      %s51 = sphi 0, %s50
      %s65 = sphi 0, %s51
      %s69 = sphi 0, %s69
      %s71 = sphi 0, %s69
      %s72 = sphi 0, %s71
      %s86 = sphi 0, %s72
      %s90 = sphi 0, %s90
      %s92 = sphi 0, %s90
      %s93 = sphi 0, %s92
      %s107 = sphi 0, %s93
      %s111 = sphi 0, %s111
      %s113 = sphi 0, %s111
      %s114 = sphi 0, %s113
      %s128 = sphi 0, %s114
      %s132 = sphi 0, %s132
      %s134 = sphi 0, %s132
      %s135 = sphi 0, %s134
      %s149 = sphi 0, %s135
      %s153 = sphi 0, %s153
      %s155 = sphi 0, %s153
      %s156 = sphi 0, %s155
      %s170 = sphi 0, %s156
      %s176 = sphi 0, %s178
      %s179 = sphi 0, %s176
      %s180 = sphi 0, %s179
      %s196 = sphi 0, %s180
    $region4: #{vgg_rank_head_forward.3} parent=1 // loop_header_branch
      %17 = sbr.rel (%p15) target = $region8
    $region5: #{vgg_rank_head_forward.3} parent=1 // loop_body
      %s19 = ssub.s32 %s14, 1
      %s20 = ssub.s32 %s14, 2
      %s21 = sadd.s32 %s14, 1
      %s22 = ssub.s32 %s14, %s21
      %p23 = scmp.eq.s32.totalorder %s22, 0
      %s25 = sadd.s32 %s24, 1
      %s26 = scalar_select %p23, %s24, %s25
      %p29 = pneg %p23
      %p30 = scmp.eq.s32.totalorder %s14, 1
      %p31 = por %p29, %p30
      %p32 = scmp.ne.s32.totalorder %s24, %s27
      %p33 = scmp.eq.s32.totalorder %s14, 0
      %p34 = por %p32, %p33
      %p35 = scmp.ne.s32.totalorder %s24, %s27
      %p36 = scmp.eq.s32.totalorder %s19, 1
      %p37 = por %p35, %p36
      %p38 = scmp.ne.s32.totalorder %s27, %s28
      %p39 = scmp.eq.s32.totalorder %s19, 0
      %p40 = por %p38, %p39
      %p41 = scmp.ne.s32.totalorder %s27, %s28
      %p42 = scmp.eq.s32.totalorder %s20, 1
      %p43 = por %p41, %p42
      %p45 = scmp.ne.s32.totalorder %s28, %s44
      %p46 = scmp.eq.s32.totalorder %s20, 0
      %p47 = por %p45, %p46
      %s49 = sadd.s32 %s48, 1
      %p52 = scmp.eq.s32.totalorder %s14, 1
      %p53 = scmp.ne.s32.totalorder %s48, %s50
      %p54 = scmp.eq.s32.totalorder %s14, 0
      %p55 = por %p53, %p54
      %p56 = scmp.ne.s32.totalorder %s48, %s50
      %p57 = scmp.eq.s32.totalorder %s19, 1
      %p58 = por %p56, %p57
      %p59 = scmp.ne.s32.totalorder %s50, %s51
      %p60 = scmp.eq.s32.totalorder %s19, 0
      %p61 = por %p59, %p60
      %p62 = scmp.ne.s32.totalorder %s50, %s51
      %p63 = scmp.eq.s32.totalorder %s20, 1
      %p64 = por %p62, %p63
      %p66 = scmp.ne.s32.totalorder %s51, %s65
      %p67 = scmp.eq.s32.totalorder %s20, 0
      %p68 = por %p66, %p67
      %s70 = sadd.s32 %s69, 1
      %p73 = scmp.eq.s32.totalorder %s14, 1
      %p74 = scmp.ne.s32.totalorder %s69, %s71
      %p75 = scmp.eq.s32.totalorder %s14, 0
      %p76 = por %p74, %p75
      %p77 = scmp.ne.s32.totalorder %s69, %s71
      %p78 = scmp.eq.s32.totalorder %s19, 1
      %p79 = por %p77, %p78
      %p80 = scmp.ne.s32.totalorder %s71, %s72
      %p81 = scmp.eq.s32.totalorder %s19, 0
      %p82 = por %p80, %p81
      %p83 = scmp.ne.s32.totalorder %s71, %s72
      %p84 = scmp.eq.s32.totalorder %s20, 1
      %p85 = por %p83, %p84
      %p87 = scmp.ne.s32.totalorder %s72, %s86
      %p88 = scmp.eq.s32.totalorder %s20, 0
      %p89 = por %p87, %p88
      %s91 = sadd.s32 %s90, 1
      %p94 = scmp.eq.s32.totalorder %s14, 1
      %p95 = scmp.ne.s32.totalorder %s90, %s92
      %p96 = scmp.eq.s32.totalorder %s14, 0
      %p97 = por %p95, %p96
      %p98 = scmp.ne.s32.totalorder %s90, %s92
      %p99 = scmp.eq.s32.totalorder %s19, 1
      %p100 = por %p98, %p99
      %p101 = scmp.ne.s32.totalorder %s92, %s93
      %p102 = scmp.eq.s32.totalorder %s19, 0
      %p103 = por %p101, %p102
      %p104 = scmp.ne.s32.totalorder %s92, %s93
      %p105 = scmp.eq.s32.totalorder %s20, 1
      %p106 = por %p104, %p105
      %p108 = scmp.ne.s32.totalorder %s93, %s107
      %p109 = scmp.eq.s32.totalorder %s20, 0
      %p110 = por %p108, %p109
      %s112 = sadd.s32 %s111, 1
      %p115 = scmp.eq.s32.totalorder %s14, 1
      %p116 = scmp.ne.s32.totalorder %s111, %s113
      %p117 = scmp.eq.s32.totalorder %s14, 0
      %p118 = por %p116, %p117
      %p119 = scmp.ne.s32.totalorder %s111, %s113
      %p120 = scmp.eq.s32.totalorder %s19, 1
      %p121 = por %p119, %p120
      %p122 = scmp.ne.s32.totalorder %s113, %s114
      %p123 = scmp.eq.s32.totalorder %s19, 0
      %p124 = por %p122, %p123
      %p125 = scmp.ne.s32.totalorder %s113, %s114
      %p126 = scmp.eq.s32.totalorder %s20, 1
      %p127 = por %p125, %p126
      %p129 = scmp.ne.s32.totalorder %s114, %s128
      %p130 = scmp.eq.s32.totalorder %s20, 0
      %p131 = por %p129, %p130
      %s133 = sadd.s32 %s132, 1
      %p136 = scmp.eq.s32.totalorder %s14, 1
      %p137 = scmp.ne.s32.totalorder %s132, %s134
      %p138 = scmp.eq.s32.totalorder %s14, 0
      %p139 = por %p137, %p138
      %p140 = scmp.ne.s32.totalorder %s132, %s134
      %p141 = scmp.eq.s32.totalorder %s19, 1
      %p142 = por %p140, %p141
      %p143 = scmp.ne.s32.totalorder %s134, %s135
      %p144 = scmp.eq.s32.totalorder %s19, 0
      %p145 = por %p143, %p144
      %p146 = scmp.ne.s32.totalorder %s134, %s135
      %p147 = scmp.eq.s32.totalorder %s20, 1
      %p148 = por %p146, %p147
      %p150 = scmp.ne.s32.totalorder %s135, %s149
      %p151 = scmp.eq.s32.totalorder %s20, 0
      %p152 = por %p150, %p151
      %s154 = sadd.s32 %s153, 1
      %p157 = scmp.eq.s32.totalorder %s14, 1
      %p158 = scmp.ne.s32.totalorder %s153, %s155
      %p159 = scmp.eq.s32.totalorder %s14, 0
      %p160 = por %p158, %p159
      %p161 = scmp.ne.s32.totalorder %s153, %s155
      %p162 = scmp.eq.s32.totalorder %s19, 1
      %p163 = por %p161, %p162
      %p164 = scmp.ne.s32.totalorder %s155, %s156
      %p165 = scmp.eq.s32.totalorder %s19, 0
      %p166 = por %p164, %p165
      %p167 = scmp.ne.s32.totalorder %s155, %s156
      %p168 = scmp.eq.s32.totalorder %s20, 1
      %p169 = por %p167, %p168
      %p171 = scmp.ne.s32.totalorder %s156, %s170
      %p172 = scmp.eq.s32.totalorder %s20, 0
      %p173 = por %p171, %p172
      %s174 = ssub.s32 %s14, %s21
      %p175 = scmp.eq.s32.totalorder %s174, 0
      %s177 = sadd.s32 %s176, 1
      %s178 = scalar_select %p175, %s176, %s177
      %p181 = pneg %p175
      %p182 = scmp.eq.s32.totalorder %s14, 1
      %p183 = por %p181, %p182
      %p184 = scmp.ne.s32.totalorder %s176, %s179
      %p185 = scmp.eq.s32.totalorder %s14, 0
      %p186 = por %p184, %p185
      %p187 = scmp.ne.s32.totalorder %s176, %s179
      %p188 = scmp.eq.s32.totalorder %s19, 1
      %p189 = por %p187, %p188
      %p190 = scmp.ne.s32.totalorder %s179, %s180
      %p191 = scmp.eq.s32.totalorder %s19, 0
      %p192 = por %p190, %p191
      %p193 = scmp.ne.s32.totalorder %s179, %s180
      %p194 = scmp.eq.s32.totalorder %s20, 1
      %p195 = por %p193, %p194
      %p197 = scmp.ne.s32.totalorder %s180, %s196
      %p198 = scmp.eq.s32.totalorder %s20, 0
      %p199 = por %p197, %p198
      %p200 = scmp.le.s32.totalorder 1, %s14
      %p201 = scmp.lt.s32.totalorder %s14, 3
      %p202 = pnand %p200, %p201
      %p203 = pneg %p202
      // Predicated region
      $region9: #{vgg_rank_head_forward.3} parent=5 // pred_check
        _
      $region10: #{vgg_rank_head_forward.3} parent=5 // pred_check_branch
        %205 = sbr.rel (%p202) target = $region12
      $region11: #{vgg_rank_head_forward.3} parent=5 // pred_region
        %s206 = ssub.s32 %s14, 1
        // Predicated region
        $region13: #{vgg_rank_head_forward.3} parent=11 // pred_check
          %p207 = pneg %p61
        $region14: #{vgg_rank_head_forward.3} parent=11 // pred_check_branch
          %209 = sbr.rel (%p207) target = $region16
        $region15: #{vgg_rank_head_forward.3} parent=11 // pred_region
          _
        $region16: #{vgg_rank_head_forward.3} parent=11 // pred_fallthru
          _
        // Predicated region
        $region17: #{vgg_rank_head_forward.3} parent=11 // pred_check
          %p210 = pneg %p82
        $region18: #{vgg_rank_head_forward.3} parent=11 // pred_check_branch
          %212 = sbr.rel (%p210) target = $region20
        $region19: #{vgg_rank_head_forward.3} parent=11 // pred_region
          _
        $region20: #{vgg_rank_head_forward.3} parent=11 // pred_fallthru
          _
        // Predicated region
        $region21: #{vgg_rank_head_forward.3} parent=11 // pred_check
          %p213 = pneg %p103
        $region22: #{vgg_rank_head_forward.3} parent=11 // pred_check_branch
          %215 = sbr.rel (%p213) target = $region24
        $region23: #{vgg_rank_head_forward.3} parent=11 // pred_region
          _
        $region24: #{vgg_rank_head_forward.3} parent=11 // pred_fallthru
          _
        // Predicated region
        $region25: #{vgg_rank_head_forward.3} parent=11 // pred_check
          %p216 = pneg %p124
        $region26: #{vgg_rank_head_forward.3} parent=11 // pred_check_branch
          %218 = sbr.rel (%p216) target = $region28
        $region27: #{vgg_rank_head_forward.3} parent=11 // pred_region
          _
        $region28: #{vgg_rank_head_forward.3} parent=11 // pred_fallthru
          _
        // Predicated region
        $region29: #{vgg_rank_head_forward.3} parent=11 // pred_check
          %p219 = pneg %p145
        $region30: #{vgg_rank_head_forward.3} parent=11 // pred_check_branch
          %221 = sbr.rel (%p219) target = $region32
        $region31: #{vgg_rank_head_forward.3} parent=11 // pred_region
          _
        $region32: #{vgg_rank_head_forward.3} parent=11 // pred_fallthru
          _
        // Predicated region
        $region33: #{vgg_rank_head_forward.3} parent=11 // pred_check
          %p222 = pneg %p166
        $region34: #{vgg_rank_head_forward.3} parent=11 // pred_check_branch
          %224 = sbr.rel (%p222) target = $region36
        $region35: #{vgg_rank_head_forward.3} parent=11 // pred_region
          %s226 = ssub.s32 4096, 4096
          %227 = vsyncadd [#allocation3], %s226
          %s228 = sshll.u32 [#allocation2], 4
          %s229 = int_to_ptr.vmem [resolvable:$true] %s228
          %234 = dma.hbm_to_vmem [thread:$0]  %s6, 4096, %s229, [#allocation3], 128, 128, 8
        $region36: #{vgg_rank_head_forward.3} parent=11 // pred_fallthru
          _
      $region12: #{vgg_rank_head_forward.3} parent=5 // pred_fallthru
        _
      %p235 = scmp.lt.s32.totalorder %s14, 2
      // Predicated region
      $region37: #{vgg_rank_head_forward.3} parent=5 // pred_check
        %p236 = pneg %p235
      $region38: #{vgg_rank_head_forward.3} parent=5 // pred_check_branch
        %238 = sbr.rel (%p236) target = $region40
      $region39: #{vgg_rank_head_forward.3} parent=5 // pred_region
        // Predicated region
        $region41: #{vgg_rank_head_forward.3} parent=39 // pred_check
          %p239 = pneg %p34
        $region42: #{vgg_rank_head_forward.3} parent=39 // pred_check_branch
          %241 = sbr.rel (%p239) target = $region44
        $region43: #{vgg_rank_head_forward.3} parent=39 // pred_region
          %p242 = scmp.lt.s32.totalorder %s14, 1
          %s243 = scalar_select %p242, %s14, 1
          %s244 = smul.addr %s243, 3
          %s245 = smul.addr %s244, 8
          %s246 = scalar_lea.vmem %s0, %s245
        $region44: #{vgg_rank_head_forward.3} parent=39 // pred_fallthru
          _
      $region40: #{vgg_rank_head_forward.3} parent=5 // pred_fallthru
        _
      %p247 = scmp.le.s32.totalorder 1, %s14
      %p248 = scmp.lt.s32.totalorder %s14, 3
      %p249 = pnand %p247, %p248
      %p250 = pneg %p249
      // Predicated region
      $region45: #{vgg_rank_head_forward.3} parent=5 // pred_check
        _
      $region46: #{vgg_rank_head_forward.3} parent=5 // pred_check_branch
        %252 = sbr.rel (%p249) target = $region48
      $region47: #{vgg_rank_head_forward.3} parent=5 // pred_region
        %s253 = ssub.s32 %s14, 1
        // Predicated region
        $region49: #{vgg_rank_head_forward.3} parent=47 // pred_check
          %p254 = pneg %p166
        $region50: #{vgg_rank_head_forward.3} parent=47 // pred_check_branch
          %256 = sbr.rel (%p254) target = $region52
        $region51: #{vgg_rank_head_forward.3} parent=47 // pred_region
          %257 = dma.done [#allocation3], 4096
        $region52: #{vgg_rank_head_forward.3} parent=47 // pred_fallthru
          _
        %p258 = scmp.lt.s32.totalorder %s19, 1
        %s259 = scalar_select %p258, %s19, 1
        %s260 = smul.addr %s259, 3
        %s261 = smul.addr %s260, 8
        %s262 = scalar_lea.vmem %s0, %s261
        %p263 = pneg %p40
        %p264 = pneg %p37
        %p265 = pneg %p61
        %p266 = pneg %p58
        %p267 = pneg %p82
        %p268 = pneg %p79
        %p269 = pneg %p103
        %p270 = pneg %p100
        %p271 = pneg %p124
        %p272 = pneg %p121
        %p273 = pneg %p145
        %p274 = pneg %p142
        %p275 = pneg %p166
        %p276 = pneg %p163
        %p277 = pneg %p192
        %p278 = pneg %p189
        %p279 = scmp.lt.s32.totalorder %s19, 1
        %s280 = scalar_select %p279, %s19, 1
        %s281 = smul.addr %s280, 8
        %s282 = scalar_lea.vmem %s7, %s281
        %p283 = scmp.lt.s32.totalorder %s19, 1
        %s284 = scalar_select %p283, %s19, 1
        %s285 = smul.addr %s284, 3
        %s286 = smul.addr %s285, 8
        %s287 = scalar_lea.vmem %s0, %s286
        %p288 = scmp.lt.s32.totalorder %s19, 1
        %s289 = scalar_select %p288, %s19, 1
        %s290 = smul.addr %s289, 8
        %s291 = scalar_lea.vmem %s7, %s290
        %v292 = vld [vmem:[%s287] sm:$0xff]
        %v293 = vld [vmem:[%s287 + $0x8] sm:$0xff]
        %v294 = vld [vmem:[%s1] sm:$0xff]
        %v295 = vld [vmem:[%s1 + $0x8] sm:$0xff]
        %v296 = vld [vmem:[%s1 + $0x10] sm:$0xff]
        %v297 = vld [vmem:[%s1 + $0x18] sm:$0xff]
        %v298 = vld [vmem:[%s1 + $0x20] sm:$0xff]
        %v299 = vld [vmem:[%s1 + $0x28] sm:$0xff]
        %v300 = vld [vmem:[%s1 + $0x30] sm:$0xff]
        %v301 = vld [vmem:[%s1 + $0x38] sm:$0xff]
        %v302 = vld [vmem:[%s1 + $0x40] sm:$0xff]
        %v303 = vld [vmem:[%s1 + $0x48] sm:$0xff]
        %v304 = vld [vmem:[%s1 + $0x50] sm:$0xff]
        %v305 = vld [vmem:[%s1 + $0x58] sm:$0xff]
        %v306 = vld [vmem:[%s1 + $0x60] sm:$0x3f]
        %v307 = vld [vmem:[%s1 + $0x68] sm:$0x3f]
        %v308 = vld [vmem:[%s287 + $0x1] sm:$0xff]
        %v309 = vld [vmem:[%s287 + $0x9] sm:$0xff]
        %s310 = scalar_lea.vmem %s1, 112
        %v311 = vld [vmem:[%s310] sm:$0xff]
        %v312 = vld [vmem:[%s310 + $0x8] sm:$0xff]
        %v313 = vld [vmem:[%s310 + $0x10] sm:$0xff]
        %v314 = vld [vmem:[%s310 + $0x18] sm:$0xff]
        %v315 = vld [vmem:[%s310 + $0x20] sm:$0xff]
        %v316 = vld [vmem:[%s310 + $0x28] sm:$0xff]
        %v317 = vld [vmem:[%s310 + $0x30] sm:$0xff]
        %v318 = vld [vmem:[%s310 + $0x38] sm:$0xff]
        %v319 = vld [vmem:[%s310 + $0x40] sm:$0xff]
        %v320 = vld [vmem:[%s310 + $0x48] sm:$0xff]
        %v321 = vld [vmem:[%s310 + $0x50] sm:$0xff]
        %v322 = vld [vmem:[%s310 + $0x58] sm:$0xff]
        %v323 = vld [vmem:[%s310 + $0x60] sm:$0x3f]
        %v324 = vld [vmem:[%s310 + $0x68] sm:$0x3f]
        %vm325 = vcmask 441344
        %v327 = vsel %vm325, %v308, 0
        %v330 = vsel %vm325, %v309, 0
        %vm332 = vcmask 1045504
        %v334 = vsel %vm332, %v323, 0
        %v337 = vsel %vm332, %v324, 0
        %339 = vmatprep.subr.mxu0 %v312
        %340 = vmatpush1.msra.mxu0 %v311
        %341 = vmatprep.subr.mxu0 %v314
        %342 = vmatpush1.msra.mxu0 %v313
        %343 = vmatprep.subr.mxu0 %v316
        %344 = vmatpush1.msra.mxu0 %v315
        %345 = vmatprep.subr.mxu0 %v318
        %346 = vmatpush1.msra.mxu0 %v317
        %347 = vmatprep.subr.mxu0 %v320
        %348 = vmatpush1.msra.mxu0 %v319
        %349 = vmatprep.subr.mxu0 %v322
        %350 = vmatpush1.msra.mxu0 %v321
        %351 = vmatprep.subr.mxu0 %v337
        %352 = vmatpush1.msra.mxu0 %v334
        %353 = vmatprep.subr.mxu0 0.0
        %354 = vmatpush1.msra.mxu0 0.0
        %355 = vmatprep.subr.mxu0 0.0
        %356 = vmatpush1.msra.mxu0 0.0
        %357 = vmatprep.subr.mxu0 0.0
        %358 = vmatpush1.msra.mxu0 0.0
        %359 = vmatprep.subr.mxu0 0.0
        %360 = vmatpush1.msra.mxu0 0.0
        %361 = vmatprep.subr.mxu0 0.0
        %362 = vmatpush1.msra.mxu0 0.0
        %363 = vmatprep.subr.mxu0 0.0
        %364 = vmatpush1.msra.mxu0 0.0
        %365 = vmatprep.subr.mxu0 0.0
        %366 = vmatpush1.msra.mxu0 0.0
        %367 = vmatprep.subr.mxu0 0.0
        %368 = vmatpush1.msra.mxu0 0.0
        %369 = vmatprep.subr.mxu0 0.0
        %370 = vmatpush1.msra.mxu0 0.0
        %371 = vmatprep.subr.mxu0 0.0
        %372 = vmatpush1.msra.mxu0 0.0
        %373 = vmatprep.subr.mxu0 0.0
        %374 = vmatpush1.msra.mxu0 0.0
        %375 = vmatprep.subr.mxu0 0.0
        %376 = vmatpush1.msra.mxu0 0.0
        %377 = vmatprep.subr.mxu0 0.0
        %378 = vmatpush1.msra.mxu0 0.0
        %379 = vmatprep.subr.mxu0 0.0
        %380 = vmatpush1.msra.mxu0 0.0
        %381 = vmatprep.subr.mxu0 0.0
        %382 = vmatpush1.msra.mxu0 0.0
        %383 = vmatprep.subr.mxu0 0.0
        %384 = vmatpush1.msra.mxu0 0.0
        %385 = vmatprep.subr.mxu0 0.0
        %386 = vmatpush1.msra.mxu0 0.0
        %387 = vmatprep.subr.mxu0 0.0
        %388 = vmatpush1.msra.mxu0 0.0
        %389 = vmatprep.subr.mxu0 0.0
        %390 = vmatpush1.msra.mxu0 0.0
        %391 = vmatprep.subr.mxu0 0.0
        %392 = vmatpush1.msra.mxu0 0.0
        %393 = vmatprep.subr.mxu0 0.0
        %394 = vmatpush1.msra.mxu0 0.0
        %395 = vmatprep.subr.mxu0 0.0
        %396 = vmatpush1.msra.mxu0 0.0
        %397 = vmatprep.subr.mxu0 0.0
        %398 = vmatpush1.msra.mxu0 0.0
        %399 = vmatprep.subr.mxu0 0.0
        %400 = vmatpush1.msra.mxu0 0.0
        %401 = vmatprep.subr.mxu0 0.0
        %402 = vmatpush1.msra.mxu0 0.0
        %403 = vmatprep.mubr.f32.mxu0 0.0
        %404 = vmatmul.mubr.f32.gmra.mrb[0].mxu0 %v327
        %v405 = vpop.f32.mrb[0].mxu0
        %v406 = vadd.f32 0.0, %v405
        %v407 = vpop.f32.mrb[0].mxu0
        %v408 = vadd.f32 0.0, %v407
        %409 = vmatprep.mubr.f32.mxu0 0.0
        %410 = vmatmul.mubr.f32.gmra.mrb[0].mxu0 %v330
        %v411 = vpop.f32.mrb[0].mxu0
        %v412 = vadd.f32 0.0, %v411
        %v413 = vpop.f32.mrb[0].mxu0
        %v414 = vadd.f32 0.0, %v413
        %415 = vdwg.mxu0
        %v417 = vsel %vm325, %v292, 0
        %v420 = vsel %vm325, %v293, 0
        %v423 = vsel %vm332, %v306, 0
        %v426 = vsel %vm332, %v307, 0
        %428 = vmatprep.subr.mxu0 %v295
        %429 = vmatpush1.msra.mxu0 %v294
        %430 = vmatprep.subr.mxu0 %v297
        %431 = vmatpush1.msra.mxu0 %v296
        %432 = vmatprep.subr.mxu0 %v299
        %433 = vmatpush1.msra.mxu0 %v298
        %434 = vmatprep.subr.mxu0 %v301
        %435 = vmatpush1.msra.mxu0 %v300
        %436 = vmatprep.subr.mxu0 %v303
        %437 = vmatpush1.msra.mxu0 %v302
        %438 = vmatprep.subr.mxu0 %v305
        %439 = vmatpush1.msra.mxu0 %v304
        %440 = vmatprep.subr.mxu0 %v426
        %441 = vmatpush1.msra.mxu0 %v423
        %442 = vmatprep.subr.mxu0 0.0
        %443 = vmatpush1.msra.mxu0 0.0
        %444 = vmatprep.subr.mxu0 0.0
        %445 = vmatpush1.msra.mxu0 0.0
        %446 = vmatprep.subr.mxu0 0.0
        %447 = vmatpush1.msra.mxu0 0.0
        %448 = vmatprep.subr.mxu0 0.0
        %449 = vmatpush1.msra.mxu0 0.0
        %450 = vmatprep.subr.mxu0 0.0
        %451 = vmatpush1.msra.mxu0 0.0
        %452 = vmatprep.subr.mxu0 0.0
        %453 = vmatpush1.msra.mxu0 0.0
        %454 = vmatprep.subr.mxu0 0.0
        %455 = vmatpush1.msra.mxu0 0.0
        %456 = vmatprep.subr.mxu0 0.0
        %457 = vmatpush1.msra.mxu0 0.0
        %458 = vmatprep.subr.mxu0 0.0
        %459 = vmatpush1.msra.mxu0 0.0
        %460 = vmatprep.subr.mxu0 0.0
        %461 = vmatpush1.msra.mxu0 0.0
        %462 = vmatprep.subr.mxu0 0.0
        %463 = vmatpush1.msra.mxu0 0.0
        %464 = vmatprep.subr.mxu0 0.0
        %465 = vmatpush1.msra.mxu0 0.0
        %466 = vmatprep.subr.mxu0 0.0
        %467 = vmatpush1.msra.mxu0 0.0
        %468 = vmatprep.subr.mxu0 0.0
        %469 = vmatpush1.msra.mxu0 0.0
        %470 = vmatprep.subr.mxu0 0.0
        %471 = vmatpush1.msra.mxu0 0.0
        %472 = vmatprep.subr.mxu0 0.0
        %473 = vmatpush1.msra.mxu0 0.0
        %474 = vmatprep.subr.mxu0 0.0
        %475 = vmatpush1.msra.mxu0 0.0
        %476 = vmatprep.subr.mxu0 0.0
        %477 = vmatpush1.msra.mxu0 0.0
        %478 = vmatprep.subr.mxu0 0.0
        %479 = vmatpush1.msra.mxu0 0.0
        %480 = vmatprep.subr.mxu0 0.0
        %481 = vmatpush1.msra.mxu0 0.0
        %482 = vmatprep.subr.mxu0 0.0
        %483 = vmatpush1.msra.mxu0 0.0
        %484 = vmatprep.subr.mxu0 0.0
        %485 = vmatpush1.msra.mxu0 0.0
        %486 = vmatprep.subr.mxu0 0.0
        %487 = vmatpush1.msra.mxu0 0.0
        %488 = vmatprep.subr.mxu0 0.0
        %489 = vmatpush1.msra.mxu0 0.0
        %490 = vmatprep.subr.mxu0 0.0
        %491 = vmatpush1.msra.mxu0 0.0
        %492 = vmatprep.mubr.f32.mxu0 0.0
        %493 = vmatmul.mubr.f32.gmra.mrb[0].mxu0 %v417
        %v494 = vpop.f32.mrb[0].mxu0
        %v495 = vadd.f32 %v406, %v494
        %v496 = vpop.f32.mrb[0].mxu0
        %v497 = vadd.f32 %v408, %v496
        %498 = vmatprep.mubr.f32.mxu0 0.0
        %499 = vmatmul.mubr.f32.gmra.mrb[0].mxu0 %v420
        %v500 = vpop.f32.mrb[0].mxu0
        %v501 = vadd.f32 %v412, %v500
        %v502 = vpop.f32.mrb[0].mxu0
        %v503 = vadd.f32 %v414, %v502
        %504 = vdwg.mxu0
        %v505 = vld [vmem:[%s287 + $0x2] sm:$0xff]
        %v506 = vld [vmem:[%s287 + $0xa] sm:$0xff]
        %s507 = scalar_lea.vmem %s1, 224
        %v508 = vld [vmem:[%s507] sm:$0xff]
        %v509 = vld [vmem:[%s507 + $0x8] sm:$0xff]
        %v510 = vld [vmem:[%s507 + $0x10] sm:$0xff]
        %v511 = vld [vmem:[%s507 + $0x18] sm:$0xff]
        %v512 = vld [vmem:[%s507 + $0x20] sm:$0xff]
        %v513 = vld [vmem:[%s507 + $0x28] sm:$0xff]
        %v514 = vld [vmem:[%s507 + $0x30] sm:$0xff]
        %v515 = vld [vmem:[%s507 + $0x38] sm:$0xff]
        %v516 = vld [vmem:[%s507 + $0x40] sm:$0xff]
        %v517 = vld [vmem:[%s507 + $0x48] sm:$0xff]
        %v518 = vld [vmem:[%s507 + $0x50] sm:$0xff]
        %v519 = vld [vmem:[%s507 + $0x58] sm:$0xff]
        %v520 = vld [vmem:[%s507 + $0x60] sm:$0x3f]
        %v521 = vld [vmem:[%s507 + $0x68] sm:$0x3f]
        %v523 = vsel %vm325, %v505, 0
        %v526 = vsel %vm325, %v506, 0
        %v529 = vsel %vm332, %v520, 0
        %v532 = vsel %vm332, %v521, 0
        %534 = vmatprep.subr.mxu0 %v509
        %535 = vmatpush1.msra.mxu0 %v508
        %536 = vmatprep.subr.mxu0 %v511
        %537 = vmatpush1.msra.mxu0 %v510
        %538 = vmatprep.subr.mxu0 %v513
        %539 = vmatpush1.msra.mxu0 %v512
        %540 = vmatprep.subr.mxu0 %v515
        %541 = vmatpush1.msra.mxu0 %v514
        %542 = vmatprep.subr.mxu0 %v517
        %543 = vmatpush1.msra.mxu0 %v516
        %544 = vmatprep.subr.mxu0 %v519
        %545 = vmatpush1.msra.mxu0 %v518
        %546 = vmatprep.subr.mxu0 %v532
        %547 = vmatpush1.msra.mxu0 %v529
        %548 = vmatprep.subr.mxu0 0.0
        %549 = vmatpush1.msra.mxu0 0.0
        %550 = vmatprep.subr.mxu0 0.0
        %551 = vmatpush1.msra.mxu0 0.0
        %552 = vmatprep.subr.mxu0 0.0
        %553 = vmatpush1.msra.mxu0 0.0
        %554 = vmatprep.subr.mxu0 0.0
        %555 = vmatpush1.msra.mxu0 0.0
        %556 = vmatprep.subr.mxu0 0.0
        %557 = vmatpush1.msra.mxu0 0.0
        %558 = vmatprep.subr.mxu0 0.0
        %559 = vmatpush1.msra.mxu0 0.0
        %560 = vmatprep.subr.mxu0 0.0
        %561 = vmatpush1.msra.mxu0 0.0
        %562 = vmatprep.subr.mxu0 0.0
        %563 = vmatpush1.msra.mxu0 0.0
        %564 = vmatprep.subr.mxu0 0.0
        %565 = vmatpush1.msra.mxu0 0.0
        %566 = vmatprep.subr.mxu0 0.0
        %567 = vmatpush1.msra.mxu0 0.0
        %568 = vmatprep.subr.mxu0 0.0
        %569 = vmatpush1.msra.mxu0 0.0
        %570 = vmatprep.subr.mxu0 0.0
        %571 = vmatpush1.msra.mxu0 0.0
        %572 = vmatprep.subr.mxu0 0.0
        %573 = vmatpush1.msra.mxu0 0.0
        %574 = vmatprep.subr.mxu0 0.0
        %575 = vmatpush1.msra.mxu0 0.0
        %576 = vmatprep.subr.mxu0 0.0
        %577 = vmatpush1.msra.mxu0 0.0
        %578 = vmatprep.subr.mxu0 0.0
        %579 = vmatpush1.msra.mxu0 0.0
        %580 = vmatprep.subr.mxu0 0.0
        %581 = vmatpush1.msra.mxu0 0.0
        %582 = vmatprep.subr.mxu0 0.0
        %583 = vmatpush1.msra.mxu0 0.0
        %584 = vmatprep.subr.mxu0 0.0
        %585 = vmatpush1.msra.mxu0 0.0
        %586 = vmatprep.subr.mxu0 0.0
        %587 = vmatpush1.msra.mxu0 0.0
        %588 = vmatprep.subr.mxu0 0.0
        %589 = vmatpush1.msra.mxu0 0.0
        %590 = vmatprep.subr.mxu0 0.0
        %591 = vmatpush1.msra.mxu0 0.0
        %592 = vmatprep.subr.mxu0 0.0
        %593 = vmatpush1.msra.mxu0 0.0
        %594 = vmatprep.subr.mxu0 0.0
        %595 = vmatpush1.msra.mxu0 0.0
        %596 = vmatprep.subr.mxu0 0.0
        %597 = vmatpush1.msra.mxu0 0.0
        %598 = vmatprep.mubr.f32.mxu0 0.0
        %599 = vmatmul.mubr.f32.gmra.mrb[0].mxu0 %v523
        %v600 = vpop.f32.mrb[0].mxu0
        %v601 = vadd.f32 0.0, %v600
        %v602 = vpop.f32.mrb[0].mxu0
        %v603 = vadd.f32 0.0, %v602
        %604 = vmatprep.mubr.f32.mxu0 0.0
        %605 = vmatmul.mubr.f32.gmra.mrb[0].mxu0 %v526
        %v606 = vpop.f32.mrb[0].mxu0
        %v607 = vadd.f32 0.0, %v606
        %v608 = vpop.f32.mrb[0].mxu0
        %v609 = vadd.f32 0.0, %v608
        %610 = vdwg.mxu0
        %v611 = vadd.f32 %v495, %v601
        %v612 = vadd.f32 %v497, %v603
        %v613 = vadd.f32 %v501, %v607
        %v614 = vadd.f32 %v503, %v609
        %v615 = vld [vmem:[%s2] sm:$0x3]
        %v617 = vlaneseq
        %v618 = vshrl.u32 %v617, 7
        %v619 = vsub.s32 0, %v618
        %v620 = vrot.slane %v615, %v619
        %v621 = vlaneseq
        %v622 = vshrl.u32 %v621, 7
        %v623 = vsub.s32 1, %v622
        %v624 = vrot.slane %v615, %v623
        %v627 = vadd.f32 %v611, %v620
        %v628 = vadd.f32 %v612, %v624
        %v629 = vadd.f32 %v613, %v620
        %v630 = vadd.f32 %v614, %v624
        %v631 = vmax.f32 %v627, 0.0
        %v632 = vmax.f32 %v628, 0.0
        %v633 = vmax.f32 %v629, 0.0
        %v634 = vmax.f32 %v630, 0.0
        %v635 = vld [vmem:[%s3] sm:$0xff]
        %vm636 = vcmask 130048
        %v638 = vsel %vm636, %v635, 0
        %640 = vmatprep.subr.mxu0 %v632
        %641 = vmatpush1.msra.mxu0 %v631
        %642 = vmatprep.subr.mxu0 %v634
        %643 = vmatpush1.msra.mxu0 %v633
        %644 = vmatprep.subr.mxu0 0.0
        %645 = vmatpush1.msra.mxu0 0.0
        %646 = vmatprep.subr.mxu0 0.0
        %647 = vmatpush1.msra.mxu0 0.0
        %648 = vmatprep.subr.mxu0 0.0
        %649 = vmatpush1.msra.mxu0 0.0
        %650 = vmatprep.subr.mxu0 0.0
        %651 = vmatpush1.msra.mxu0 0.0
        %652 = vmatprep.subr.mxu0 0.0
        %653 = vmatpush1.msra.mxu0 0.0
        %654 = vmatprep.subr.mxu0 0.0
        %655 = vmatpush1.msra.mxu0 0.0
        %656 = vmatprep.subr.mxu0 0.0
        %657 = vmatpush1.msra.mxu0 0.0
        %658 = vmatprep.subr.mxu0 0.0
        %659 = vmatpush1.msra.mxu0 0.0
        %660 = vmatprep.subr.mxu0 0.0
        %661 = vmatpush1.msra.mxu0 0.0
        %662 = vmatprep.subr.mxu0 0.0
        %663 = vmatpush1.msra.mxu0 0.0
        %664 = vmatprep.subr.mxu0 0.0
        %665 = vmatpush1.msra.mxu0 0.0
        %666 = vmatprep.subr.mxu0 0.0
        %667 = vmatpush1.msra.mxu0 0.0
        %668 = vmatprep.subr.mxu0 0.0
        %669 = vmatpush1.msra.mxu0 0.0
        %670 = vmatprep.subr.mxu0 0.0
        %671 = vmatpush1.msra.mxu0 0.0
        %672 = vmatprep.subr.mxu0 0.0
        %673 = vmatpush1.msra.mxu0 0.0
        %674 = vmatprep.subr.mxu0 0.0
        %675 = vmatpush1.msra.mxu0 0.0
        %676 = vmatprep.subr.mxu0 0.0
        %677 = vmatpush1.msra.mxu0 0.0
        %678 = vmatprep.subr.mxu0 0.0
        %679 = vmatpush1.msra.mxu0 0.0
        %680 = vmatprep.subr.mxu0 0.0
        %681 = vmatpush1.msra.mxu0 0.0
        %682 = vmatprep.subr.mxu0 0.0
        %683 = vmatpush1.msra.mxu0 0.0
        %684 = vmatprep.subr.mxu0 0.0
        %685 = vmatpush1.msra.mxu0 0.0
        %686 = vmatprep.subr.mxu0 0.0
        %687 = vmatpush1.msra.mxu0 0.0
        %688 = vmatprep.subr.mxu0 0.0
        %689 = vmatpush1.msra.mxu0 0.0
        %690 = vmatprep.subr.mxu0 0.0
        %691 = vmatpush1.msra.mxu0 0.0
        %692 = vmatprep.subr.mxu0 0.0
        %693 = vmatpush1.msra.mxu0 0.0
        %694 = vmatprep.subr.mxu0 0.0
        %695 = vmatpush1.msra.mxu0 0.0
        %696 = vmatprep.subr.mxu0 0.0
        %697 = vmatpush1.msra.mxu0 0.0
        %698 = vmatprep.subr.mxu0 0.0
        %699 = vmatpush1.msra.mxu0 0.0
        %700 = vmatprep.subr.mxu0 0.0
        %701 = vmatpush1.msra.mxu0 0.0
        %702 = vmatprep.subr.mxu0 0.0
        %703 = vmatpush1.msra.mxu0 0.0
        %704 = vmatprep.mubr.f32.mxu0 0.0
        %705 = vmatmul.mubr.f32.gmra.mrb[0].mxu0 %v638
        %v706 = vpop.f32.mrb[0].mxu0
        %v707 = vadd.f32 0.0, %v706
        %v708 = vpop.f32.mrb[0].mxu0
        %v709 = vadd.f32 0.0, %v708
        %710 = vdwg.mxu0
        %v711 = vld [vmem:[%s4] sm:$0xff]
        %v713 = vsel %vm636, %v711, 0
        %715 = vmatprep.subr.mxu0 %v632
        %716 = vmatpush1.msra.mxu0 %v631
        %717 = vmatprep.subr.mxu0 %v634
        %718 = vmatpush1.msra.mxu0 %v633
        %719 = vmatprep.subr.mxu0 0.0
        %720 = vmatpush1.msra.mxu0 0.0
        %721 = vmatprep.subr.mxu0 0.0
        %722 = vmatpush1.msra.mxu0 0.0
        %723 = vmatprep.subr.mxu0 0.0
        %724 = vmatpush1.msra.mxu0 0.0
        %725 = vmatprep.subr.mxu0 0.0
        %726 = vmatpush1.msra.mxu0 0.0
        %727 = vmatprep.subr.mxu0 0.0
        %728 = vmatpush1.msra.mxu0 0.0
        %729 = vmatprep.subr.mxu0 0.0
        %730 = vmatpush1.msra.mxu0 0.0
        %731 = vmatprep.subr.mxu0 0.0
        %732 = vmatpush1.msra.mxu0 0.0
        %733 = vmatprep.subr.mxu0 0.0
        %734 = vmatpush1.msra.mxu0 0.0
        %735 = vmatprep.subr.mxu0 0.0
        %736 = vmatpush1.msra.mxu0 0.0
        %737 = vmatprep.subr.mxu0 0.0
        %738 = vmatpush1.msra.mxu0 0.0
        %739 = vmatprep.subr.mxu0 0.0
        %740 = vmatpush1.msra.mxu0 0.0
        %741 = vmatprep.subr.mxu0 0.0
        %742 = vmatpush1.msra.mxu0 0.0
        %743 = vmatprep.subr.mxu0 0.0
        %744 = vmatpush1.msra.mxu0 0.0
        %745 = vmatprep.subr.mxu0 0.0
        %746 = vmatpush1.msra.mxu0 0.0
        %747 = vmatprep.subr.mxu0 0.0
        %748 = vmatpush1.msra.mxu0 0.0
        %749 = vmatprep.subr.mxu0 0.0
        %750 = vmatpush1.msra.mxu0 0.0
        %751 = vmatprep.subr.mxu0 0.0
        %752 = vmatpush1.msra.mxu0 0.0
        %753 = vmatprep.subr.mxu0 0.0
        %754 = vmatpush1.msra.mxu0 0.0
        %755 = vmatprep.subr.mxu0 0.0
        %756 = vmatpush1.msra.mxu0 0.0
        %757 = vmatprep.subr.mxu0 0.0
        %758 = vmatpush1.msra.mxu0 0.0
        %759 = vmatprep.subr.mxu0 0.0
        %760 = vmatpush1.msra.mxu0 0.0
        %761 = vmatprep.subr.mxu0 0.0
        %762 = vmatpush1.msra.mxu0 0.0
        %763 = vmatprep.subr.mxu0 0.0
        %764 = vmatpush1.msra.mxu0 0.0
        %765 = vmatprep.subr.mxu0 0.0
        %766 = vmatpush1.msra.mxu0 0.0
        %767 = vmatprep.subr.mxu0 0.0
        %768 = vmatpush1.msra.mxu0 0.0
        %769 = vmatprep.subr.mxu0 0.0
        %770 = vmatpush1.msra.mxu0 0.0
        %771 = vmatprep.subr.mxu0 0.0
        %772 = vmatpush1.msra.mxu0 0.0
        %773 = vmatprep.subr.mxu0 0.0
        %774 = vmatpush1.msra.mxu0 0.0
        %775 = vmatprep.subr.mxu0 0.0
        %776 = vmatpush1.msra.mxu0 0.0
        %777 = vmatprep.subr.mxu0 0.0
        %778 = vmatpush1.msra.mxu0 0.0
        %779 = vmatprep.mubr.f32.mxu0 0.0
        %780 = vmatmul.mubr.f32.gmra.mrb[0].mxu0 %v713
        %v781 = vpop.f32.mrb[0].mxu0
        %v782 = vadd.f32 0.0, %v781
        %v783 = vpop.f32.mrb[0].mxu0
        %v784 = vadd.f32 0.0, %v783
        %785 = vdwg.mxu0
        %v786 = vmax.f32 %v707, %v782
        %v787 = vmax.f32 %v709, %v784
        %v788 = vld [vmem:[%s5] sm:$0xff]
        %v789 = vld [vmem:[%s5 + $0x8] sm:$0xff]
        %v790 = vld [vmem:[%s5 + $0x10] sm:$0xff]
        %v791 = vld [vmem:[%s5 + $0x18] sm:$0xff]
        %v792 = vld [vmem:[%s5 + $0x20] sm:$0xff]
        %v793 = vld [vmem:[%s5 + $0x28] sm:$0xff]
        %v794 = vld [vmem:[%s5 + $0x30] sm:$0xff]
        %v795 = vld [vmem:[%s5 + $0x38] sm:$0xff]
        %v796 = vld [vmem:[%s5 + $0x40] sm:$0xff]
        %v797 = vld [vmem:[%s5 + $0x48] sm:$0xff]
        %v798 = vld [vmem:[%s5 + $0x50] sm:$0xff]
        %v799 = vld [vmem:[%s5 + $0x58] sm:$0xff]
        %v800 = vld [vmem:[%s5 + $0x60] sm:$0xff]
        %v801 = vld [vmem:[%s5 + $0x68] sm:$0xff]
        %v802 = vld [vmem:[%s5 + $0x70] sm:$0xff]
        %v803 = vld [vmem:[%s5 + $0x78] sm:$0xff]
        %v804 = vld [vmem:[%s5 + $0x80] sm:$0xff]
        %v805 = vld [vmem:[%s5 + $0x88] sm:$0xff]
        %v806 = vld [vmem:[%s5 + $0x90] sm:$0xff]
        %v807 = vld [vmem:[%s5 + $0x98] sm:$0xff]
        %v808 = vld [vmem:[%s5 + $0xa0] sm:$0xff]
        %v809 = vld [vmem:[%s5 + $0xa8] sm:$0xff]
        %v810 = vld [vmem:[%s5 + $0xb0] sm:$0xff]
        %v811 = vld [vmem:[%s5 + $0xb8] sm:$0xff]
        %v812 = vld [vmem:[%s5 + $0xc0] sm:$0xff]
        %v813 = vld [vmem:[%s5 + $0xc8] sm:$0xff]
        %v814 = vld [vmem:[%s5 + $0xd0] sm:$0xff]
        %v815 = vld [vmem:[%s5 + $0xd8] sm:$0xff]
        %v816 = vld [vmem:[%s5 + $0xe0] sm:$0xff]
        %v817 = vld [vmem:[%s5 + $0xe8] sm:$0xff]
        %v818 = vld [vmem:[%s5 + $0xf0] sm:$0xff]
        %v819 = vld [vmem:[%s5 + $0xf8] sm:$0xff]
        %820 = vmatprep.subr.mxu0 0.0
        %821 = vmatpush1.msra.mxu0 %v788
        %822 = vmatprep.subr.mxu0 0.0
        %823 = vmatpush1.msra.mxu0 %v789
        %824 = vmatprep.subr.mxu0 0.0
        %825 = vmatpush1.msra.mxu0 %v790
        %826 = vmatprep.subr.mxu0 0.0
        %827 = vmatpush1.msra.mxu0 %v791
        %828 = vmatprep.subr.mxu0 0.0
        %829 = vmatpush1.msra.mxu0 %v792
        %830 = vmatprep.subr.mxu0 0.0
        %831 = vmatpush1.msra.mxu0 %v793
        %832 = vmatprep.subr.mxu0 0.0
        %833 = vmatpush1.msra.mxu0 %v794
        %834 = vmatprep.subr.mxu0 0.0
        %835 = vmatpush1.msra.mxu0 %v795
        %836 = vmatprep.subr.mxu0 0.0
        %837 = vmatpush1.msra.mxu0 %v796
        %838 = vmatprep.subr.mxu0 0.0
        %839 = vmatpush1.msra.mxu0 %v797
        %840 = vmatprep.subr.mxu0 0.0
        %841 = vmatpush1.msra.mxu0 %v798
        %842 = vmatprep.subr.mxu0 0.0
        %843 = vmatpush1.msra.mxu0 %v799
        %844 = vmatprep.subr.mxu0 0.0
        %845 = vmatpush1.msra.mxu0 %v800
        %846 = vmatprep.subr.mxu0 0.0
        %847 = vmatpush1.msra.mxu0 %v801
        %848 = vmatprep.subr.mxu0 0.0
        %849 = vmatpush1.msra.mxu0 %v802
        %850 = vmatprep.subr.mxu0 0.0
        %851 = vmatpush1.msra.mxu0 %v803
        %852 = vmatprep.subr.mxu0 0.0
        %853 = vmatpush1.msra.mxu0 %v804
        %854 = vmatprep.subr.mxu0 0.0
        %855 = vmatpush1.msra.mxu0 %v805
        %856 = vmatprep.subr.mxu0 0.0
        %857 = vmatpush1.msra.mxu0 %v806
        %858 = vmatprep.subr.mxu0 0.0
        %859 = vmatpush1.msra.mxu0 %v807
        %860 = vmatprep.subr.mxu0 0.0
        %861 = vmatpush1.msra.mxu0 %v808
        %862 = vmatprep.subr.mxu0 0.0
        %863 = vmatpush1.msra.mxu0 %v809
        %864 = vmatprep.subr.mxu0 0.0
        %865 = vmatpush1.msra.mxu0 %v810
        %866 = vmatprep.subr.mxu0 0.0
        %867 = vmatpush1.msra.mxu0 %v811
        %868 = vmatprep.subr.mxu0 0.0
        %869 = vmatpush1.msra.mxu0 %v812
        %870 = vmatprep.subr.mxu0 0.0
        %871 = vmatpush1.msra.mxu0 %v813
        %872 = vmatprep.subr.mxu0 0.0
        %873 = vmatpush1.msra.mxu0 %v814
        %874 = vmatprep.subr.mxu0 0.0
        %875 = vmatpush1.msra.mxu0 %v815
        %876 = vmatprep.subr.mxu0 0.0
        %877 = vmatpush1.msra.mxu0 %v816
        %878 = vmatprep.subr.mxu0 0.0
        %879 = vmatpush1.msra.mxu0 %v817
        %880 = vmatprep.subr.mxu0 0.0
        %881 = vmatpush1.msra.mxu0 %v818
        %882 = vmatprep.subr.mxu0 0.0
        %883 = vmatpush1.msra.mxu0 %v819
        %884 = vmatprep.mubr.f32.mxu0 %v787
        %885 = vmatmul.mubr.f32.gmra.mrb[0].mxu0 %v786
        %v886 = vpop.f32.mrb[0].mxu0
        %v887 = vadd.f32 0.0, %v886
        %v888 = vpop.f32.mrb[0].mxu0
        %889 = vdwg.mxu0
        %v890 = vld [vmem:[#allocation2] sm:$0xff]
        %v891 = vld [vmem:[#allocation2 + $0x8] sm:$0xff]
        %v892 = vld [vmem:[#allocation2 + $0x10] sm:$0xff]
        %v893 = vld [vmem:[#allocation2 + $0x18] sm:$0xff]
        %v894 = vld [vmem:[#allocation2 + $0x20] sm:$0xff]
        %v895 = vld [vmem:[#allocation2 + $0x28] sm:$0xff]
        %v896 = vld [vmem:[#allocation2 + $0x30] sm:$0xff]
        %v897 = vld [vmem:[#allocation2 + $0x38] sm:$0xff]
        %v898 = vld [vmem:[#allocation2 + $0x40] sm:$0xff]
        %v899 = vld [vmem:[#allocation2 + $0x48] sm:$0xff]
        %v900 = vld [vmem:[#allocation2 + $0x50] sm:$0xff]
        %v901 = vld [vmem:[#allocation2 + $0x58] sm:$0xff]
        %v902 = vld [vmem:[#allocation2 + $0x60] sm:$0xff]
        %v903 = vld [vmem:[#allocation2 + $0x68] sm:$0xff]
        %v904 = vld [vmem:[#allocation2 + $0x70] sm:$0xff]
        %v905 = vld [vmem:[#allocation2 + $0x78] sm:$0xff]
        %v906 = vld [vmem:[#allocation2 + $0x80] sm:$0xff]
        %v907 = vld [vmem:[#allocation2 + $0x88] sm:$0xff]
        %v908 = vld [vmem:[#allocation2 + $0x90] sm:$0xff]
        %v909 = vld [vmem:[#allocation2 + $0x98] sm:$0xff]
        %v910 = vld [vmem:[#allocation2 + $0xa0] sm:$0xff]
        %v911 = vld [vmem:[#allocation2 + $0xa8] sm:$0xff]
        %v912 = vld [vmem:[#allocation2 + $0xb0] sm:$0xff]
        %v913 = vld [vmem:[#allocation2 + $0xb8] sm:$0xff]
        %v914 = vld [vmem:[#allocation2 + $0xc0] sm:$0xff]
        %v915 = vld [vmem:[#allocation2 + $0xc8] sm:$0xff]
        %v916 = vld [vmem:[#allocation2 + $0xd0] sm:$0xff]
        %v917 = vld [vmem:[#allocation2 + $0xd8] sm:$0xff]
        %v918 = vld [vmem:[#allocation2 + $0xe0] sm:$0xff]
        %v919 = vld [vmem:[#allocation2 + $0xe8] sm:$0xff]
        %v920 = vld [vmem:[#allocation2 + $0xf0] sm:$0xff]
        %v921 = vld [vmem:[#allocation2 + $0xf8] sm:$0xff]
        %922 = vmatprep.subr.mxu0 0.0
        %923 = vmatpush1.msra.mxu0 %v890
        %924 = vmatprep.subr.mxu0 0.0
        %925 = vmatpush1.msra.mxu0 %v891
        %926 = vmatprep.subr.mxu0 0.0
        %927 = vmatpush1.msra.mxu0 %v892
        %928 = vmatprep.subr.mxu0 0.0
        %929 = vmatpush1.msra.mxu0 %v893
        %930 = vmatprep.subr.mxu0 0.0
        %931 = vmatpush1.msra.mxu0 %v894
        %932 = vmatprep.subr.mxu0 0.0
        %933 = vmatpush1.msra.mxu0 %v895
        %934 = vmatprep.subr.mxu0 0.0
        %935 = vmatpush1.msra.mxu0 %v896
        %936 = vmatprep.subr.mxu0 0.0
        %937 = vmatpush1.msra.mxu0 %v897
        %938 = vmatprep.subr.mxu0 0.0
        %939 = vmatpush1.msra.mxu0 %v898
        %940 = vmatprep.subr.mxu0 0.0
        %941 = vmatpush1.msra.mxu0 %v899
        %942 = vmatprep.subr.mxu0 0.0
        %943 = vmatpush1.msra.mxu0 %v900
        %944 = vmatprep.subr.mxu0 0.0
        %945 = vmatpush1.msra.mxu0 %v901
        %946 = vmatprep.subr.mxu0 0.0
        %947 = vmatpush1.msra.mxu0 %v902
        %948 = vmatprep.subr.mxu0 0.0
        %949 = vmatpush1.msra.mxu0 %v903
        %950 = vmatprep.subr.mxu0 0.0
        %951 = vmatpush1.msra.mxu0 %v904
        %952 = vmatprep.subr.mxu0 0.0
        %953 = vmatpush1.msra.mxu0 %v905
        %954 = vmatprep.subr.mxu0 0.0
        %955 = vmatpush1.msra.mxu0 %v906
        %956 = vmatprep.subr.mxu0 0.0
        %957 = vmatpush1.msra.mxu0 %v907
        %958 = vmatprep.subr.mxu0 0.0
        %959 = vmatpush1.msra.mxu0 %v908
        %960 = vmatprep.subr.mxu0 0.0
        %961 = vmatpush1.msra.mxu0 %v909
        %962 = vmatprep.subr.mxu0 0.0
        %963 = vmatpush1.msra.mxu0 %v910
        %964 = vmatprep.subr.mxu0 0.0
        %965 = vmatpush1.msra.mxu0 %v911
        %966 = vmatprep.subr.mxu0 0.0
        %967 = vmatpush1.msra.mxu0 %v912
        %968 = vmatprep.subr.mxu0 0.0
        %969 = vmatpush1.msra.mxu0 %v913
        %970 = vmatprep.subr.mxu0 0.0
        %971 = vmatpush1.msra.mxu0 %v914
        %972 = vmatprep.subr.mxu0 0.0
        %973 = vmatpush1.msra.mxu0 %v915
        %974 = vmatprep.subr.mxu0 0.0
        %975 = vmatpush1.msra.mxu0 %v916
        %976 = vmatprep.subr.mxu0 0.0
        %977 = vmatpush1.msra.mxu0 %v917
        %978 = vmatprep.subr.mxu0 0.0
        %979 = vmatpush1.msra.mxu0 %v918
        %980 = vmatprep.subr.mxu0 0.0
        %981 = vmatpush1.msra.mxu0 %v919
        %982 = vmatprep.subr.mxu0 0.0
        %983 = vmatpush1.msra.mxu0 %v920
        %984 = vmatprep.subr.mxu0 0.0
        %985 = vmatpush1.msra.mxu0 %v921
        %986 = vmatprep.mubr.f32.mxu0 %v787
        %987 = vmatmul.mubr.f32.gmra.mrb[0].mxu0 %v786
        %v988 = vpop.f32.mrb[0].mxu0
        %v989 = vadd.f32 0.0, %v988
        %v990 = vpop.f32.mrb[0].mxu0
        %991 = vdwg.mxu0
        %v992 = vmax.f32 %v887, %v989
        %993 = vst [vmem:[%s291] sm:$0xff] %v992
        %p994 = scmp.lt.s32.totalorder %s19, 1
        %s995 = scalar_select %p994, %s19, 1
        %s996 = smul.addr %s995, 8
        %s997 = scalar_lea.vmem %s7, %s996
        // Predicated region
        $region53: #{vgg_rank_head_forward.3} parent=47 // pred_check
          %p998 = pneg %p189
        $region54: #{vgg_rank_head_forward.3} parent=47 // pred_check_branch
          %1000 = sbr.rel (%p998) target = $region56
        $region55: #{vgg_rank_head_forward.3} parent=47 // pred_region
          _
        $region56: #{vgg_rank_head_forward.3} parent=47 // pred_fallthru
          _
      $region48: #{vgg_rank_head_forward.3} parent=5 // pred_fallthru
        _
      %p1001 = scmp.le.s32.totalorder 2, %s14
      // Predicated region
      $region57: #{vgg_rank_head_forward.3} parent=5 // pred_check
        %p1002 = pneg %p1001
      $region58: #{vgg_rank_head_forward.3} parent=5 // pred_check_branch
        %1004 = sbr.rel (%p1002) target = $region60
      $region59: #{vgg_rank_head_forward.3} parent=5 // pred_region
        %s1005 = ssub.s32 %s14, 2
        // Predicated region
        $region61: #{vgg_rank_head_forward.3} parent=59 // pred_check
          %p1006 = pneg %p195
        $region62: #{vgg_rank_head_forward.3} parent=59 // pred_check_branch
          %1008 = sbr.rel (%p1006) target = $region64
        $region63: #{vgg_rank_head_forward.3} parent=59 // pred_region
          %p1009 = scmp.lt.s32.totalorder %s20, 1
          %s1010 = scalar_select %p1009, %s20, 1
          %s1011 = smul.addr %s1010, 8
          %s1012 = scalar_lea.vmem %s7, %s1011
        $region64: #{vgg_rank_head_forward.3} parent=59 // pred_fallthru
          _
      $region60: #{vgg_rank_head_forward.3} parent=5 // pred_fallthru
        _
    $region6: #{vgg_rank_head_forward.3} parent=1 // loop_footer
      %s18 = sadd.s32 1, %s14
    $region7: #{vgg_rank_head_forward.3} parent=1 // loop_footer_branch
      %13 = sbr.rel target = $region3
    $region8: #{vgg_rank_head_forward.3} parent=1 // loop_exit
      _
    %1013 = vsyncpa [#allocation3], 1
    %s1014 = scalar_lea.sflag [#allocation3], 1
    %1015 = vsyncpa %s1014, 1

// kernel: vgg_rank_head_forward.4
$region0: #{vgg_rank_head_forward.4}
  #allocation0 [shape = 'u32[]', space=smem, size = 0x4, offset = 0x4, fixed_abs, tag = 'smem constant byte address 0x4 - core index']
  #allocation1 [shape = 'u32[144,128]{1,0:T(1,128)}', space=vmem, size = 0x12000, scoped, tag = 'internal scratch']
  %s0 = inlined_call_operand.vmem [shape: f32[2,10,160], index: 0, kind: input, shape index: {}]
  %s1 = inlined_call_operand.vmem [shape: f32[3,160,256], index: 1, kind: input, shape index: {}]
  %s2 = inlined_call_operand.vmem [shape: f32[1,256], index: 2, kind: input, shape index: {}]
  %s3 = inlined_call_operand.vmem [shape: f32[4,8], index: 3, kind: input, shape index: {}]
  %s4 = inlined_call_operand.vmem [shape: f32[4,8], index: 4, kind: input, shape index: {}]
  %s5 = inlined_call_operand.vmem [shape: f32[256,128], index: 5, kind: input, shape index: {}]
  %s6 = inlined_call_operand.vmem [shape: f32[256,128], index: 6, kind: input, shape index: {}]
  %s7 = inlined_call_operand.vmem [shape: f32[2,4,128], index: 7, kind: output, shape index: {}]
  %s8 = sld [smem:[#allocation0]]
  $region61: #{vgg_rank_head_forward.4} parent=0
    _
  %s10 = ssub.s32 1, %s8
  %s11 = scalar_select 0, %s10, %s8
  loop: start=0, step=1, limit=4
  $region2: #{vgg_rank_head_forward.4} parent=0 // loop_pre_header
    _
  $region3: #{vgg_rank_head_forward.4} parent=0 // loop_header
    %s13 = sphi 0, %s17
    %p14 = scmp.ge.s32.totalorder %s13, 4
    %s23 = sphi 0, %s25
    %s26 = sphi 0, %s23
    %s27 = sphi 0, %s26
    %s43 = sphi 0, %s27
    %s47 = sphi 0, %s47
    %s49 = sphi 0, %s47
    %s50 = sphi 0, %s49
    %s64 = sphi 0, %s50
    %s68 = sphi 0, %s68
    %s70 = sphi 0, %s68
    %s71 = sphi 0, %s70
    %s85 = sphi 0, %s71
    %s89 = sphi 0, %s89
    %s91 = sphi 0, %s89
    %s92 = sphi 0, %s91
    %s106 = sphi 0, %s92
    %s110 = sphi 0, %s110
    %s112 = sphi 0, %s110
    %s113 = sphi 0, %s112
    %s127 = sphi 0, %s113
    %s131 = sphi 0, %s131
    %s133 = sphi 0, %s131
    %s134 = sphi 0, %s133
    %s148 = sphi 0, %s134
    %s152 = sphi 0, %s152
    %s154 = sphi 0, %s152
    %s155 = sphi 0, %s154
    %s169 = sphi 0, %s155
    %s175 = sphi 0, %s177
    %s178 = sphi 0, %s175
    %s179 = sphi 0, %s178
    %s195 = sphi 0, %s179
  $region4: #{vgg_rank_head_forward.4} parent=0 // loop_header_branch
    %16 = sbr.rel (%p14) target = $region8
  $region5: #{vgg_rank_head_forward.4} parent=0 // loop_body
    %s18 = ssub.s32 %s13, 1
    %s19 = ssub.s32 %s13, 2
    %s20 = sadd.s32 %s13, 1
    %s21 = ssub.s32 %s13, %s20
    %p22 = scmp.eq.s32.totalorder %s21, 0
    %s24 = sadd.s32 %s23, 1
    %s25 = scalar_select %p22, %s23, %s24
    %p28 = pneg %p22
    %p29 = scmp.eq.s32.totalorder %s13, 1
    %p30 = por %p28, %p29
    %p31 = scmp.ne.s32.totalorder %s23, %s26
    %p32 = scmp.eq.s32.totalorder %s13, 0
    %p33 = por %p31, %p32
    %p34 = scmp.ne.s32.totalorder %s23, %s26
    %p35 = scmp.eq.s32.totalorder %s18, 1
    %p36 = por %p34, %p35
    %p37 = scmp.ne.s32.totalorder %s26, %s27
    %p38 = scmp.eq.s32.totalorder %s18, 0
    %p39 = por %p37, %p38
    %p40 = scmp.ne.s32.totalorder %s26, %s27
    %p41 = scmp.eq.s32.totalorder %s19, 1
    %p42 = por %p40, %p41
    %p44 = scmp.ne.s32.totalorder %s27, %s43
    %p45 = scmp.eq.s32.totalorder %s19, 0
    %p46 = por %p44, %p45
    %s48 = sadd.s32 %s47, 1
    %p51 = scmp.eq.s32.totalorder %s13, 1
    %p52 = scmp.ne.s32.totalorder %s47, %s49
    %p53 = scmp.eq.s32.totalorder %s13, 0
    %p54 = por %p52, %p53
    %p55 = scmp.ne.s32.totalorder %s47, %s49
    %p56 = scmp.eq.s32.totalorder %s18, 1
    %p57 = por %p55, %p56
    %p58 = scmp.ne.s32.totalorder %s49, %s50
    %p59 = scmp.eq.s32.totalorder %s18, 0
    %p60 = por %p58, %p59
    %p61 = scmp.ne.s32.totalorder %s49, %s50
    %p62 = scmp.eq.s32.totalorder %s19, 1
    %p63 = por %p61, %p62
    %p65 = scmp.ne.s32.totalorder %s50, %s64
    %p66 = scmp.eq.s32.totalorder %s19, 0
    %p67 = por %p65, %p66
    %s69 = sadd.s32 %s68, 1
    %p72 = scmp.eq.s32.totalorder %s13, 1
    %p73 = scmp.ne.s32.totalorder %s68, %s70
    %p74 = scmp.eq.s32.totalorder %s13, 0
    %p75 = por %p73, %p74
    %p76 = scmp.ne.s32.totalorder %s68, %s70
    %p77 = scmp.eq.s32.totalorder %s18, 1
    %p78 = por %p76, %p77
    %p79 = scmp.ne.s32.totalorder %s70, %s71
    %p80 = scmp.eq.s32.totalorder %s18, 0
    %p81 = por %p79, %p80
    %p82 = scmp.ne.s32.totalorder %s70, %s71
    %p83 = scmp.eq.s32.totalorder %s19, 1
    %p84 = por %p82, %p83
    %p86 = scmp.ne.s32.totalorder %s71, %s85
    %p87 = scmp.eq.s32.totalorder %s19, 0
    %p88 = por %p86, %p87
    %s90 = sadd.s32 %s89, 1
    %p93 = scmp.eq.s32.totalorder %s13, 1
    %p94 = scmp.ne.s32.totalorder %s89, %s91
    %p95 = scmp.eq.s32.totalorder %s13, 0
    %p96 = por %p94, %p95
    %p97 = scmp.ne.s32.totalorder %s89, %s91
    %p98 = scmp.eq.s32.totalorder %s18, 1
    %p99 = por %p97, %p98
    %p100 = scmp.ne.s32.totalorder %s91, %s92
    %p101 = scmp.eq.s32.totalorder %s18, 0
    %p102 = por %p100, %p101
    %p103 = scmp.ne.s32.totalorder %s91, %s92
    %p104 = scmp.eq.s32.totalorder %s19, 1
    %p105 = por %p103, %p104
    %p107 = scmp.ne.s32.totalorder %s92, %s106
    %p108 = scmp.eq.s32.totalorder %s19, 0
    %p109 = por %p107, %p108
    %s111 = sadd.s32 %s110, 1
    %p114 = scmp.eq.s32.totalorder %s13, 1
    %p115 = scmp.ne.s32.totalorder %s110, %s112
    %p116 = scmp.eq.s32.totalorder %s13, 0
    %p117 = por %p115, %p116
    %p118 = scmp.ne.s32.totalorder %s110, %s112
    %p119 = scmp.eq.s32.totalorder %s18, 1
    %p120 = por %p118, %p119
    %p121 = scmp.ne.s32.totalorder %s112, %s113
    %p122 = scmp.eq.s32.totalorder %s18, 0
    %p123 = por %p121, %p122
    %p124 = scmp.ne.s32.totalorder %s112, %s113
    %p125 = scmp.eq.s32.totalorder %s19, 1
    %p126 = por %p124, %p125
    %p128 = scmp.ne.s32.totalorder %s113, %s127
    %p129 = scmp.eq.s32.totalorder %s19, 0
    %p130 = por %p128, %p129
    %s132 = sadd.s32 %s131, 1
    %p135 = scmp.eq.s32.totalorder %s13, 1
    %p136 = scmp.ne.s32.totalorder %s131, %s133
    %p137 = scmp.eq.s32.totalorder %s13, 0
    %p138 = por %p136, %p137
    %p139 = scmp.ne.s32.totalorder %s131, %s133
    %p140 = scmp.eq.s32.totalorder %s18, 1
    %p141 = por %p139, %p140
    %p142 = scmp.ne.s32.totalorder %s133, %s134
    %p143 = scmp.eq.s32.totalorder %s18, 0
    %p144 = por %p142, %p143
    %p145 = scmp.ne.s32.totalorder %s133, %s134
    %p146 = scmp.eq.s32.totalorder %s19, 1
    %p147 = por %p145, %p146
    %p149 = scmp.ne.s32.totalorder %s134, %s148
    %p150 = scmp.eq.s32.totalorder %s19, 0
    %p151 = por %p149, %p150
    %s153 = sadd.s32 %s152, 1
    %p156 = scmp.eq.s32.totalorder %s13, 1
    %p157 = scmp.ne.s32.totalorder %s152, %s154
    %p158 = scmp.eq.s32.totalorder %s13, 0
    %p159 = por %p157, %p158
    %p160 = scmp.ne.s32.totalorder %s152, %s154
    %p161 = scmp.eq.s32.totalorder %s18, 1
    %p162 = por %p160, %p161
    %p163 = scmp.ne.s32.totalorder %s154, %s155
    %p164 = scmp.eq.s32.totalorder %s18, 0
    %p165 = por %p163, %p164
    %p166 = scmp.ne.s32.totalorder %s154, %s155
    %p167 = scmp.eq.s32.totalorder %s19, 1
    %p168 = por %p166, %p167
    %p170 = scmp.ne.s32.totalorder %s155, %s169
    %p171 = scmp.eq.s32.totalorder %s19, 0
    %p172 = por %p170, %p171
    %s173 = ssub.s32 %s13, %s20
    %p174 = scmp.eq.s32.totalorder %s173, 0
    %s176 = sadd.s32 %s175, 1
    %s177 = scalar_select %p174, %s175, %s176
    %p180 = pneg %p174
    %p181 = scmp.eq.s32.totalorder %s13, 1
    %p182 = por %p180, %p181
    %p183 = scmp.ne.s32.totalorder %s175, %s178
    %p184 = scmp.eq.s32.totalorder %s13, 0
    %p185 = por %p183, %p184
    %p186 = scmp.ne.s32.totalorder %s175, %s178
    %p187 = scmp.eq.s32.totalorder %s18, 1
    %p188 = por %p186, %p187
    %p189 = scmp.ne.s32.totalorder %s178, %s179
    %p190 = scmp.eq.s32.totalorder %s18, 0
    %p191 = por %p189, %p190
    %p192 = scmp.ne.s32.totalorder %s178, %s179
    %p193 = scmp.eq.s32.totalorder %s19, 1
    %p194 = por %p192, %p193
    %p196 = scmp.ne.s32.totalorder %s179, %s195
    %p197 = scmp.eq.s32.totalorder %s19, 0
    %p198 = por %p196, %p197
    %p199 = scmp.le.s32.totalorder 1, %s13
    %p200 = scmp.lt.s32.totalorder %s13, 3
    %p201 = pnand %p199, %p200
    %p202 = pneg %p201
    // Predicated region
    $region9: #{vgg_rank_head_forward.4} parent=5 // pred_check
      _
    $region10: #{vgg_rank_head_forward.4} parent=5 // pred_check_branch
      %204 = sbr.rel (%p201) target = $region12
    $region11: #{vgg_rank_head_forward.4} parent=5 // pred_region
      %s205 = ssub.s32 %s13, 1
      // Predicated region
      $region13: #{vgg_rank_head_forward.4} parent=11 // pred_check
        %p206 = pneg %p60
      $region14: #{vgg_rank_head_forward.4} parent=11 // pred_check_branch
        %208 = sbr.rel (%p206) target = $region16
      $region15: #{vgg_rank_head_forward.4} parent=11 // pred_region
        _
      $region16: #{vgg_rank_head_forward.4} parent=11 // pred_fallthru
        _
      // Predicated region
      $region17: #{vgg_rank_head_forward.4} parent=11 // pred_check
        %p209 = pneg %p81
      $region18: #{vgg_rank_head_forward.4} parent=11 // pred_check_branch
        %211 = sbr.rel (%p209) target = $region20
      $region19: #{vgg_rank_head_forward.4} parent=11 // pred_region
        _
      $region20: #{vgg_rank_head_forward.4} parent=11 // pred_fallthru
        _
      // Predicated region
      $region21: #{vgg_rank_head_forward.4} parent=11 // pred_check
        %p212 = pneg %p102
      $region22: #{vgg_rank_head_forward.4} parent=11 // pred_check_branch
        %214 = sbr.rel (%p212) target = $region24
      $region23: #{vgg_rank_head_forward.4} parent=11 // pred_region
        _
      $region24: #{vgg_rank_head_forward.4} parent=11 // pred_fallthru
        _
      // Predicated region
      $region25: #{vgg_rank_head_forward.4} parent=11 // pred_check
        %p215 = pneg %p123
      $region26: #{vgg_rank_head_forward.4} parent=11 // pred_check_branch
        %217 = sbr.rel (%p215) target = $region28
      $region27: #{vgg_rank_head_forward.4} parent=11 // pred_region
        _
      $region28: #{vgg_rank_head_forward.4} parent=11 // pred_fallthru
        _
      // Predicated region
      $region29: #{vgg_rank_head_forward.4} parent=11 // pred_check
        %p218 = pneg %p144
      $region30: #{vgg_rank_head_forward.4} parent=11 // pred_check_branch
        %220 = sbr.rel (%p218) target = $region32
      $region31: #{vgg_rank_head_forward.4} parent=11 // pred_region
        _
      $region32: #{vgg_rank_head_forward.4} parent=11 // pred_fallthru
        _
      // Predicated region
      $region33: #{vgg_rank_head_forward.4} parent=11 // pred_check
        %p221 = pneg %p165
      $region34: #{vgg_rank_head_forward.4} parent=11 // pred_check_branch
        %223 = sbr.rel (%p221) target = $region36
      $region35: #{vgg_rank_head_forward.4} parent=11 // pred_region
        _
      $region36: #{vgg_rank_head_forward.4} parent=11 // pred_fallthru
        _
    $region12: #{vgg_rank_head_forward.4} parent=5 // pred_fallthru
      _
    %p224 = scmp.lt.s32.totalorder %s13, 2
    // Predicated region
    $region37: #{vgg_rank_head_forward.4} parent=5 // pred_check
      %p225 = pneg %p224
    $region38: #{vgg_rank_head_forward.4} parent=5 // pred_check_branch
      %227 = sbr.rel (%p225) target = $region40
    $region39: #{vgg_rank_head_forward.4} parent=5 // pred_region
      // Predicated region
      $region41: #{vgg_rank_head_forward.4} parent=39 // pred_check
        %p228 = pneg %p33
      $region42: #{vgg_rank_head_forward.4} parent=39 // pred_check_branch
        %230 = sbr.rel (%p228) target = $region44
      $region43: #{vgg_rank_head_forward.4} parent=39 // pred_region
        %p231 = scmp.lt.s32.totalorder %s13, 1
        %s232 = scalar_select %p231, %s13, 1
        %s233 = smul.addr %s232, 4
        %s234 = smul.addr %s233, 8
        %s235 = scalar_lea.vmem %s0, %s234
      $region44: #{vgg_rank_head_forward.4} parent=39 // pred_fallthru
        _
    $region40: #{vgg_rank_head_forward.4} parent=5 // pred_fallthru
      _
    %p236 = scmp.le.s32.totalorder 1, %s13
    %p237 = scmp.lt.s32.totalorder %s13, 3
    %p238 = pnand %p236, %p237
    %p239 = pneg %p238
    // Predicated region
    $region45: #{vgg_rank_head_forward.4} parent=5 // pred_check
      _
    $region46: #{vgg_rank_head_forward.4} parent=5 // pred_check_branch
      %241 = sbr.rel (%p238) target = $region48
    $region47: #{vgg_rank_head_forward.4} parent=5 // pred_region
      %s242 = ssub.s32 %s13, 1
      %p243 = scmp.lt.s32.totalorder %s18, 1
      %s244 = scalar_select %p243, %s18, 1
      %s245 = smul.addr %s244, 4
      %s246 = smul.addr %s245, 8
      %s247 = scalar_lea.vmem %s0, %s246
      %p248 = pneg %p39
      %p249 = pneg %p36
      %p250 = pneg %p60
      %p251 = pneg %p57
      %p252 = pneg %p81
      %p253 = pneg %p78
      %p254 = pneg %p102
      %p255 = pneg %p99
      %p256 = pneg %p123
      %p257 = pneg %p120
      %p258 = pneg %p144
      %p259 = pneg %p141
      %p260 = pneg %p165
      %p261 = pneg %p162
      %p262 = pneg %p191
      %p263 = pneg %p188
      %p264 = scmp.lt.s32.totalorder %s18, 1
      %s265 = scalar_select %p264, %s18, 1
      %s266 = smul.addr %s265, 4
      %s267 = scalar_lea.vmem %s7, %s266
      %p268 = scmp.lt.s32.totalorder %s18, 1
      %s269 = scalar_select %p268, %s18, 1
      %s270 = smul.addr %s269, 4
      %s271 = smul.addr %s270, 8
      %s272 = scalar_lea.vmem %s0, %s271
      %p273 = scmp.lt.s32.totalorder %s18, 1
      %s274 = scalar_select %p273, %s18, 1
      %s275 = smul.addr %s274, 4
      %s276 = scalar_lea.vmem %s7, %s275
      %v277 = vld [vmem:[%s272] sm:$0xff]
      %v278 = vld [vmem:[%s272 + $0x8] sm:$0xff]
      %v279 = vld [vmem:[%s1] sm:$0xff]
      %v280 = vld [vmem:[%s1 + $0x8] sm:$0xff]
      %v281 = vld [vmem:[%s1 + $0x10] sm:$0xff]
      %v282 = vld [vmem:[%s1 + $0x18] sm:$0xff]
      %v283 = vld [vmem:[%s1 + $0x20] sm:$0xff]
      %v284 = vld [vmem:[%s1 + $0x28] sm:$0xff]
      %v285 = vld [vmem:[%s1 + $0x30] sm:$0xff]
      %v286 = vld [vmem:[%s1 + $0x38] sm:$0xff]
      %v287 = vld [vmem:[%s1 + $0x40] sm:$0xff]
      %v288 = vld [vmem:[%s1 + $0x48] sm:$0xff]
      %v289 = vld [vmem:[%s1 + $0x50] sm:$0xff]
      %v290 = vld [vmem:[%s1 + $0x58] sm:$0xff]
      %v291 = vld [vmem:[%s1 + $0x60] sm:$0xff]
      %v292 = vld [vmem:[%s1 + $0x68] sm:$0xff]
      %v293 = vld [vmem:[%s1 + $0x70] sm:$0xff]
      %v294 = vld [vmem:[%s1 + $0x78] sm:$0xff]
      %v295 = vld [vmem:[%s1 + $0x80] sm:$0xff]
      %v296 = vld [vmem:[%s1 + $0x88] sm:$0xff]
      %v297 = vld [vmem:[%s1 + $0x90] sm:$0xff]
      %v298 = vld [vmem:[%s1 + $0x98] sm:$0xff]
      %v299 = vld [vmem:[%s1 + $0xa0] sm:$0xff]
      %v300 = vld [vmem:[%s1 + $0xa8] sm:$0xff]
      %v301 = vld [vmem:[%s1 + $0xb0] sm:$0xff]
      %v302 = vld [vmem:[%s1 + $0xb8] sm:$0xff]
      %v303 = vld [vmem:[%s1 + $0xc0] sm:$0xff]
      %v304 = vld [vmem:[%s1 + $0xc8] sm:$0xff]
      %v305 = vld [vmem:[%s1 + $0xd0] sm:$0xff]
      %v306 = vld [vmem:[%s1 + $0xd8] sm:$0xff]
      %v307 = vld [vmem:[%s1 + $0xe0] sm:$0xff]
      %v308 = vld [vmem:[%s1 + $0xe8] sm:$0xff]
      %v309 = vld [vmem:[%s1 + $0xf0] sm:$0xff]
      %v310 = vld [vmem:[%s1 + $0xf8] sm:$0xff]
      %v311 = vld [vmem:[%s1 + $0x100] sm:$0xff]
      %v312 = vld [vmem:[%s1 + $0x108] sm:$0xff]
      %v313 = vld [vmem:[%s1 + $0x110] sm:$0xff]
      %v314 = vld [vmem:[%s1 + $0x118] sm:$0xff]
      %v315 = vld [vmem:[%s1 + $0x120] sm:$0xff]
      %v316 = vld [vmem:[%s1 + $0x128] sm:$0xff]
      %v317 = vld [vmem:[%s1 + $0x130] sm:$0xff]
      %v318 = vld [vmem:[%s1 + $0x138] sm:$0xff]
      %v319 = vld [vmem:[%s272] sm:$0xfe]
      %v320 = vld [vmem:[%s272 + $0x8] sm:$0xfe]
      %v321 = vld [vmem:[%s272 + $0x10] sm:$0x1]
      %v322 = vld [vmem:[%s272 + $0x18] sm:$0x1]
      %s323 = scalar_lea.vmem %s1, 320
      %v324 = vld [vmem:[%s323] sm:$0xff]
      %v325 = vld [vmem:[%s323 + $0x8] sm:$0xff]
      %v326 = vld [vmem:[%s323 + $0x10] sm:$0xff]
      %v327 = vld [vmem:[%s323 + $0x18] sm:$0xff]
      %v328 = vld [vmem:[%s323 + $0x20] sm:$0xff]
      %v329 = vld [vmem:[%s323 + $0x28] sm:$0xff]
      %v330 = vld [vmem:[%s323 + $0x30] sm:$0xff]
      %v331 = vld [vmem:[%s323 + $0x38] sm:$0xff]
      %v332 = vld [vmem:[%s323 + $0x40] sm:$0xff]
      %v333 = vld [vmem:[%s323 + $0x48] sm:$0xff]
      %v334 = vld [vmem:[%s323 + $0x50] sm:$0xff]
      %v335 = vld [vmem:[%s323 + $0x58] sm:$0xff]
      %v336 = vld [vmem:[%s323 + $0x60] sm:$0xff]
      %v337 = vld [vmem:[%s323 + $0x68] sm:$0xff]
      %v338 = vld [vmem:[%s323 + $0x70] sm:$0xff]
      %v339 = vld [vmem:[%s323 + $0x78] sm:$0xff]
      %v340 = vld [vmem:[%s323 + $0x80] sm:$0xff]
      %v341 = vld [vmem:[%s323 + $0x88] sm:$0xff]
      %v342 = vld [vmem:[%s323 + $0x90] sm:$0xff]
      %v343 = vld [vmem:[%s323 + $0x98] sm:$0xff]
      %v344 = vld [vmem:[%s323 + $0xa0] sm:$0xff]
      %v345 = vld [vmem:[%s323 + $0xa8] sm:$0xff]
      %v346 = vld [vmem:[%s323 + $0xb0] sm:$0xff]
      %v347 = vld [vmem:[%s323 + $0xb8] sm:$0xff]
      %v348 = vld [vmem:[%s323 + $0xc0] sm:$0xff]
      %v349 = vld [vmem:[%s323 + $0xc8] sm:$0xff]
      %v350 = vld [vmem:[%s323 + $0xd0] sm:$0xff]
      %v351 = vld [vmem:[%s323 + $0xd8] sm:$0xff]
      %v352 = vld [vmem:[%s323 + $0xe0] sm:$0xff]
      %v353 = vld [vmem:[%s323 + $0xe8] sm:$0xff]
      %v354 = vld [vmem:[%s323 + $0xf0] sm:$0xff]
      %v355 = vld [vmem:[%s323 + $0xf8] sm:$0xff]
      %v356 = vld [vmem:[%s323 + $0x100] sm:$0xff]
      %v357 = vld [vmem:[%s323 + $0x108] sm:$0xff]
      %v358 = vld [vmem:[%s323 + $0x110] sm:$0xff]
      %v359 = vld [vmem:[%s323 + $0x118] sm:$0xff]
      %v360 = vld [vmem:[%s323 + $0x120] sm:$0xff]
      %v361 = vld [vmem:[%s323 + $0x128] sm:$0xff]
      %v362 = vld [vmem:[%s323 + $0x130] sm:$0xff]
      %v363 = vld [vmem:[%s323 + $0x138] sm:$0xff]
      %vm368 = vcmask 1046528
      %v369 = vrot.slane %v319, 1
      %v370 = vrot.slane %v321, 1
      %v371 = vsel %vm368, %v369, %v370
      %v372 = vrot.slane %v320, 1
      %v373 = vrot.slane %v322, 1
      %v374 = vsel %vm368, %v372, %v373
      %vm376 = vcmask 261120
      %v377 = vsel %vm376, %v374, 0
      %379 = vmatprep.subr.mxu0 %v325
      %380 = vmatpush1.msra.mxu0 %v324
      %381 = vmatprep.subr.mxu0 %v327
      %382 = vmatpush1.msra.mxu0 %v326
      %383 = vmatprep.subr.mxu0 %v329
      %384 = vmatpush1.msra.mxu0 %v328
      %385 = vmatprep.subr.mxu0 %v331
      %386 = vmatpush1.msra.mxu0 %v330
      %387 = vmatprep.subr.mxu0 %v333
      %388 = vmatpush1.msra.mxu0 %v332
      %389 = vmatprep.subr.mxu0 %v335
      %390 = vmatpush1.msra.mxu0 %v334
      %391 = vmatprep.subr.mxu0 %v337
      %392 = vmatpush1.msra.mxu0 %v336
      %393 = vmatprep.subr.mxu0 %v339
      %394 = vmatpush1.msra.mxu0 %v338
      %395 = vmatprep.subr.mxu0 %v341
      %396 = vmatpush1.msra.mxu0 %v340
      %397 = vmatprep.subr.mxu0 %v343
      %398 = vmatpush1.msra.mxu0 %v342
      %399 = vmatprep.subr.mxu0 %v345
      %400 = vmatpush1.msra.mxu0 %v344
      %401 = vmatprep.subr.mxu0 %v347
      %402 = vmatpush1.msra.mxu0 %v346
      %403 = vmatprep.subr.mxu0 %v349
      %404 = vmatpush1.msra.mxu0 %v348
      %405 = vmatprep.subr.mxu0 %v351
      %406 = vmatpush1.msra.mxu0 %v350
      %407 = vmatprep.subr.mxu0 %v353
      %408 = vmatpush1.msra.mxu0 %v352
      %409 = vmatprep.subr.mxu0 %v355
      %410 = vmatpush1.msra.mxu0 %v354
      %411 = vmatprep.subr.mxu0 %v357
      %412 = vmatpush1.msra.mxu0 %v356
      %413 = vmatprep.subr.mxu0 %v359
      %414 = vmatpush1.msra.mxu0 %v358
      %415 = vmatprep.subr.mxu0 %v361
      %416 = vmatpush1.msra.mxu0 %v360
      %417 = vmatprep.subr.mxu0 %v363
      %418 = vmatpush1.msra.mxu0 %v362
      %419 = vmatprep.subr.mxu0 0.0
      %420 = vmatpush1.msra.mxu0 0.0
      %421 = vmatprep.subr.mxu0 0.0
      %422 = vmatpush1.msra.mxu0 0.0
      %423 = vmatprep.subr.mxu0 0.0
      %424 = vmatpush1.msra.mxu0 0.0
      %425 = vmatprep.subr.mxu0 0.0
      %426 = vmatpush1.msra.mxu0 0.0
      %427 = vmatprep.subr.mxu0 0.0
      %428 = vmatpush1.msra.mxu0 0.0
      %429 = vmatprep.subr.mxu0 0.0
      %430 = vmatpush1.msra.mxu0 0.0
      %431 = vmatprep.subr.mxu0 0.0
      %432 = vmatpush1.msra.mxu0 0.0
      %433 = vmatprep.subr.mxu0 0.0
      %434 = vmatpush1.msra.mxu0 0.0
      %435 = vmatprep.subr.mxu0 0.0
      %436 = vmatpush1.msra.mxu0 0.0
      %437 = vmatprep.subr.mxu0 0.0
      %438 = vmatpush1.msra.mxu0 0.0
      %439 = vmatprep.subr.mxu0 0.0
      %440 = vmatpush1.msra.mxu0 0.0
      %441 = vmatprep.subr.mxu0 0.0
      %442 = vmatpush1.msra.mxu0 0.0
      %443 = vmatprep.mubr.f32.mxu0 %v377
      %444 = vmatmul.mubr.f32.gmra.mrb[0].mxu0 %v371
      %v445 = vpop.f32.mrb[0].mxu0
      %v446 = vadd.f32 0.0, %v445
      %v447 = vpop.f32.mrb[0].mxu0
      %v448 = vadd.f32 0.0, %v447
      %449 = vdwg.mxu0
      %v451 = vsel %vm376, %v278, 0
      %453 = vmatprep.subr.mxu0 %v280
      %454 = vmatpush1.msra.mxu0 %v279
      %455 = vmatprep.subr.mxu0 %v282
      %456 = vmatpush1.msra.mxu0 %v281
      %457 = vmatprep.subr.mxu0 %v284
      %458 = vmatpush1.msra.mxu0 %v283
      %459 = vmatprep.subr.mxu0 %v286
      %460 = vmatpush1.msra.mxu0 %v285
      %461 = vmatprep.subr.mxu0 %v288
      %462 = vmatpush1.msra.mxu0 %v287
      %463 = vmatprep.subr.mxu0 %v290
      %464 = vmatpush1.msra.mxu0 %v289
      %465 = vmatprep.subr.mxu0 %v292
      %466 = vmatpush1.msra.mxu0 %v291
      %467 = vmatprep.subr.mxu0 %v294
      %468 = vmatpush1.msra.mxu0 %v293
      %469 = vmatprep.subr.mxu0 %v296
      %470 = vmatpush1.msra.mxu0 %v295
      %471 = vmatprep.subr.mxu0 %v298
      %472 = vmatpush1.msra.mxu0 %v297
      %473 = vmatprep.subr.mxu0 %v300
      %474 = vmatpush1.msra.mxu0 %v299
      %475 = vmatprep.subr.mxu0 %v302
      %476 = vmatpush1.msra.mxu0 %v301
      %477 = vmatprep.subr.mxu0 %v304
      %478 = vmatpush1.msra.mxu0 %v303
      %479 = vmatprep.subr.mxu0 %v306
      %480 = vmatpush1.msra.mxu0 %v305
      %481 = vmatprep.subr.mxu0 %v308
      %482 = vmatpush1.msra.mxu0 %v307
      %483 = vmatprep.subr.mxu0 %v310
      %484 = vmatpush1.msra.mxu0 %v309
      %485 = vmatprep.subr.mxu0 %v312
      %486 = vmatpush1.msra.mxu0 %v311
      %487 = vmatprep.subr.mxu0 %v314
      %488 = vmatpush1.msra.mxu0 %v313
      %489 = vmatprep.subr.mxu0 %v316
      %490 = vmatpush1.msra.mxu0 %v315
      %491 = vmatprep.subr.mxu0 %v318
      %492 = vmatpush1.msra.mxu0 %v317
      %493 = vmatprep.subr.mxu0 0.0
      %494 = vmatpush1.msra.mxu0 0.0
      %495 = vmatprep.subr.mxu0 0.0
      %496 = vmatpush1.msra.mxu0 0.0
      %497 = vmatprep.subr.mxu0 0.0
      %498 = vmatpush1.msra.mxu0 0.0
      %499 = vmatprep.subr.mxu0 0.0
      %500 = vmatpush1.msra.mxu0 0.0
      %501 = vmatprep.subr.mxu0 0.0
      %502 = vmatpush1.msra.mxu0 0.0
      %503 = vmatprep.subr.mxu0 0.0
      %504 = vmatpush1.msra.mxu0 0.0
      %505 = vmatprep.subr.mxu0 0.0
      %506 = vmatpush1.msra.mxu0 0.0
      %507 = vmatprep.subr.mxu0 0.0
      %508 = vmatpush1.msra.mxu0 0.0
      %509 = vmatprep.subr.mxu0 0.0
      %510 = vmatpush1.msra.mxu0 0.0
      %511 = vmatprep.subr.mxu0 0.0
      %512 = vmatpush1.msra.mxu0 0.0
      %513 = vmatprep.subr.mxu0 0.0
      %514 = vmatpush1.msra.mxu0 0.0
      %515 = vmatprep.subr.mxu0 0.0
      %516 = vmatpush1.msra.mxu0 0.0
      %517 = vmatprep.mubr.f32.mxu0 %v451
      %518 = vmatmul.mubr.f32.gmra.mrb[0].mxu0 %v277
      %v519 = vpop.f32.mrb[0].mxu0
      %v520 = vadd.f32 %v446, %v519
      %v521 = vpop.f32.mrb[0].mxu0
      %v522 = vadd.f32 %v448, %v521
      %523 = vdwg.mxu0
      %v524 = vld [vmem:[%s272] sm:$0xfc]
      %v525 = vld [vmem:[%s272 + $0x8] sm:$0xfc]
      %v526 = vld [vmem:[%s272 + $0x10] sm:$0x3]
      %v527 = vld [vmem:[%s272 + $0x18] sm:$0x3]
      %s528 = scalar_lea.vmem %s1, 640
      %v529 = vld [vmem:[%s528] sm:$0xff]
      %v530 = vld [vmem:[%s528 + $0x8] sm:$0xff]
      %v531 = vld [vmem:[%s528 + $0x10] sm:$0xff]
      %v532 = vld [vmem:[%s528 + $0x18] sm:$0xff]
      %v533 = vld [vmem:[%s528 + $0x20] sm:$0xff]
      %v534 = vld [vmem:[%s528 + $0x28] sm:$0xff]
      %v535 = vld [vmem:[%s528 + $0x30] sm:$0xff]
      %v536 = vld [vmem:[%s528 + $0x38] sm:$0xff]
      %v537 = vld [vmem:[%s528 + $0x40] sm:$0xff]
      %v538 = vld [vmem:[%s528 + $0x48] sm:$0xff]
      %v539 = vld [vmem:[%s528 + $0x50] sm:$0xff]
      %v540 = vld [vmem:[%s528 + $0x58] sm:$0xff]
      %v541 = vld [vmem:[%s528 + $0x60] sm:$0xff]
      %v542 = vld [vmem:[%s528 + $0x68] sm:$0xff]
      %v543 = vld [vmem:[%s528 + $0x70] sm:$0xff]
      %v544 = vld [vmem:[%s528 + $0x78] sm:$0xff]
      %v545 = vld [vmem:[%s528 + $0x80] sm:$0xff]
      %v546 = vld [vmem:[%s528 + $0x88] sm:$0xff]
      %v547 = vld [vmem:[%s528 + $0x90] sm:$0xff]
      %v548 = vld [vmem:[%s528 + $0x98] sm:$0xff]
      %v549 = vld [vmem:[%s528 + $0xa0] sm:$0xff]
      %v550 = vld [vmem:[%s528 + $0xa8] sm:$0xff]
      %v551 = vld [vmem:[%s528 + $0xb0] sm:$0xff]
      %v552 = vld [vmem:[%s528 + $0xb8] sm:$0xff]
      %v553 = vld [vmem:[%s528 + $0xc0] sm:$0xff]
      %v554 = vld [vmem:[%s528 + $0xc8] sm:$0xff]
      %v555 = vld [vmem:[%s528 + $0xd0] sm:$0xff]
      %v556 = vld [vmem:[%s528 + $0xd8] sm:$0xff]
      %v557 = vld [vmem:[%s528 + $0xe0] sm:$0xff]
      %v558 = vld [vmem:[%s528 + $0xe8] sm:$0xff]
      %v559 = vld [vmem:[%s528 + $0xf0] sm:$0xff]
      %v560 = vld [vmem:[%s528 + $0xf8] sm:$0xff]
      %v561 = vld [vmem:[%s528 + $0x100] sm:$0xff]
      %v562 = vld [vmem:[%s528 + $0x108] sm:$0xff]
      %v563 = vld [vmem:[%s528 + $0x110] sm:$0xff]
      %v564 = vld [vmem:[%s528 + $0x118] sm:$0xff]
      %v565 = vld [vmem:[%s528 + $0x120] sm:$0xff]
      %v566 = vld [vmem:[%s528 + $0x128] sm:$0xff]
      %v567 = vld [vmem:[%s528 + $0x130] sm:$0xff]
      %v568 = vld [vmem:[%s528 + $0x138] sm:$0xff]
      %vm573 = vcmask 1045504
      %v574 = vrot.slane %v524, 2
      %v575 = vrot.slane %v526, 2
      %v576 = vsel %vm573, %v574, %v575
      %v577 = vrot.slane %v525, 2
      %v578 = vrot.slane %v527, 2
      %v579 = vsel %vm573, %v577, %v578
      %v581 = vsel %vm376, %v579, 0
      %583 = vmatprep.subr.mxu0 %v530
      %584 = vmatpush1.msra.mxu0 %v529
      %585 = vmatprep.subr.mxu0 %v532
      %586 = vmatpush1.msra.mxu0 %v531
      %587 = vmatprep.subr.mxu0 %v534
      %588 = vmatpush1.msra.mxu0 %v533
      %589 = vmatprep.subr.mxu0 %v536
      %590 = vmatpush1.msra.mxu0 %v535
      %591 = vmatprep.subr.mxu0 %v538
      %592 = vmatpush1.msra.mxu0 %v537
      %593 = vmatprep.subr.mxu0 %v540
      %594 = vmatpush1.msra.mxu0 %v539
      %595 = vmatprep.subr.mxu0 %v542
      %596 = vmatpush1.msra.mxu0 %v541
      %597 = vmatprep.subr.mxu0 %v544
      %598 = vmatpush1.msra.mxu0 %v543
      %599 = vmatprep.subr.mxu0 %v546
      %600 = vmatpush1.msra.mxu0 %v545
      %601 = vmatprep.subr.mxu0 %v548
      %602 = vmatpush1.msra.mxu0 %v547
      %603 = vmatprep.subr.mxu0 %v550
      %604 = vmatpush1.msra.mxu0 %v549
      %605 = vmatprep.subr.mxu0 %v552
      %606 = vmatpush1.msra.mxu0 %v551
      %607 = vmatprep.subr.mxu0 %v554
      %608 = vmatpush1.msra.mxu0 %v553
      %609 = vmatprep.subr.mxu0 %v556
      %610 = vmatpush1.msra.mxu0 %v555
      %611 = vmatprep.subr.mxu0 %v558
      %612 = vmatpush1.msra.mxu0 %v557
      %613 = vmatprep.subr.mxu0 %v560
      %614 = vmatpush1.msra.mxu0 %v559
      %615 = vmatprep.subr.mxu0 %v562
      %616 = vmatpush1.msra.mxu0 %v561
      %617 = vmatprep.subr.mxu0 %v564
      %618 = vmatpush1.msra.mxu0 %v563
      %619 = vmatprep.subr.mxu0 %v566
      %620 = vmatpush1.msra.mxu0 %v565
      %621 = vmatprep.subr.mxu0 %v568
      %622 = vmatpush1.msra.mxu0 %v567
      %623 = vmatprep.subr.mxu0 0.0
      %624 = vmatpush1.msra.mxu0 0.0
      %625 = vmatprep.subr.mxu0 0.0
      %626 = vmatpush1.msra.mxu0 0.0
      %627 = vmatprep.subr.mxu0 0.0
      %628 = vmatpush1.msra.mxu0 0.0
      %629 = vmatprep.subr.mxu0 0.0
      %630 = vmatpush1.msra.mxu0 0.0
      %631 = vmatprep.subr.mxu0 0.0
      %632 = vmatpush1.msra.mxu0 0.0
      %633 = vmatprep.subr.mxu0 0.0
      %634 = vmatpush1.msra.mxu0 0.0
      %635 = vmatprep.subr.mxu0 0.0
      %636 = vmatpush1.msra.mxu0 0.0
      %637 = vmatprep.subr.mxu0 0.0
      %638 = vmatpush1.msra.mxu0 0.0
      %639 = vmatprep.subr.mxu0 0.0
      %640 = vmatpush1.msra.mxu0 0.0
      %641 = vmatprep.subr.mxu0 0.0
      %642 = vmatpush1.msra.mxu0 0.0
      %643 = vmatprep.subr.mxu0 0.0
      %644 = vmatpush1.msra.mxu0 0.0
      %645 = vmatprep.subr.mxu0 0.0
      %646 = vmatpush1.msra.mxu0 0.0
      %647 = vmatprep.mubr.f32.mxu0 %v581
      %648 = vmatmul.mubr.f32.gmra.mrb[0].mxu0 %v576
      %v649 = vpop.f32.mrb[0].mxu0
      %v650 = vadd.f32 0.0, %v649
      %v651 = vpop.f32.mrb[0].mxu0
      %v652 = vadd.f32 0.0, %v651
      %653 = vdwg.mxu0
      %v654 = vadd.f32 %v520, %v650
      %v655 = vadd.f32 %v522, %v652
      %v656 = vld [vmem:[%s2] sm:$0x3]
      %v658 = vlaneseq
      %v659 = vshrl.u32 %v658, 7
      %v660 = vsub.s32 0, %v659
      %v661 = vrot.slane %v656, %v660
      %v662 = vlaneseq
      %v663 = vshrl.u32 %v662, 7
      %v664 = vsub.s32 1, %v663
      %v665 = vrot.slane %v656, %v664
      %v668 = vadd.f32 %v654, %v661
      %v669 = vadd.f32 %v655, %v665
      %v670 = vmax.f32 %v668, 0.0
      %v671 = vmax.f32 %v669, 0.0
      %v672 = vld [vmem:[%s3] sm:$0xf]
      %vm673 = vcmask 64512
      %v675 = vsel %vm673, %v672, 0
      %677 = vmatprep.subr.mxu0 %v671
      %678 = vmatpush1.msra.mxu0 %v670
      %679 = vmatprep.subr.mxu0 0.0
      %680 = vmatpush1.msra.mxu0 0.0
      %681 = vmatprep.subr.mxu0 0.0
      %682 = vmatpush1.msra.mxu0 0.0
      %683 = vmatprep.subr.mxu0 0.0
      %684 = vmatpush1.msra.mxu0 0.0
      %685 = vmatprep.subr.mxu0 0.0
      %686 = vmatpush1.msra.mxu0 0.0
      %687 = vmatprep.subr.mxu0 0.0
      %688 = vmatpush1.msra.mxu0 0.0
      %689 = vmatprep.subr.mxu0 0.0
      %690 = vmatpush1.msra.mxu0 0.0
      %691 = vmatprep.subr.mxu0 0.0
      %692 = vmatpush1.msra.mxu0 0.0
      %693 = vmatprep.subr.mxu0 0.0
      %694 = vmatpush1.msra.mxu0 0.0
      %695 = vmatprep.subr.mxu0 0.0
      %696 = vmatpush1.msra.mxu0 0.0
      %697 = vmatprep.subr.mxu0 0.0
      %698 = vmatpush1.msra.mxu0 0.0
      %699 = vmatprep.subr.mxu0 0.0
      %700 = vmatpush1.msra.mxu0 0.0
      %701 = vmatprep.subr.mxu0 0.0
      %702 = vmatpush1.msra.mxu0 0.0
      %703 = vmatprep.subr.mxu0 0.0
      %704 = vmatpush1.msra.mxu0 0.0
      %705 = vmatprep.subr.mxu0 0.0
      %706 = vmatpush1.msra.mxu0 0.0
      %707 = vmatprep.subr.mxu0 0.0
      %708 = vmatpush1.msra.mxu0 0.0
      %709 = vmatprep.subr.mxu0 0.0
      %710 = vmatpush1.msra.mxu0 0.0
      %711 = vmatprep.subr.mxu0 0.0
      %712 = vmatpush1.msra.mxu0 0.0
      %713 = vmatprep.subr.mxu0 0.0
      %714 = vmatpush1.msra.mxu0 0.0
      %715 = vmatprep.subr.mxu0 0.0
      %716 = vmatpush1.msra.mxu0 0.0
      %717 = vmatprep.subr.mxu0 0.0
      %718 = vmatpush1.msra.mxu0 0.0
      %719 = vmatprep.subr.mxu0 0.0
      %720 = vmatpush1.msra.mxu0 0.0
      %721 = vmatprep.subr.mxu0 0.0
      %722 = vmatpush1.msra.mxu0 0.0
      %723 = vmatprep.subr.mxu0 0.0
      %724 = vmatpush1.msra.mxu0 0.0
      %725 = vmatprep.subr.mxu0 0.0
      %726 = vmatpush1.msra.mxu0 0.0
      %727 = vmatprep.subr.mxu0 0.0
      %728 = vmatpush1.msra.mxu0 0.0
      %729 = vmatprep.subr.mxu0 0.0
      %730 = vmatpush1.msra.mxu0 0.0
      %731 = vmatprep.subr.mxu0 0.0
      %732 = vmatpush1.msra.mxu0 0.0
      %733 = vmatprep.subr.mxu0 0.0
      %734 = vmatpush1.msra.mxu0 0.0
      %735 = vmatprep.subr.mxu0 0.0
      %736 = vmatpush1.msra.mxu0 0.0
      %737 = vmatprep.subr.mxu0 0.0
      %738 = vmatpush1.msra.mxu0 0.0
      %739 = vmatprep.subr.mxu0 0.0
      %740 = vmatpush1.msra.mxu0 0.0
      %741 = vmatprep.mubr.f32.mxu0 0.0
      %742 = vmatmul.mubr.f32.gmra.mrb[0].mxu0 %v675
      %v743 = vpop.f32.mrb[0].mxu0
      %v744 = vadd.f32 0.0, %v743
      %v745 = vpop.f32.mrb[0].mxu0
      %v746 = vadd.f32 0.0, %v745
      %747 = vdwg.mxu0
      %v748 = vld [vmem:[%s4] sm:$0xf]
      %v750 = vsel %vm673, %v748, 0
      %752 = vmatprep.subr.mxu0 %v671
      %753 = vmatpush1.msra.mxu0 %v670
      %754 = vmatprep.subr.mxu0 0.0
      %755 = vmatpush1.msra.mxu0 0.0
      %756 = vmatprep.subr.mxu0 0.0
      %757 = vmatpush1.msra.mxu0 0.0
      %758 = vmatprep.subr.mxu0 0.0
      %759 = vmatpush1.msra.mxu0 0.0
      %760 = vmatprep.subr.mxu0 0.0
      %761 = vmatpush1.msra.mxu0 0.0
      %762 = vmatprep.subr.mxu0 0.0
      %763 = vmatpush1.msra.mxu0 0.0
      %764 = vmatprep.subr.mxu0 0.0
      %765 = vmatpush1.msra.mxu0 0.0
      %766 = vmatprep.subr.mxu0 0.0
      %767 = vmatpush1.msra.mxu0 0.0
      %768 = vmatprep.subr.mxu0 0.0
      %769 = vmatpush1.msra.mxu0 0.0
      %770 = vmatprep.subr.mxu0 0.0
      %771 = vmatpush1.msra.mxu0 0.0
      %772 = vmatprep.subr.mxu0 0.0
      %773 = vmatpush1.msra.mxu0 0.0
      %774 = vmatprep.subr.mxu0 0.0
      %775 = vmatpush1.msra.mxu0 0.0
      %776 = vmatprep.subr.mxu0 0.0
      %777 = vmatpush1.msra.mxu0 0.0
      %778 = vmatprep.subr.mxu0 0.0
      %779 = vmatpush1.msra.mxu0 0.0
      %780 = vmatprep.subr.mxu0 0.0
      %781 = vmatpush1.msra.mxu0 0.0
      %782 = vmatprep.subr.mxu0 0.0
      %783 = vmatpush1.msra.mxu0 0.0
      %784 = vmatprep.subr.mxu0 0.0
      %785 = vmatpush1.msra.mxu0 0.0
      %786 = vmatprep.subr.mxu0 0.0
      %787 = vmatpush1.msra.mxu0 0.0
      %788 = vmatprep.subr.mxu0 0.0
      %789 = vmatpush1.msra.mxu0 0.0
      %790 = vmatprep.subr.mxu0 0.0
      %791 = vmatpush1.msra.mxu0 0.0
      %792 = vmatprep.subr.mxu0 0.0
      %793 = vmatpush1.msra.mxu0 0.0
      %794 = vmatprep.subr.mxu0 0.0
      %795 = vmatpush1.msra.mxu0 0.0
      %796 = vmatprep.subr.mxu0 0.0
      %797 = vmatpush1.msra.mxu0 0.0
      %798 = vmatprep.subr.mxu0 0.0
      %799 = vmatpush1.msra.mxu0 0.0
      %800 = vmatprep.subr.mxu0 0.0
      %801 = vmatpush1.msra.mxu0 0.0
      %802 = vmatprep.subr.mxu0 0.0
      %803 = vmatpush1.msra.mxu0 0.0
      %804 = vmatprep.subr.mxu0 0.0
      %805 = vmatpush1.msra.mxu0 0.0
      %806 = vmatprep.subr.mxu0 0.0
      %807 = vmatpush1.msra.mxu0 0.0
      %808 = vmatprep.subr.mxu0 0.0
      %809 = vmatpush1.msra.mxu0 0.0
      %810 = vmatprep.subr.mxu0 0.0
      %811 = vmatpush1.msra.mxu0 0.0
      %812 = vmatprep.subr.mxu0 0.0
      %813 = vmatpush1.msra.mxu0 0.0
      %814 = vmatprep.subr.mxu0 0.0
      %815 = vmatpush1.msra.mxu0 0.0
      %816 = vmatprep.mubr.f32.mxu0 0.0
      %817 = vmatmul.mubr.f32.gmra.mrb[0].mxu0 %v750
      %v818 = vpop.f32.mrb[0].mxu0
      %v819 = vadd.f32 0.0, %v818
      %v820 = vpop.f32.mrb[0].mxu0
      %v821 = vadd.f32 0.0, %v820
      %822 = vdwg.mxu0
      %v823 = vmax.f32 %v744, %v819
      %v824 = vmax.f32 %v746, %v821
      %v825 = vld [vmem:[%s5] sm:$0xff]
      %v826 = vld [vmem:[%s5 + $0x8] sm:$0xff]
      %v827 = vld [vmem:[%s5 + $0x10] sm:$0xff]
      %v828 = vld [vmem:[%s5 + $0x18] sm:$0xff]
      %v829 = vld [vmem:[%s5 + $0x20] sm:$0xff]
      %v830 = vld [vmem:[%s5 + $0x28] sm:$0xff]
      %v831 = vld [vmem:[%s5 + $0x30] sm:$0xff]
      %v832 = vld [vmem:[%s5 + $0x38] sm:$0xff]
      %v833 = vld [vmem:[%s5 + $0x40] sm:$0xff]
      %v834 = vld [vmem:[%s5 + $0x48] sm:$0xff]
      %v835 = vld [vmem:[%s5 + $0x50] sm:$0xff]
      %v836 = vld [vmem:[%s5 + $0x58] sm:$0xff]
      %v837 = vld [vmem:[%s5 + $0x60] sm:$0xff]
      %v838 = vld [vmem:[%s5 + $0x68] sm:$0xff]
      %v839 = vld [vmem:[%s5 + $0x70] sm:$0xff]
      %v840 = vld [vmem:[%s5 + $0x78] sm:$0xff]
      %v841 = vld [vmem:[%s5 + $0x80] sm:$0xff]
      %v842 = vld [vmem:[%s5 + $0x88] sm:$0xff]
      %v843 = vld [vmem:[%s5 + $0x90] sm:$0xff]
      %v844 = vld [vmem:[%s5 + $0x98] sm:$0xff]
      %v845 = vld [vmem:[%s5 + $0xa0] sm:$0xff]
      %v846 = vld [vmem:[%s5 + $0xa8] sm:$0xff]
      %v847 = vld [vmem:[%s5 + $0xb0] sm:$0xff]
      %v848 = vld [vmem:[%s5 + $0xb8] sm:$0xff]
      %v849 = vld [vmem:[%s5 + $0xc0] sm:$0xff]
      %v850 = vld [vmem:[%s5 + $0xc8] sm:$0xff]
      %v851 = vld [vmem:[%s5 + $0xd0] sm:$0xff]
      %v852 = vld [vmem:[%s5 + $0xd8] sm:$0xff]
      %v853 = vld [vmem:[%s5 + $0xe0] sm:$0xff]
      %v854 = vld [vmem:[%s5 + $0xe8] sm:$0xff]
      %v855 = vld [vmem:[%s5 + $0xf0] sm:$0xff]
      %v856 = vld [vmem:[%s5 + $0xf8] sm:$0xff]
      %857 = vmatprep.subr.mxu0 0.0
      %858 = vmatpush1.msra.mxu0 %v825
      %859 = vmatprep.subr.mxu0 0.0
      %860 = vmatpush1.msra.mxu0 %v826
      %861 = vmatprep.subr.mxu0 0.0
      %862 = vmatpush1.msra.mxu0 %v827
      %863 = vmatprep.subr.mxu0 0.0
      %864 = vmatpush1.msra.mxu0 %v828
      %865 = vmatprep.subr.mxu0 0.0
      %866 = vmatpush1.msra.mxu0 %v829
      %867 = vmatprep.subr.mxu0 0.0
      %868 = vmatpush1.msra.mxu0 %v830
      %869 = vmatprep.subr.mxu0 0.0
      %870 = vmatpush1.msra.mxu0 %v831
      %871 = vmatprep.subr.mxu0 0.0
      %872 = vmatpush1.msra.mxu0 %v832
      %873 = vmatprep.subr.mxu0 0.0
      %874 = vmatpush1.msra.mxu0 %v833
      %875 = vmatprep.subr.mxu0 0.0
      %876 = vmatpush1.msra.mxu0 %v834
      %877 = vmatprep.subr.mxu0 0.0
      %878 = vmatpush1.msra.mxu0 %v835
      %879 = vmatprep.subr.mxu0 0.0
      %880 = vmatpush1.msra.mxu0 %v836
      %881 = vmatprep.subr.mxu0 0.0
      %882 = vmatpush1.msra.mxu0 %v837
      %883 = vmatprep.subr.mxu0 0.0
      %884 = vmatpush1.msra.mxu0 %v838
      %885 = vmatprep.subr.mxu0 0.0
      %886 = vmatpush1.msra.mxu0 %v839
      %887 = vmatprep.subr.mxu0 0.0
      %888 = vmatpush1.msra.mxu0 %v840
      %889 = vmatprep.subr.mxu0 0.0
      %890 = vmatpush1.msra.mxu0 %v841
      %891 = vmatprep.subr.mxu0 0.0
      %892 = vmatpush1.msra.mxu0 %v842
      %893 = vmatprep.subr.mxu0 0.0
      %894 = vmatpush1.msra.mxu0 %v843
      %895 = vmatprep.subr.mxu0 0.0
      %896 = vmatpush1.msra.mxu0 %v844
      %897 = vmatprep.subr.mxu0 0.0
      %898 = vmatpush1.msra.mxu0 %v845
      %899 = vmatprep.subr.mxu0 0.0
      %900 = vmatpush1.msra.mxu0 %v846
      %901 = vmatprep.subr.mxu0 0.0
      %902 = vmatpush1.msra.mxu0 %v847
      %903 = vmatprep.subr.mxu0 0.0
      %904 = vmatpush1.msra.mxu0 %v848
      %905 = vmatprep.subr.mxu0 0.0
      %906 = vmatpush1.msra.mxu0 %v849
      %907 = vmatprep.subr.mxu0 0.0
      %908 = vmatpush1.msra.mxu0 %v850
      %909 = vmatprep.subr.mxu0 0.0
      %910 = vmatpush1.msra.mxu0 %v851
      %911 = vmatprep.subr.mxu0 0.0
      %912 = vmatpush1.msra.mxu0 %v852
      %913 = vmatprep.subr.mxu0 0.0
      %914 = vmatpush1.msra.mxu0 %v853
      %915 = vmatprep.subr.mxu0 0.0
      %916 = vmatpush1.msra.mxu0 %v854
      %917 = vmatprep.subr.mxu0 0.0
      %918 = vmatpush1.msra.mxu0 %v855
      %919 = vmatprep.subr.mxu0 0.0
      %920 = vmatpush1.msra.mxu0 %v856
      %921 = vmatprep.mubr.f32.mxu0 %v824
      %922 = vmatmul.mubr.f32.gmra.mrb[0].mxu0 %v823
      %v923 = vpop.f32.mrb[0].mxu0
      %v924 = vadd.f32 0.0, %v923
      %v925 = vpop.f32.mrb[0].mxu0
      %926 = vdwg.mxu0
      %v927 = vld [vmem:[%s6] sm:$0xff]
      %v928 = vld [vmem:[%s6 + $0x8] sm:$0xff]
      %v929 = vld [vmem:[%s6 + $0x10] sm:$0xff]
      %v930 = vld [vmem:[%s6 + $0x18] sm:$0xff]
      %v931 = vld [vmem:[%s6 + $0x20] sm:$0xff]
      %v932 = vld [vmem:[%s6 + $0x28] sm:$0xff]
      %v933 = vld [vmem:[%s6 + $0x30] sm:$0xff]
      %v934 = vld [vmem:[%s6 + $0x38] sm:$0xff]
      %v935 = vld [vmem:[%s6 + $0x40] sm:$0xff]
      %v936 = vld [vmem:[%s6 + $0x48] sm:$0xff]
      %v937 = vld [vmem:[%s6 + $0x50] sm:$0xff]
      %v938 = vld [vmem:[%s6 + $0x58] sm:$0xff]
      %v939 = vld [vmem:[%s6 + $0x60] sm:$0xff]
      %v940 = vld [vmem:[%s6 + $0x68] sm:$0xff]
      %v941 = vld [vmem:[%s6 + $0x70] sm:$0xff]
      %v942 = vld [vmem:[%s6 + $0x78] sm:$0xff]
      %v943 = vld [vmem:[%s6 + $0x80] sm:$0xff]
      %v944 = vld [vmem:[%s6 + $0x88] sm:$0xff]
      %v945 = vld [vmem:[%s6 + $0x90] sm:$0xff]
      %v946 = vld [vmem:[%s6 + $0x98] sm:$0xff]
      %v947 = vld [vmem:[%s6 + $0xa0] sm:$0xff]
      %v948 = vld [vmem:[%s6 + $0xa8] sm:$0xff]
      %v949 = vld [vmem:[%s6 + $0xb0] sm:$0xff]
      %v950 = vld [vmem:[%s6 + $0xb8] sm:$0xff]
      %v951 = vld [vmem:[%s6 + $0xc0] sm:$0xff]
      %v952 = vld [vmem:[%s6 + $0xc8] sm:$0xff]
      %v953 = vld [vmem:[%s6 + $0xd0] sm:$0xff]
      %v954 = vld [vmem:[%s6 + $0xd8] sm:$0xff]
      %v955 = vld [vmem:[%s6 + $0xe0] sm:$0xff]
      %v956 = vld [vmem:[%s6 + $0xe8] sm:$0xff]
      %v957 = vld [vmem:[%s6 + $0xf0] sm:$0xff]
      %v958 = vld [vmem:[%s6 + $0xf8] sm:$0xff]
      %959 = vmatprep.subr.mxu0 0.0
      %960 = vmatpush1.msra.mxu0 %v927
      %961 = vmatprep.subr.mxu0 0.0
      %962 = vmatpush1.msra.mxu0 %v928
      %963 = vmatprep.subr.mxu0 0.0
      %964 = vmatpush1.msra.mxu0 %v929
      %965 = vmatprep.subr.mxu0 0.0
      %966 = vmatpush1.msra.mxu0 %v930
      %967 = vmatprep.subr.mxu0 0.0
      %968 = vmatpush1.msra.mxu0 %v931
      %969 = vmatprep.subr.mxu0 0.0
      %970 = vmatpush1.msra.mxu0 %v932
      %971 = vmatprep.subr.mxu0 0.0
      %972 = vmatpush1.msra.mxu0 %v933
      %973 = vmatprep.subr.mxu0 0.0
      %974 = vmatpush1.msra.mxu0 %v934
      %975 = vmatprep.subr.mxu0 0.0
      %976 = vmatpush1.msra.mxu0 %v935
      %977 = vmatprep.subr.mxu0 0.0
      %978 = vmatpush1.msra.mxu0 %v936
      %979 = vmatprep.subr.mxu0 0.0
      %980 = vmatpush1.msra.mxu0 %v937
      %981 = vmatprep.subr.mxu0 0.0
      %982 = vmatpush1.msra.mxu0 %v938
      %983 = vmatprep.subr.mxu0 0.0
      %984 = vmatpush1.msra.mxu0 %v939
      %985 = vmatprep.subr.mxu0 0.0
      %986 = vmatpush1.msra.mxu0 %v940
      %987 = vmatprep.subr.mxu0 0.0
      %988 = vmatpush1.msra.mxu0 %v941
      %989 = vmatprep.subr.mxu0 0.0
      %990 = vmatpush1.msra.mxu0 %v942
      %991 = vmatprep.subr.mxu0 0.0
      %992 = vmatpush1.msra.mxu0 %v943
      %993 = vmatprep.subr.mxu0 0.0
      %994 = vmatpush1.msra.mxu0 %v944
      %995 = vmatprep.subr.mxu0 0.0
      %996 = vmatpush1.msra.mxu0 %v945
      %997 = vmatprep.subr.mxu0 0.0
      %998 = vmatpush1.msra.mxu0 %v946
      %999 = vmatprep.subr.mxu0 0.0
      %1000 = vmatpush1.msra.mxu0 %v947
      %1001 = vmatprep.subr.mxu0 0.0
      %1002 = vmatpush1.msra.mxu0 %v948
      %1003 = vmatprep.subr.mxu0 0.0
      %1004 = vmatpush1.msra.mxu0 %v949
      %1005 = vmatprep.subr.mxu0 0.0
      %1006 = vmatpush1.msra.mxu0 %v950
      %1007 = vmatprep.subr.mxu0 0.0
      %1008 = vmatpush1.msra.mxu0 %v951
      %1009 = vmatprep.subr.mxu0 0.0
      %1010 = vmatpush1.msra.mxu0 %v952
      %1011 = vmatprep.subr.mxu0 0.0
      %1012 = vmatpush1.msra.mxu0 %v953
      %1013 = vmatprep.subr.mxu0 0.0
      %1014 = vmatpush1.msra.mxu0 %v954
      %1015 = vmatprep.subr.mxu0 0.0
      %1016 = vmatpush1.msra.mxu0 %v955
      %1017 = vmatprep.subr.mxu0 0.0
      %1018 = vmatpush1.msra.mxu0 %v956
      %1019 = vmatprep.subr.mxu0 0.0
      %1020 = vmatpush1.msra.mxu0 %v957
      %1021 = vmatprep.subr.mxu0 0.0
      %1022 = vmatpush1.msra.mxu0 %v958
      %1023 = vmatprep.mubr.f32.mxu0 %v824
      %1024 = vmatmul.mubr.f32.gmra.mrb[0].mxu0 %v823
      %v1025 = vpop.f32.mrb[0].mxu0
      %v1026 = vadd.f32 0.0, %v1025
      %v1027 = vpop.f32.mrb[0].mxu0
      %1028 = vdwg.mxu0
      %v1029 = vmax.f32 %v924, %v1026
      %1030 = vst [vmem:[%s276] sm:$0xf] %v1029
      %p1031 = scmp.lt.s32.totalorder %s18, 1
      %s1032 = scalar_select %p1031, %s18, 1
      %s1033 = smul.addr %s1032, 4
      %s1034 = scalar_lea.vmem %s7, %s1033
      // Predicated region
      $region49: #{vgg_rank_head_forward.4} parent=47 // pred_check
        %p1035 = pneg %p188
      $region50: #{vgg_rank_head_forward.4} parent=47 // pred_check_branch
        %1037 = sbr.rel (%p1035) target = $region52
      $region51: #{vgg_rank_head_forward.4} parent=47 // pred_region
        _
      $region52: #{vgg_rank_head_forward.4} parent=47 // pred_fallthru
        _
    $region48: #{vgg_rank_head_forward.4} parent=5 // pred_fallthru
      _
    %p1038 = scmp.le.s32.totalorder 2, %s13
    // Predicated region
    $region53: #{vgg_rank_head_forward.4} parent=5 // pred_check
      %p1039 = pneg %p1038
    $region54: #{vgg_rank_head_forward.4} parent=5 // pred_check_branch
      %1041 = sbr.rel (%p1039) target = $region56
    $region55: #{vgg_rank_head_forward.4} parent=5 // pred_region
      %s1042 = ssub.s32 %s13, 2
      // Predicated region
      $region57: #{vgg_rank_head_forward.4} parent=55 // pred_check
        %p1043 = pneg %p194
      $region58: #{vgg_rank_head_forward.4} parent=55 // pred_check_branch
        %1045 = sbr.rel (%p1043) target = $region60
      $region59: #{vgg_rank_head_forward.4} parent=55 // pred_region
        %p1046 = scmp.lt.s32.totalorder %s19, 1
        %s1047 = scalar_select %p1046, %s19, 1
        %s1048 = smul.addr %s1047, 4
        %s1049 = scalar_lea.vmem %s7, %s1048
      $region60: #{vgg_rank_head_forward.4} parent=55 // pred_fallthru
        _
    $region56: #{vgg_rank_head_forward.4} parent=5 // pred_fallthru
      _
  $region6: #{vgg_rank_head_forward.4} parent=0 // loop_footer
    %s17 = sadd.s32 1, %s13
  $region7: #{vgg_rank_head_forward.4} parent=0 // loop_footer_branch
    %12 = sbr.rel target = $region3
  $region8: #{vgg_rank_head_forward.4} parent=0 // loop_exit
    _

// kernel: vgg_rank_head_forward.5
$region0: #{vgg_rank_head_forward.5}
  #allocation0 [shape = 'u32[]', space=smem, size = 0x4, offset = 0x4, fixed_abs, tag = 'smem constant byte address 0x4 - core index']
  #allocation1 [shape = 'u32[144,128]{1,0:T(1,128)}', space=vmem, size = 0x12000, scoped, tag = 'internal scratch']
  %s0 = inlined_call_operand.vmem [shape: f32[2,512], index: 0, kind: input, shape index: {}]
  %s1 = inlined_call_operand.vmem [shape: f32[512,128], index: 1, kind: input, shape index: {}]
  %s2 = inlined_call_operand.vmem [shape: f32[1,128], index: 2, kind: input, shape index: {}]
  %s3 = inlined_call_operand.vmem [shape: f32[128,128], index: 3, kind: input, shape index: {}]
  %s4 = inlined_call_operand.vmem [shape: f32[1,128], index: 4, kind: input, shape index: {}]
  %s5 = inlined_call_operand.vmem [shape: f32[128,20], index: 5, kind: input, shape index: {}]
  %s6 = inlined_call_operand.vmem [shape: f32[1,20], index: 6, kind: input, shape index: {}]
  %s7 = inlined_call_operand.hbm [shape: f32[2,10], index: 7, kind: output, shape index: {0}]
  %s8 = inlined_call_operand.hbm [shape: f32[2,10], index: 8, kind: output, shape index: {1}]
  %9 = xla_tuple %s7, %s8
  %s10 = sld [smem:[#allocation0]]
  $region46: #{vgg_rank_head_forward.5} parent=0
    _
  %s12 = ssub.s32 1, %s10
  %s13 = scalar_select 0, %s12, %s10
  $region1: #{vgg_rank_head_forward.5} parent=0
    #allocation2 [shape = 'u8[1024]{0}', space=vmem, size = 0x400, scoped, tag = 'output window, operand 0, single buffered']
    #allocation3 [shape = 's32[1]{0}', space=sflag, size = 0x4, scoped, tag = 'scoped memory for vgg_rank_head_forward.5']
    #allocation4 [shape = 'u8[1024]{0}', space=vmem, size = 0x400, scoped, tag = 'output window, operand 1, single buffered']
    #allocation5 [shape = 's32[1]{0}', space=sflag, size = 0x4, scoped, tag = 'scoped memory for vgg_rank_head_forward.5']
    %14 = vsyncpa [#allocation3], 0
    %15 = vsyncpa [#allocation5], 0
    // Predicated region
    $region2: #{vgg_rank_head_forward.5} parent=1 // pred_check
      _
    $region3: #{vgg_rank_head_forward.5} parent=1 // pred_check_branch
      %17 = sbr.rel (0) target = $region5
    $region4: #{vgg_rank_head_forward.5} parent=1 // pred_region
      _
    $region5: #{vgg_rank_head_forward.5} parent=1 // pred_fallthru
      _
    // Predicated region
    $region6: #{vgg_rank_head_forward.5} parent=1 // pred_check
      _
    $region7: #{vgg_rank_head_forward.5} parent=1 // pred_check_branch
      %19 = sbr.rel (0) target = $region9
    $region8: #{vgg_rank_head_forward.5} parent=1 // pred_region
      _
    $region9: #{vgg_rank_head_forward.5} parent=1 // pred_fallthru
      _
    // Predicated region
    $region10: #{vgg_rank_head_forward.5} parent=1 // pred_check
      _
    $region11: #{vgg_rank_head_forward.5} parent=1 // pred_check_branch
      %21 = sbr.rel (0) target = $region13
    $region12: #{vgg_rank_head_forward.5} parent=1 // pred_region
      _
    $region13: #{vgg_rank_head_forward.5} parent=1 // pred_fallthru
      _
    // Predicated region
    $region14: #{vgg_rank_head_forward.5} parent=1 // pred_check
      _
    $region15: #{vgg_rank_head_forward.5} parent=1 // pred_check_branch
      %23 = sbr.rel (0) target = $region17
    $region16: #{vgg_rank_head_forward.5} parent=1 // pred_region
      _
    $region17: #{vgg_rank_head_forward.5} parent=1 // pred_fallthru
      _
    // Predicated region
    $region18: #{vgg_rank_head_forward.5} parent=1 // pred_check
      _
    $region19: #{vgg_rank_head_forward.5} parent=1 // pred_check_branch
      %25 = sbr.rel (0) target = $region21
    $region20: #{vgg_rank_head_forward.5} parent=1 // pred_region
      _
    $region21: #{vgg_rank_head_forward.5} parent=1 // pred_fallthru
      _
    // Predicated region
    $region22: #{vgg_rank_head_forward.5} parent=1 // pred_check
      _
    $region23: #{vgg_rank_head_forward.5} parent=1 // pred_check_branch
      %27 = sbr.rel (0) target = $region25
    $region24: #{vgg_rank_head_forward.5} parent=1 // pred_region
      _
    $region25: #{vgg_rank_head_forward.5} parent=1 // pred_fallthru
      _
    // Predicated region
    $region26: #{vgg_rank_head_forward.5} parent=1 // pred_check
      _
    $region27: #{vgg_rank_head_forward.5} parent=1 // pred_check_branch
      %29 = sbr.rel (0) target = $region29
    $region28: #{vgg_rank_head_forward.5} parent=1 // pred_region
      _
    $region29: #{vgg_rank_head_forward.5} parent=1 // pred_fallthru
      _
    %v30 = vld [vmem:[%s0] sm:$0xff]
    %v31 = vld [vmem:[%s1] sm:$0xff]
    %v32 = vld [vmem:[%s1 + $0x8] sm:$0xff]
    %v33 = vld [vmem:[%s1 + $0x10] sm:$0xff]
    %v34 = vld [vmem:[%s1 + $0x18] sm:$0xff]
    %v35 = vld [vmem:[%s1 + $0x20] sm:$0xff]
    %v36 = vld [vmem:[%s1 + $0x28] sm:$0xff]
    %v37 = vld [vmem:[%s1 + $0x30] sm:$0xff]
    %v38 = vld [vmem:[%s1 + $0x38] sm:$0xff]
    %v39 = vld [vmem:[%s1 + $0x40] sm:$0xff]
    %v40 = vld [vmem:[%s1 + $0x48] sm:$0xff]
    %v41 = vld [vmem:[%s1 + $0x50] sm:$0xff]
    %v42 = vld [vmem:[%s1 + $0x58] sm:$0xff]
    %v43 = vld [vmem:[%s1 + $0x60] sm:$0xff]
    %v44 = vld [vmem:[%s1 + $0x68] sm:$0xff]
    %v45 = vld [vmem:[%s1 + $0x70] sm:$0xff]
    %v46 = vld [vmem:[%s1 + $0x78] sm:$0xff]
    %v47 = vld [vmem:[%s1 + $0x80] sm:$0xff]
    %v48 = vld [vmem:[%s1 + $0x88] sm:$0xff]
    %v49 = vld [vmem:[%s1 + $0x90] sm:$0xff]
    %v50 = vld [vmem:[%s1 + $0x98] sm:$0xff]
    %v51 = vld [vmem:[%s1 + $0xa0] sm:$0xff]
    %v52 = vld [vmem:[%s1 + $0xa8] sm:$0xff]
    %v53 = vld [vmem:[%s1 + $0xb0] sm:$0xff]
    %v54 = vld [vmem:[%s1 + $0xb8] sm:$0xff]
    %v55 = vld [vmem:[%s1 + $0xc0] sm:$0xff]
    %v56 = vld [vmem:[%s1 + $0xc8] sm:$0xff]
    %v57 = vld [vmem:[%s1 + $0xd0] sm:$0xff]
    %v58 = vld [vmem:[%s1 + $0xd8] sm:$0xff]
    %v59 = vld [vmem:[%s1 + $0xe0] sm:$0xff]
    %v60 = vld [vmem:[%s1 + $0xe8] sm:$0xff]
    %v61 = vld [vmem:[%s1 + $0xf0] sm:$0xff]
    %v62 = vld [vmem:[%s1 + $0xf8] sm:$0xff]
    %v63 = vld [vmem:[%s1 + $0x100] sm:$0xff]
    %v64 = vld [vmem:[%s1 + $0x108] sm:$0xff]
    %v65 = vld [vmem:[%s1 + $0x110] sm:$0xff]
    %v66 = vld [vmem:[%s1 + $0x118] sm:$0xff]
    %v67 = vld [vmem:[%s1 + $0x120] sm:$0xff]
    %v68 = vld [vmem:[%s1 + $0x128] sm:$0xff]
    %v69 = vld [vmem:[%s1 + $0x130] sm:$0xff]
    %v70 = vld [vmem:[%s1 + $0x138] sm:$0xff]
    %v71 = vld [vmem:[%s1 + $0x140] sm:$0xff]
    %v72 = vld [vmem:[%s1 + $0x148] sm:$0xff]
    %v73 = vld [vmem:[%s1 + $0x150] sm:$0xff]
    %v74 = vld [vmem:[%s1 + $0x158] sm:$0xff]
    %v75 = vld [vmem:[%s1 + $0x160] sm:$0xff]
    %v76 = vld [vmem:[%s1 + $0x168] sm:$0xff]
    %v77 = vld [vmem:[%s1 + $0x170] sm:$0xff]
    %v78 = vld [vmem:[%s1 + $0x178] sm:$0xff]
    %v79 = vld [vmem:[%s1 + $0x180] sm:$0xff]
    %v80 = vld [vmem:[%s1 + $0x188] sm:$0xff]
    %v81 = vld [vmem:[%s1 + $0x190] sm:$0xff]
    %v82 = vld [vmem:[%s1 + $0x198] sm:$0xff]
    %v83 = vld [vmem:[%s1 + $0x1a0] sm:$0xff]
    %v84 = vld [vmem:[%s1 + $0x1a8] sm:$0xff]
    %v85 = vld [vmem:[%s1 + $0x1b0] sm:$0xff]
    %v86 = vld [vmem:[%s1 + $0x1b8] sm:$0xff]
    %v87 = vld [vmem:[%s1 + $0x1c0] sm:$0xff]
    %v88 = vld [vmem:[%s1 + $0x1c8] sm:$0xff]
    %v89 = vld [vmem:[%s1 + $0x1d0] sm:$0xff]
    %v90 = vld [vmem:[%s1 + $0x1d8] sm:$0xff]
    %v91 = vld [vmem:[%s1 + $0x1e0] sm:$0xff]
    %v92 = vld [vmem:[%s1 + $0x1e8] sm:$0xff]
    %v93 = vld [vmem:[%s1 + $0x1f0] sm:$0xff]
    %v94 = vld [vmem:[%s1 + $0x1f8] sm:$0xff]
    %v95 = vld [vmem:[%s2] sm:$0x1]
    %v97 = vlaneseq
    %v98 = vshrl.u32 %v97, 7
    %v99 = vsub.s32 0, %v98
    %v100 = vrot.slane %v95, %v99
    %v103 = vcombine.high %v30, %v30
    %v105 = vunpack.c.l.s4 1983009808
    %v106 = vunpack.c.0.s8 %v105
    %v107 = vlaneseq
    %v108 = vshrl.u32 %v107, 7
    %v109 = vsub.s32 %v106, %v108
    %v110 = vrot.slane %v30, %v109
    %v112 = vunpack.c.l.s4 1983009808
    %v113 = vunpack.c.0.s8 %v112
    %v114 = vlaneseq
    %v115 = vshrl.u32 %v114, 7
    %v116 = vsub.s32 %v113, %v115
    %v117 = vrot.slane %v103, %v116
    %v118 = vcombine.high %v110, %v110
    %v119 = vcombine.high %v117, %v117
    %124 = vmatprep.subr.mxu0 0.0
    %125 = vmatpush1.msra.mxu0 %v31
    %126 = vmatprep.subr.mxu0 0.0
    %127 = vmatpush1.msra.mxu0 %v32
    %128 = vmatprep.subr.mxu0 0.0
    %129 = vmatpush1.msra.mxu0 %v33
    %130 = vmatprep.subr.mxu0 0.0
    %131 = vmatpush1.msra.mxu0 %v34
    %132 = vmatprep.subr.mxu0 0.0
    %133 = vmatpush1.msra.mxu0 %v35
    %134 = vmatprep.subr.mxu0 0.0
    %135 = vmatpush1.msra.mxu0 %v36
    %136 = vmatprep.subr.mxu0 0.0
    %137 = vmatpush1.msra.mxu0 %v37
    %138 = vmatprep.subr.mxu0 0.0
    %139 = vmatpush1.msra.mxu0 %v38
    %140 = vmatprep.subr.mxu0 0.0
    %141 = vmatpush1.msra.mxu0 %v39
    %142 = vmatprep.subr.mxu0 0.0
    %143 = vmatpush1.msra.mxu0 %v40
    %144 = vmatprep.subr.mxu0 0.0
    %145 = vmatpush1.msra.mxu0 %v41
    %146 = vmatprep.subr.mxu0 0.0
    %147 = vmatpush1.msra.mxu0 %v42
    %148 = vmatprep.subr.mxu0 0.0
    %149 = vmatpush1.msra.mxu0 %v43
    %150 = vmatprep.subr.mxu0 0.0
    %151 = vmatpush1.msra.mxu0 %v44
    %152 = vmatprep.subr.mxu0 0.0
    %153 = vmatpush1.msra.mxu0 %v45
    %154 = vmatprep.subr.mxu0 0.0
    %155 = vmatpush1.msra.mxu0 %v46
    %156 = vmatprep.subr.mxu0 0.0
    %157 = vmatpush1.msra.mxu0 %v47
    %158 = vmatprep.subr.mxu0 0.0
    %159 = vmatpush1.msra.mxu0 %v48
    %160 = vmatprep.subr.mxu0 0.0
    %161 = vmatpush1.msra.mxu0 %v49
    %162 = vmatprep.subr.mxu0 0.0
    %163 = vmatpush1.msra.mxu0 %v50
    %164 = vmatprep.subr.mxu0 0.0
    %165 = vmatpush1.msra.mxu0 %v51
    %166 = vmatprep.subr.mxu0 0.0
    %167 = vmatpush1.msra.mxu0 %v52
    %168 = vmatprep.subr.mxu0 0.0
    %169 = vmatpush1.msra.mxu0 %v53
    %170 = vmatprep.subr.mxu0 0.0
    %171 = vmatpush1.msra.mxu0 %v54
    %172 = vmatprep.subr.mxu0 0.0
    %173 = vmatpush1.msra.mxu0 %v55
    %174 = vmatprep.subr.mxu0 0.0
    %175 = vmatpush1.msra.mxu0 %v56
    %176 = vmatprep.subr.mxu0 0.0
    %177 = vmatpush1.msra.mxu0 %v57
    %178 = vmatprep.subr.mxu0 0.0
    %179 = vmatpush1.msra.mxu0 %v58
    %180 = vmatprep.subr.mxu0 0.0
    %181 = vmatpush1.msra.mxu0 %v59
    %182 = vmatprep.subr.mxu0 0.0
    %183 = vmatpush1.msra.mxu0 %v60
    %184 = vmatprep.subr.mxu0 0.0
    %185 = vmatpush1.msra.mxu0 %v61
    %186 = vmatprep.subr.mxu0 0.0
    %187 = vmatpush1.msra.mxu0 %v62
    %188 = vmatprep.mubr.f32.mxu0 %v118
    %189 = vmatmul.mubr.f32.gmra.mrb[0].mxu0 %v110
    %v190 = vpop.f32.mrb[0].mxu0
    %v191 = vadd.f32 %v100, %v190
    %v192 = vpop.f32.mrb[0].mxu0
    %193 = vdwg.mxu0
    %194 = vmatprep.subr.mxu0 0.0
    %195 = vmatpush1.msra.mxu0 %v63
    %196 = vmatprep.subr.mxu0 0.0
    %197 = vmatpush1.msra.mxu0 %v64
    %198 = vmatprep.subr.mxu0 0.0
    %199 = vmatpush1.msra.mxu0 %v65
    %200 = vmatprep.subr.mxu0 0.0
    %201 = vmatpush1.msra.mxu0 %v66
    %202 = vmatprep.subr.mxu0 0.0
    %203 = vmatpush1.msra.mxu0 %v67
    %204 = vmatprep.subr.mxu0 0.0
    %205 = vmatpush1.msra.mxu0 %v68
    %206 = vmatprep.subr.mxu0 0.0
    %207 = vmatpush1.msra.mxu0 %v69
    %208 = vmatprep.subr.mxu0 0.0
    %209 = vmatpush1.msra.mxu0 %v70
    %210 = vmatprep.subr.mxu0 0.0
    %211 = vmatpush1.msra.mxu0 %v71
    %212 = vmatprep.subr.mxu0 0.0
    %213 = vmatpush1.msra.mxu0 %v72
    %214 = vmatprep.subr.mxu0 0.0
    %215 = vmatpush1.msra.mxu0 %v73
    %216 = vmatprep.subr.mxu0 0.0
    %217 = vmatpush1.msra.mxu0 %v74
    %218 = vmatprep.subr.mxu0 0.0
    %219 = vmatpush1.msra.mxu0 %v75
    %220 = vmatprep.subr.mxu0 0.0
    %221 = vmatpush1.msra.mxu0 %v76
    %222 = vmatprep.subr.mxu0 0.0
    %223 = vmatpush1.msra.mxu0 %v77
    %224 = vmatprep.subr.mxu0 0.0
    %225 = vmatpush1.msra.mxu0 %v78
    %226 = vmatprep.subr.mxu0 0.0
    %227 = vmatpush1.msra.mxu0 %v79
    %228 = vmatprep.subr.mxu0 0.0
    %229 = vmatpush1.msra.mxu0 %v80
    %230 = vmatprep.subr.mxu0 0.0
    %231 = vmatpush1.msra.mxu0 %v81
    %232 = vmatprep.subr.mxu0 0.0
    %233 = vmatpush1.msra.mxu0 %v82
    %234 = vmatprep.subr.mxu0 0.0
    %235 = vmatpush1.msra.mxu0 %v83
    %236 = vmatprep.subr.mxu0 0.0
    %237 = vmatpush1.msra.mxu0 %v84
    %238 = vmatprep.subr.mxu0 0.0
    %239 = vmatpush1.msra.mxu0 %v85
    %240 = vmatprep.subr.mxu0 0.0
    %241 = vmatpush1.msra.mxu0 %v86
    %242 = vmatprep.subr.mxu0 0.0
    %243 = vmatpush1.msra.mxu0 %v87
    %244 = vmatprep.subr.mxu0 0.0
    %245 = vmatpush1.msra.mxu0 %v88
    %246 = vmatprep.subr.mxu0 0.0
    %247 = vmatpush1.msra.mxu0 %v89
    %248 = vmatprep.subr.mxu0 0.0
    %249 = vmatpush1.msra.mxu0 %v90
    %250 = vmatprep.subr.mxu0 0.0
    %251 = vmatpush1.msra.mxu0 %v91
    %252 = vmatprep.subr.mxu0 0.0
    %253 = vmatpush1.msra.mxu0 %v92
    %254 = vmatprep.subr.mxu0 0.0
    %255 = vmatpush1.msra.mxu0 %v93
    %256 = vmatprep.subr.mxu0 0.0
    %257 = vmatpush1.msra.mxu0 %v94
    %258 = vmatprep.mubr.f32.mxu0 %v119
    %259 = vmatmul.mubr.f32.gmra.mrb[0].mxu0 %v117
    %v260 = vpop.f32.mrb[0].mxu0
    %v261 = vadd.f32 %v191, %v260
    %v262 = vpop.f32.mrb[0].mxu0
    %263 = vdwg.mxu0
    %v264 = vmax.f32 %v261, 0.0
    %v265 = vld [vmem:[%s3] sm:$0xff]
    %v266 = vld [vmem:[%s3 + $0x8] sm:$0xff]
    %v267 = vld [vmem:[%s3 + $0x10] sm:$0xff]
    %v268 = vld [vmem:[%s3 + $0x18] sm:$0xff]
    %v269 = vld [vmem:[%s3 + $0x20] sm:$0xff]
    %v270 = vld [vmem:[%s3 + $0x28] sm:$0xff]
    %v271 = vld [vmem:[%s3 + $0x30] sm:$0xff]
    %v272 = vld [vmem:[%s3 + $0x38] sm:$0xff]
    %v273 = vld [vmem:[%s3 + $0x40] sm:$0xff]
    %v274 = vld [vmem:[%s3 + $0x48] sm:$0xff]
    %v275 = vld [vmem:[%s3 + $0x50] sm:$0xff]
    %v276 = vld [vmem:[%s3 + $0x58] sm:$0xff]
    %v277 = vld [vmem:[%s3 + $0x60] sm:$0xff]
    %v278 = vld [vmem:[%s3 + $0x68] sm:$0xff]
    %v279 = vld [vmem:[%s3 + $0x70] sm:$0xff]
    %v280 = vld [vmem:[%s3 + $0x78] sm:$0xff]
    %v281 = vld [vmem:[%s4] sm:$0x1]
    %v283 = vlaneseq
    %v284 = vshrl.u32 %v283, 7
    %v285 = vsub.s32 0, %v284
    %v286 = vrot.slane %v281, %v285
    %288 = vmatprep.subr.mxu0 0.0
    %289 = vmatpush1.msra.mxu0 %v265
    %290 = vmatprep.subr.mxu0 0.0
    %291 = vmatpush1.msra.mxu0 %v266
    %292 = vmatprep.subr.mxu0 0.0
    %293 = vmatpush1.msra.mxu0 %v267
    %294 = vmatprep.subr.mxu0 0.0
    %295 = vmatpush1.msra.mxu0 %v268
    %296 = vmatprep.subr.mxu0 0.0
    %297 = vmatpush1.msra.mxu0 %v269
    %298 = vmatprep.subr.mxu0 0.0
    %299 = vmatpush1.msra.mxu0 %v270
    %300 = vmatprep.subr.mxu0 0.0
    %301 = vmatpush1.msra.mxu0 %v271
    %302 = vmatprep.subr.mxu0 0.0
    %303 = vmatpush1.msra.mxu0 %v272
    %304 = vmatprep.subr.mxu0 0.0
    %305 = vmatpush1.msra.mxu0 %v273
    %306 = vmatprep.subr.mxu0 0.0
    %307 = vmatpush1.msra.mxu0 %v274
    %308 = vmatprep.subr.mxu0 0.0
    %309 = vmatpush1.msra.mxu0 %v275
    %310 = vmatprep.subr.mxu0 0.0
    %311 = vmatpush1.msra.mxu0 %v276
    %312 = vmatprep.subr.mxu0 0.0
    %313 = vmatpush1.msra.mxu0 %v277
    %314 = vmatprep.subr.mxu0 0.0
    %315 = vmatpush1.msra.mxu0 %v278
    %316 = vmatprep.subr.mxu0 0.0
    %317 = vmatpush1.msra.mxu0 %v279
    %318 = vmatprep.subr.mxu0 0.0
    %319 = vmatpush1.msra.mxu0 %v280
    %320 = vmatprep.subr.mxu0 0.0
    %321 = vmatpush1.msra.mxu0 0.0
    %322 = vmatprep.subr.mxu0 0.0
    %323 = vmatpush1.msra.mxu0 0.0
    %324 = vmatprep.subr.mxu0 0.0
    %325 = vmatpush1.msra.mxu0 0.0
    %326 = vmatprep.subr.mxu0 0.0
    %327 = vmatpush1.msra.mxu0 0.0
    %328 = vmatprep.subr.mxu0 0.0
    %329 = vmatpush1.msra.mxu0 0.0
    %330 = vmatprep.subr.mxu0 0.0
    %331 = vmatpush1.msra.mxu0 0.0
    %332 = vmatprep.subr.mxu0 0.0
    %333 = vmatpush1.msra.mxu0 0.0
    %334 = vmatprep.subr.mxu0 0.0
    %335 = vmatpush1.msra.mxu0 0.0
    %336 = vmatprep.subr.mxu0 0.0
    %337 = vmatpush1.msra.mxu0 0.0
    %338 = vmatprep.subr.mxu0 0.0
    %339 = vmatpush1.msra.mxu0 0.0
    %340 = vmatprep.subr.mxu0 0.0
    %341 = vmatpush1.msra.mxu0 0.0
    %342 = vmatprep.subr.mxu0 0.0
    %343 = vmatpush1.msra.mxu0 0.0
    %344 = vmatprep.subr.mxu0 0.0
    %345 = vmatpush1.msra.mxu0 0.0
    %346 = vmatprep.subr.mxu0 0.0
    %347 = vmatpush1.msra.mxu0 0.0
    %348 = vmatprep.subr.mxu0 0.0
    %349 = vmatpush1.msra.mxu0 0.0
    %350 = vmatprep.subr.mxu0 0.0
    %351 = vmatpush1.msra.mxu0 0.0
    %352 = vmatprep.mubr.f32.mxu0 0.0
    %353 = vmatmul.mubr.f32.gmra.mrb[0].mxu0 %v264
    %v354 = vpop.f32.mrb[0].mxu0
    %v355 = vadd.f32 %v286, %v354
    %v356 = vpop.f32.mrb[0].mxu0
    %357 = vdwg.mxu0
    %v358 = vmax.f32 %v355, 0.0
    %v359 = vld [vmem:[%s5] sm:$0xff]
    %v360 = vld [vmem:[%s5 + $0x8] sm:$0xff]
    %v361 = vld [vmem:[%s5 + $0x10] sm:$0xff]
    %v362 = vld [vmem:[%s5 + $0x18] sm:$0xff]
    %v363 = vld [vmem:[%s5 + $0x20] sm:$0xff]
    %v364 = vld [vmem:[%s5 + $0x28] sm:$0xff]
    %v365 = vld [vmem:[%s5 + $0x30] sm:$0xff]
    %v366 = vld [vmem:[%s5 + $0x38] sm:$0xff]
    %v367 = vld [vmem:[%s5 + $0x40] sm:$0xff]
    %v368 = vld [vmem:[%s5 + $0x48] sm:$0xff]
    %v369 = vld [vmem:[%s5 + $0x50] sm:$0xff]
    %v370 = vld [vmem:[%s5 + $0x58] sm:$0xff]
    %v371 = vld [vmem:[%s5 + $0x60] sm:$0xff]
    %v372 = vld [vmem:[%s5 + $0x68] sm:$0xff]
    %v373 = vld [vmem:[%s5 + $0x70] sm:$0xff]
    %v374 = vld [vmem:[%s5 + $0x78] sm:$0xff]
    %v375 = vld [vmem:[%s6] sm:$0x1]
    %v377 = vlaneseq
    %v378 = vshrl.u32 %v377, 7
    %v379 = vsub.s32 0, %v378
    %v380 = vrot.slane %v375, %v379
    %382 = vmatprep.subr.mxu0 0.0
    %383 = vmatpush1.msra.mxu0 %v359
    %384 = vmatprep.subr.mxu0 0.0
    %385 = vmatpush1.msra.mxu0 %v360
    %386 = vmatprep.subr.mxu0 0.0
    %387 = vmatpush1.msra.mxu0 %v361
    %388 = vmatprep.subr.mxu0 0.0
    %389 = vmatpush1.msra.mxu0 %v362
    %390 = vmatprep.subr.mxu0 0.0
    %391 = vmatpush1.msra.mxu0 %v363
    %392 = vmatprep.subr.mxu0 0.0
    %393 = vmatpush1.msra.mxu0 %v364
    %394 = vmatprep.subr.mxu0 0.0
    %395 = vmatpush1.msra.mxu0 %v365
    %396 = vmatprep.subr.mxu0 0.0
    %397 = vmatpush1.msra.mxu0 %v366
    %398 = vmatprep.subr.mxu0 0.0
    %399 = vmatpush1.msra.mxu0 %v367
    %400 = vmatprep.subr.mxu0 0.0
    %401 = vmatpush1.msra.mxu0 %v368
    %402 = vmatprep.subr.mxu0 0.0
    %403 = vmatpush1.msra.mxu0 %v369
    %404 = vmatprep.subr.mxu0 0.0
    %405 = vmatpush1.msra.mxu0 %v370
    %406 = vmatprep.subr.mxu0 0.0
    %407 = vmatpush1.msra.mxu0 %v371
    %408 = vmatprep.subr.mxu0 0.0
    %409 = vmatpush1.msra.mxu0 %v372
    %410 = vmatprep.subr.mxu0 0.0
    %411 = vmatpush1.msra.mxu0 %v373
    %412 = vmatprep.subr.mxu0 0.0
    %413 = vmatpush1.msra.mxu0 %v374
    %414 = vmatprep.subr.mxu0 0.0
    %415 = vmatpush1.msra.mxu0 0.0
    %416 = vmatprep.subr.mxu0 0.0
    %417 = vmatpush1.msra.mxu0 0.0
    %418 = vmatprep.subr.mxu0 0.0
    %419 = vmatpush1.msra.mxu0 0.0
    %420 = vmatprep.subr.mxu0 0.0
    %421 = vmatpush1.msra.mxu0 0.0
    %422 = vmatprep.subr.mxu0 0.0
    %423 = vmatpush1.msra.mxu0 0.0
    %424 = vmatprep.subr.mxu0 0.0
    %425 = vmatpush1.msra.mxu0 0.0
    %426 = vmatprep.subr.mxu0 0.0
    %427 = vmatpush1.msra.mxu0 0.0
    %428 = vmatprep.subr.mxu0 0.0
    %429 = vmatpush1.msra.mxu0 0.0
    %430 = vmatprep.subr.mxu0 0.0
    %431 = vmatpush1.msra.mxu0 0.0
    %432 = vmatprep.subr.mxu0 0.0
    %433 = vmatpush1.msra.mxu0 0.0
    %434 = vmatprep.subr.mxu0 0.0
    %435 = vmatpush1.msra.mxu0 0.0
    %436 = vmatprep.subr.mxu0 0.0
    %437 = vmatpush1.msra.mxu0 0.0
    %438 = vmatprep.subr.mxu0 0.0
    %439 = vmatpush1.msra.mxu0 0.0
    %440 = vmatprep.subr.mxu0 0.0
    %441 = vmatpush1.msra.mxu0 0.0
    %442 = vmatprep.subr.mxu0 0.0
    %443 = vmatpush1.msra.mxu0 0.0
    %444 = vmatprep.subr.mxu0 0.0
    %445 = vmatpush1.msra.mxu0 0.0
    %446 = vmatprep.mubr.f32.mxu0 0.0
    %447 = vmatmul.mubr.f32.gmra.mrb[0].mxu0 %v358
    %v448 = vpop.f32.mrb[0].mxu0
    %v449 = vadd.f32 %v380, %v448
    %v450 = vpop.f32.mrb[0].mxu0
    %451 = vdwg.mxu0
    %v452 = vmul.f32 %v449, 0.5
    %v453 = vtanh.pop %v452
    %v454 = vadd.f32 %v453, 1.0
    %v455 = vmul.f32 %v454, 0.5
    %vm456 = vcmask 74752
    %457 = vst.msk [vmem:[#allocation2] sm:$0x3] %vm456, %v455
    %vm458 = vcmask 156752
    %v459 = vsel %vm458, %v449, -inf
    %460 = vmax.xlane.f32.xlu0 %v459
    %v461 = vpop.xlane.xlu0 %460
    %v462 = vsub.f32 %v449, %v461
    %v463 = vmul.f32 %v462, 1.442695
    %v464 = vpow.pop %v463
    %466 = vrot.lane.b32.xlu0 %v464, 118
    %v467 = vpop.permute.xlu0 %466
    %v469 = vsel %vm456, %v467, 0.0
    %470 = vadd.xlane.f32.xlu0 %v469
    %v471 = vpop.xlane.xlu0 %470
    %v472 = vrcp.pop %v471
    %v473 = vmul.f32 %v464, %v472
    %475 = vrot.lane.b32.xlu0 %v473, 118
    %v476 = vpop.permute.xlu0 %475
    %478 = vst.msk [vmem:[#allocation4] sm:$0x3] %vm456, %v476
    // Predicated region
    $region30: #{vgg_rank_head_forward.5} parent=1 // pred_check
      _
    $region31: #{vgg_rank_head_forward.5} parent=1 // pred_check_branch
      %480 = sbr.rel (0) target = $region33
    $region32: #{vgg_rank_head_forward.5} parent=1 // pred_region
      %s482 = ssub.s32 32, 32
      %483 = vsyncadd [#allocation3], %s482
      %s485 = sshll.u32 [#allocation2], 4
      %s486 = int_to_ptr.vmem [resolvable:$true] %s485
      %488 = dma.vmem_to_hbm [thread:$0]  %s486, 32, %s7, [#allocation3]
    $region33: #{vgg_rank_head_forward.5} parent=1 // pred_fallthru
      _
    // Predicated region
    $region34: #{vgg_rank_head_forward.5} parent=1 // pred_check
      _
    $region35: #{vgg_rank_head_forward.5} parent=1 // pred_check_branch
      %490 = sbr.rel (0) target = $region37
    $region36: #{vgg_rank_head_forward.5} parent=1 // pred_region
      %s492 = ssub.s32 32, 32
      %493 = vsyncadd [#allocation5], %s492
      %s495 = sshll.u32 [#allocation4], 4
      %s496 = int_to_ptr.vmem [resolvable:$true] %s495
      %498 = dma.vmem_to_hbm [thread:$0]  %s496, 32, %s8, [#allocation5]
    $region37: #{vgg_rank_head_forward.5} parent=1 // pred_fallthru
      _
    // Predicated region
    $region38: #{vgg_rank_head_forward.5} parent=1 // pred_check
      _
    $region39: #{vgg_rank_head_forward.5} parent=1 // pred_check_branch
      %500 = sbr.rel (0) target = $region41
    $region40: #{vgg_rank_head_forward.5} parent=1 // pred_region
      %501 = dma.done [#allocation3], 32
    $region41: #{vgg_rank_head_forward.5} parent=1 // pred_fallthru
      _
    // Predicated region
    $region42: #{vgg_rank_head_forward.5} parent=1 // pred_check
      _
    $region43: #{vgg_rank_head_forward.5} parent=1 // pred_check_branch
      %503 = sbr.rel (0) target = $region45
    $region44: #{vgg_rank_head_forward.5} parent=1 // pred_region
      %504 = dma.done [#allocation5], 32
    $region45: #{vgg_rank_head_forward.5} parent=1 // pred_fallthru
      _
    %505 = vsyncpa [#allocation3], 1
    %506 = vsyncpa [#allocation5], 1

</llo_original>
